<compile_context>
chip_gen: v7x
topology: tpu7x:2x2x1
jax: 0.10.0
libtpu: 0.0.40
codegen_flags: <defaults>
</compile_context>

<pallas_src>
import jax
import jax.numpy as jnp
from jax.experimental import pallas as pl
from jax.experimental.pallas import tpu as pltpu

N_HEAD = 24
INPUT_DIM = 32          # before +3 bbox concat
HIDDEN_DIM = 32
POSE_DIM = 6
BBOX_DIM = 3
IN_CAT = INPUT_DIM + BBOX_DIM  # 35


# ----------------------------------------------------------------------------
# Single fused kernel: pose (block-diag multi-head MLP) + shape MLP + cam MLP
# ----------------------------------------------------------------------------
def _regressor_kernel(
    hpose_ref, hshape_ref, hcam_ref, bbox_ref,
    w1pf_ref, w1pb_ref, b1p_ref, w2p_ref, b2p_ref,
    w1sf_ref, w1sb_ref, b1s_ref, w2s_ref, b2s_ref,
    w1cf_ref, w1cb_ref, b1c_ref, w2c_ref, b2c_ref,
    o_pose_ref, o_shape_ref, o_cam_ref,
):
    bbox = bbox_ref[...]                                        # (BN, 3)

    # ---- pose branch: all 24 heads as one block-diagonal matmul ------------
    hp = (jnp.dot(hpose_ref[...], w1pf_ref[...],
                  preferred_element_type=jnp.float32)           # (BN, 768)
          + jnp.dot(bbox, w1pb_ref[...],
                    preferred_element_type=jnp.float32)
          + b1p_ref[...])
    hp = jnp.maximum(hp, 0.0)                                   # ReLU
    o_pose = (jnp.dot(hp, w2p_ref[...],
                      preferred_element_type=jnp.float32)       # (BN, 144)
              + b2p_ref[...])
    o_pose_ref[...] = o_pose.astype(o_pose_ref.dtype)

    # ---- shape branch -------------------------------------------------------
    hs = (jnp.dot(hshape_ref[...], w1sf_ref[...],
                  preferred_element_type=jnp.float32)
          + jnp.dot(bbox, w1sb_ref[...],
                    preferred_element_type=jnp.float32)
          + b1s_ref[...])
    hs = jnp.maximum(hs, 0.0)
    o_shape = (jnp.dot(hs, w2s_ref[...],
                       preferred_element_type=jnp.float32)
               + b2s_ref[...])
    o_shape_ref[...] = o_shape.astype(o_shape_ref.dtype)

    # ---- cam branch ---------------------------------------------------------
    hc = (jnp.dot(hcam_ref[...], w1cf_ref[...],
                  preferred_element_type=jnp.float32)
          + jnp.dot(bbox, w1cb_ref[...],
                    preferred_element_type=jnp.float32)
          + b1c_ref[...])
    hc = jnp.maximum(hc, 0.0)
    o_cam = (jnp.dot(hc, w2c_ref[...],
                     preferred_element_type=jnp.float32)
             + b2c_ref[...])
    o_cam_ref[...] = o_cam.astype(o_cam_ref.dtype)


def regressor_forward(packed, hpose, hshape, hcam, bbox_info):
    """hpose: (BN, 24, 32), hshape/hcam: (BN, 32), bbox_info: (BN, 3)."""
    BN = hpose.shape[0]
    # Contiguous row-major reshape -> no copy; head-major flat feature layout.
    hpose_flat = hpose.reshape(BN, N_HEAD * INPUT_DIM)          # (BN, 768)

    inputs = (
        hpose_flat, hshape, hcam, bbox_info,
        packed['W1p_feat'], packed['W1p_bbox'], packed['b1p'],
        packed['W2p'], packed['b2p'],
        packed['W1s_feat'], packed['W1s_bbox'], packed['b1s'],
        packed['W2s'], packed['b2s'],
        packed['W1c_feat'], packed['W1c_bbox'], packed['b1c'],
        packed['W2c'], packed['b2c'],
    )

    def full_spec(a):
        # Whole (small) array in VMEM; block == full array dims satisfies the
        # (8,128) rule; single grid step -> each array is DMA'd exactly once.
        return pl.BlockSpec(a.shape, lambda i: (0, 0))

    out_shapes = (
        jax.ShapeDtypeStruct((BN, N_HEAD * POSE_DIM), hpose.dtype),  # (BN, 144)
        jax.ShapeDtypeStruct((BN, 10), hshape.dtype),
        jax.ShapeDtypeStruct((BN, 3), hcam.dtype),
    )

    d_pose, d_shape, d_cam = pl.pallas_call(
        _regressor_kernel,
        out_shape=out_shapes,
        grid_spec=pltpu.PrefetchScalarGridSpec(
            num_scalar_prefetch=0,
            grid=(1,),
            in_specs=[full_spec(a) for a in inputs],
            out_specs=[
                pl.BlockSpec((BN, N_HEAD * POSE_DIM), lambda i: (0, 0)),
                pl.BlockSpec((BN, 10), lambda i: (0, 0)),
                pl.BlockSpec((BN, 3), lambda i: (0, 0)),
            ],
        ),
        compiler_params=pltpu.CompilerParams(
            dimension_semantics=("arbitrary",)),
    )(*inputs)
    return d_pose, d_shape, d_cam


# ----------------------------------------------------------------------------
# Parameter construction (deterministic, synthetic) + one-time packing
# ----------------------------------------------------------------------------
def init_params(key):
    ks = jax.random.split(key, 12)

    def lin(kw, kb, fan_in, fan_out):
        scale = 1.0 / jnp.sqrt(jnp.float32(fan_in))
        w = jax.random.uniform(kw, (fan_in, fan_out), jnp.float32, -scale, scale)
        b = jax.random.uniform(kb, (1, fan_out), jnp.float32, -scale, scale)
        return w, b

    def multilin(kw, kb, n_head, fan_in, fan_out):
        scale = 1.0 / jnp.sqrt(jnp.float32(fan_in))
        w = jax.random.uniform(kw, (n_head, fan_in, fan_out), jnp.float32,
                               -scale, scale)
        b = jax.random.uniform(kb, (n_head, 1, fan_out), jnp.float32,
                               -scale, scale)
        return w, b

    Wp, bp = multilin(ks[0], ks[1], N_HEAD, IN_CAT, HIDDEN_DIM)       # self.p
    Wdp, bdp = multilin(ks[2], ks[3], N_HEAD, HIDDEN_DIM, POSE_DIM)   # decpose
    Ws, bs = lin(ks[4], ks[5], IN_CAT, HIDDEN_DIM)                    # self.s
    Wds, bds = lin(ks[6], ks[7], HIDDEN_DIM, 10)                      # decshape
    Wc, bc = lin(ks[8], ks[9], IN_CAT, HIDDEN_DIM)                    # self.c
    Wdc, bdc = lin(ks[10], ks[11], HIDDEN_DIM, 3)                     # deccam
    return dict(Wp=Wp, bp=bp, Wdp=Wdp, bdp=bdp, Ws=Ws, bs=bs,
                Wds=Wds, bds=bds, Wc=Wc, bc=bc, Wdc=Wdc, bdc=bdc)


def _block_diag_heads(w):
    """(H, I, O) per-head weights -> (H*I, H*O) block-diagonal matrix."""
    H, I, O = w.shape
    eye = jnp.eye(H, dtype=w.dtype)
    blk = jnp.einsum('hg,hio->higo', eye, w)        # nonzero only where h == g
    return blk.reshape(H * I, H * O)


def pack_params(p):
    """One-time re-layout of raw per-head/linear params into kernel layout."""
    Wp, bp = p['Wp'], p['bp']        # (24, 35, 32), (24, 1, 32)
    Wdp, bdp = p['Wdp'], p['bdp']    # (24, 32, 6),  (24, 1, 6)
    return dict(
        # pose branch, layer 1 split into feature / bbox parts
        W1p_feat=_block_diag_heads(Wp[:, :INPUT_DIM, :]),               # (768, 768)
        W1p_bbox=jnp.transpose(Wp[:, INPUT_DIM:, :], (1, 0, 2))
                    .reshape(BBOX_DIM, N_HEAD * HIDDEN_DIM),            # (3, 768)
        b1p=bp.reshape(1, N_HEAD * HIDDEN_DIM),                         # (1, 768)
        # pose branch, decoder
        W2p=_block_diag_heads(Wdp),                                     # (768, 144)
        b2p=bdp.reshape(1, N_HEAD * POSE_DIM),                          # (1, 144)
        # shape branch
        W1s_feat=p['Ws'][:INPUT_DIM, :], W1s_bbox=p['Ws'][INPUT_DIM:, :],
        b1s=p['bs'], W2s=p['Wds'], b2s=p['bds'],
        # cam branch
        W1c_feat=p['Wc'][:INPUT_DIM, :], W1c_bbox=p['Wc'][INPUT_DIM:, :],
        b1c=p['bc'], W2c=p['Wdc'], b2c=p['bdc'],
    )


if __name__ == "__main__":
    key = jax.random.PRNGKey(0)
    kp, kh_pose, kh_shape, kh_cam, kbbox = jax.random.split(key, 5)

    raw_params = init_params(kp)
    packed = jax.tree_util.tree_map(jnp.asarray, pack_params(raw_params))

    BN = 2
    hpose = jax.random.normal(kh_pose, (BN, N_HEAD, INPUT_DIM), jnp.float32)
    hshape = jax.random.normal(kh_shape, (BN, INPUT_DIM), jnp.float32)
    hcam = jax.random.normal(kh_cam, (BN, INPUT_DIM), jnp.float32)
    bbox_info = jax.random.normal(kbbox, (BN, BBOX_DIM), jnp.float32)

    fwd = jax.jit(regressor_forward)
    d_pose, d_shape, d_cam = fwd(packed, hpose, hshape, hcam, bbox_info)
    jax.block_until_ready((d_pose, d_shape, d_cam))

    assert d_pose.shape == (BN, N_HEAD * POSE_DIM)
    assert d_shape.shape == (BN, 10)
    assert d_cam.shape == (BN, 3)

    # sanity check against a pure-JAX reference of the original per-head math
    def ref(p, hpose, hshape, hcam, bbox_info):
        bbox_rep = jnp.broadcast_to(bbox_info[:, None, :], (BN, N_HEAD, BBOX_DIM))
        hp = jnp.concatenate([hpose, bbox_rep], -1)
        hs = jnp.concatenate([hshape, bbox_info], -1)
        hc = jnp.concatenate([hcam, bbox_info], -1)
        z = jnp.maximum(
            jnp.einsum('bhi,hio->bho', hp, p['Wp']) + p['bp'][:, 0], 0.0)
        dp = (jnp.einsum('bhi,hio->bho', z, p['Wdp'])
              + p['bdp'][:, 0]).reshape(BN, -1)
        s = jnp.maximum(hs @ p['Ws'] + p['bs'], 0.0)
        ds = s @ p['Wds'] + p['bds']
        c = jnp.maximum(hc @ p['Wc'] + p['bc'], 0.0)
        dc = c @ p['Wdc'] + p['bdc']
        return dp, ds, dc

    rp, rs, rc = ref(raw_params, hpose, hshape, hcam, bbox_info)
    assert jnp.allclose(d_pose, rp, atol=2e-5)
    assert jnp.allclose(d_shape, rs, atol=2e-5)
    assert jnp.allclose(d_cam, rc, atol=2e-5)

    print("KERNEL_OK")
</pallas_src>

<mosaic_0001>
module attributes {stable_mosaic.version = 11 : i64} {
  func.func @_regressor_kernel(%arg0: i32, %arg1: memref<2x768xf32, #tpu.memory_space<vmem>>, %arg2: memref<2x32xf32, #tpu.memory_space<vmem>>, %arg3: memref<2x32xf32, #tpu.memory_space<vmem>>, %arg4: memref<2x3xf32, #tpu.memory_space<vmem>>, %arg5: memref<768x768xf32, #tpu.memory_space<vmem>>, %arg6: memref<3x768xf32, #tpu.memory_space<vmem>>, %arg7: memref<1x768xf32, #tpu.memory_space<vmem>>, %arg8: memref<768x144xf32, #tpu.memory_space<vmem>>, %arg9: memref<1x144xf32, #tpu.memory_space<vmem>>, %arg10: memref<32x32xf32, #tpu.memory_space<vmem>>, %arg11: memref<3x32xf32, #tpu.memory_space<vmem>>, %arg12: memref<1x32xf32, #tpu.memory_space<vmem>>, %arg13: memref<32x10xf32, #tpu.memory_space<vmem>>, %arg14: memref<1x10xf32, #tpu.memory_space<vmem>>, %arg15: memref<32x32xf32, #tpu.memory_space<vmem>>, %arg16: memref<3x32xf32, #tpu.memory_space<vmem>>, %arg17: memref<1x32xf32, #tpu.memory_space<vmem>>, %arg18: memref<32x3xf32, #tpu.memory_space<vmem>>, %arg19: memref<1x3xf32, #tpu.memory_space<vmem>>, %arg20: memref<2x144xf32, #tpu.memory_space<vmem>>, %arg21: memref<2x10xf32, #tpu.memory_space<vmem>>, %arg22: memref<2x3xf32, #tpu.memory_space<vmem>>) attributes {dimension_semantics = [#tpu.dimension_semantics<arbitrary>], iteration_bounds = array<i64: 1>, scalar_prefetch = 0 : i64, scratch_operands = 0 : i64, tpu.core_type = #tpu.core_type<tc>, window_params = [{pipeline_mode = #tpu.pipeline_mode<synchronous>, transform_indices = @transform_0, window_bounds = array<i64: 2, 768>}, {pipeline_mode = #tpu.pipeline_mode<synchronous>, transform_indices = @transform_1, window_bounds = array<i64: 2, 32>}, {pipeline_mode = #tpu.pipeline_mode<synchronous>, transform_indices = @transform_2, window_bounds = array<i64: 2, 32>}, {pipeline_mode = #tpu.pipeline_mode<synchronous>, transform_indices = @transform_3, window_bounds = array<i64: 2, 3>}, {pipeline_mode = #tpu.pipeline_mode<synchronous>, transform_indices = @transform_4, window_bounds = array<i64: 768, 768>}, {pipeline_mode = #tpu.pipeline_mode<synchronous>, transform_indices = @transform_5, window_bounds = array<i64: 3, 768>}, {pipeline_mode = #tpu.pipeline_mode<synchronous>, transform_indices = @transform_6, window_bounds = array<i64: 1, 768>}, {pipeline_mode = #tpu.pipeline_mode<synchronous>, transform_indices = @transform_7, window_bounds = array<i64: 768, 144>}, {pipeline_mode = #tpu.pipeline_mode<synchronous>, transform_indices = @transform_8, window_bounds = array<i64: 1, 144>}, {pipeline_mode = #tpu.pipeline_mode<synchronous>, transform_indices = @transform_9, window_bounds = array<i64: 32, 32>}, {pipeline_mode = #tpu.pipeline_mode<synchronous>, transform_indices = @transform_10, window_bounds = array<i64: 3, 32>}, {pipeline_mode = #tpu.pipeline_mode<synchronous>, transform_indices = @transform_11, window_bounds = array<i64: 1, 32>}, {pipeline_mode = #tpu.pipeline_mode<synchronous>, transform_indices = @transform_12, window_bounds = array<i64: 32, 10>}, {pipeline_mode = #tpu.pipeline_mode<synchronous>, transform_indices = @transform_13, window_bounds = array<i64: 1, 10>}, {pipeline_mode = #tpu.pipeline_mode<synchronous>, transform_indices = @transform_14, window_bounds = array<i64: 32, 32>}, {pipeline_mode = #tpu.pipeline_mode<synchronous>, transform_indices = @transform_15, window_bounds = array<i64: 3, 32>}, {pipeline_mode = #tpu.pipeline_mode<synchronous>, transform_indices = @transform_16, window_bounds = array<i64: 1, 32>}, {pipeline_mode = #tpu.pipeline_mode<synchronous>, transform_indices = @transform_17, window_bounds = array<i64: 32, 3>}, {pipeline_mode = #tpu.pipeline_mode<synchronous>, transform_indices = @transform_18, window_bounds = array<i64: 1, 3>}, {pipeline_mode = #tpu.pipeline_mode<synchronous>, transform_indices = @transform_19, window_bounds = array<i64: 2, 144>}, {pipeline_mode = #tpu.pipeline_mode<synchronous>, transform_indices = @transform_20, window_bounds = array<i64: 2, 10>}, {pipeline_mode = #tpu.pipeline_mode<synchronous>, transform_indices = @transform_21, window_bounds = array<i64: 2, 3>}]} {
    %c0 = arith.constant 0 : index
    %c0_0 = arith.constant 0 : index
    %0 = vector.load %arg4[%c0, %c0_0] : memref<2x3xf32, #tpu.memory_space<vmem>>, vector<2x3xf32>
    %c0_1 = arith.constant 0 : index
    %c0_2 = arith.constant 0 : index
    %1 = vector.load %arg1[%c0_1, %c0_2] : memref<2x768xf32, #tpu.memory_space<vmem>>, vector<2x768xf32>
    %c0_3 = arith.constant 0 : index
    %c0_4 = arith.constant 0 : index
    %2 = vector.load %arg5[%c0_3, %c0_4] : memref<768x768xf32, #tpu.memory_space<vmem>>, vector<768x768xf32>
    %cst = arith.constant dense<0.000000e+00> : vector<2x768xf32>
    %3 = tpu.matmul %1, %2, %cst {dimension_numbers = #tpu.dot_dimension_numbers<[1], [0], [0], [1], [0, 0, 1, 1], [], []>} : vector<2x768xf32>, vector<768x768xf32>, vector<2x768xf32> -> vector<2x768xf32>
    %c0_5 = arith.constant 0 : index
    %c0_6 = arith.constant 0 : index
    %4 = vector.load %arg6[%c0_5, %c0_6] : memref<3x768xf32, #tpu.memory_space<vmem>>, vector<3x768xf32>
    %cst_7 = arith.constant dense<0.000000e+00> : vector<2x768xf32>
    %5 = tpu.matmul %0, %4, %cst_7 {dimension_numbers = #tpu.dot_dimension_numbers<[1], [0], [0], [1], [0, 0, 1, 1], [], []>} : vector<2x3xf32>, vector<3x768xf32>, vector<2x768xf32> -> vector<2x768xf32>
    %6 = arith.addf %3, %5 : vector<2x768xf32>
    %c0_8 = arith.constant 0 : index
    %c0_9 = arith.constant 0 : index
    %7 = vector.load %arg7[%c0_8, %c0_9] : memref<1x768xf32, #tpu.memory_space<vmem>>, vector<1x768xf32>
    %8 = vector.broadcast %7 : vector<1x768xf32> to vector<2x768xf32>
    %9 = arith.addf %6, %8 : vector<2x768xf32>
    %cst_10 = arith.constant 0.000000e+00 : f32
    %10 = vector.broadcast %cst_10 : f32 to vector<2x768xf32>
    %11 = arith.maximumf %9, %10 : vector<2x768xf32>
    %c0_11 = arith.constant 0 : index
    %c0_12 = arith.constant 0 : index
    %12 = vector.load %arg8[%c0_11, %c0_12] : memref<768x144xf32, #tpu.memory_space<vmem>>, vector<768x144xf32>
    %cst_13 = arith.constant dense<0.000000e+00> : vector<2x144xf32>
    %13 = tpu.matmul %11, %12, %cst_13 {dimension_numbers = #tpu.dot_dimension_numbers<[1], [0], [0], [1], [0, 0, 1, 1], [], []>} : vector<2x768xf32>, vector<768x144xf32>, vector<2x144xf32> -> vector<2x144xf32>
    %c0_14 = arith.constant 0 : index
    %c0_15 = arith.constant 0 : index
    %14 = vector.load %arg9[%c0_14, %c0_15] : memref<1x144xf32, #tpu.memory_space<vmem>>, vector<1x144xf32>
    %15 = vector.broadcast %14 : vector<1x144xf32> to vector<2x144xf32>
    %16 = arith.addf %13, %15 : vector<2x144xf32>
    %c0_16 = arith.constant 0 : index
    %c0_17 = arith.constant 0 : index
    %17 = vector.load %arg20[%c0_16, %c0_17] : memref<2x144xf32, #tpu.memory_space<vmem>>, vector<2x144xf32>
    tpu.vector_store %arg20[%c0_16, %c0_17], %16 {strides = array<i32>} : memref<2x144xf32, #tpu.memory_space<vmem>>, vector<2x144xf32>,
    %c0_18 = arith.constant 0 : index
    %c0_19 = arith.constant 0 : index
    %18 = vector.load %arg2[%c0_18, %c0_19] : memref<2x32xf32, #tpu.memory_space<vmem>>, vector<2x32xf32>
    %c0_20 = arith.constant 0 : index
    %c0_21 = arith.constant 0 : index
    %19 = vector.load %arg10[%c0_20, %c0_21] : memref<32x32xf32, #tpu.memory_space<vmem>>, vector<32x32xf32>
    %cst_22 = arith.constant dense<0.000000e+00> : vector<2x32xf32>
    %20 = tpu.matmul %18, %19, %cst_22 {dimension_numbers = #tpu.dot_dimension_numbers<[1], [0], [0], [1], [0, 0, 1, 1], [], []>} : vector<2x32xf32>, vector<32x32xf32>, vector<2x32xf32> -> vector<2x32xf32>
    %c0_23 = arith.constant 0 : index
    %c0_24 = arith.constant 0 : index
    %21 = vector.load %arg11[%c0_23, %c0_24] : memref<3x32xf32, #tpu.memory_space<vmem>>, vector<3x32xf32>
    %cst_25 = arith.constant dense<0.000000e+00> : vector<2x32xf32>
    %22 = tpu.matmul %0, %21, %cst_25 {dimension_numbers = #tpu.dot_dimension_numbers<[1], [0], [0], [1], [0, 0, 1, 1], [], []>} : vector<2x3xf32>, vector<3x32xf32>, vector<2x32xf32> -> vector<2x32xf32>
    %23 = arith.addf %20, %22 : vector<2x32xf32>
    %c0_26 = arith.constant 0 : index
    %c0_27 = arith.constant 0 : index
    %24 = vector.load %arg12[%c0_26, %c0_27] : memref<1x32xf32, #tpu.memory_space<vmem>>, vector<1x32xf32>
    %25 = vector.broadcast %24 : vector<1x32xf32> to vector<2x32xf32>
    %26 = arith.addf %23, %25 : vector<2x32xf32>
    %cst_28 = arith.constant 0.000000e+00 : f32
    %27 = vector.broadcast %cst_28 : f32 to vector<2x32xf32>
    %28 = arith.maximumf %26, %27 : vector<2x32xf32>
    %c0_29 = arith.constant 0 : index
    %c0_30 = arith.constant 0 : index
    %29 = vector.load %arg13[%c0_29, %c0_30] : memref<32x10xf32, #tpu.memory_space<vmem>>, vector<32x10xf32>
    %cst_31 = arith.constant dense<0.000000e+00> : vector<2x10xf32>
    %30 = tpu.matmul %28, %29, %cst_31 {dimension_numbers = #tpu.dot_dimension_numbers<[1], [0], [0], [1], [0, 0, 1, 1], [], []>} : vector<2x32xf32>, vector<32x10xf32>, vector<2x10xf32> -> vector<2x10xf32>
    %c0_32 = arith.constant 0 : index
    %c0_33 = arith.constant 0 : index
    %31 = vector.load %arg14[%c0_32, %c0_33] : memref<1x10xf32, #tpu.memory_space<vmem>>, vector<1x10xf32>
    %32 = vector.broadcast %31 : vector<1x10xf32> to vector<2x10xf32>
    %33 = arith.addf %30, %32 : vector<2x10xf32>
    %c0_34 = arith.constant 0 : index
    %c0_35 = arith.constant 0 : index
    %34 = vector.load %arg21[%c0_34, %c0_35] : memref<2x10xf32, #tpu.memory_space<vmem>>, vector<2x10xf32>
    tpu.vector_store %arg21[%c0_34, %c0_35], %33 {strides = array<i32>} : memref<2x10xf32, #tpu.memory_space<vmem>>, vector<2x10xf32>,
    %c0_36 = arith.constant 0 : index
    %c0_37 = arith.constant 0 : index
    %35 = vector.load %arg3[%c0_36, %c0_37] : memref<2x32xf32, #tpu.memory_space<vmem>>, vector<2x32xf32>
    %c0_38 = arith.constant 0 : index
    %c0_39 = arith.constant 0 : index
    %36 = vector.load %arg15[%c0_38, %c0_39] : memref<32x32xf32, #tpu.memory_space<vmem>>, vector<32x32xf32>
    %cst_40 = arith.constant dense<0.000000e+00> : vector<2x32xf32>
    %37 = tpu.matmul %35, %36, %cst_40 {dimension_numbers = #tpu.dot_dimension_numbers<[1], [0], [0], [1], [0, 0, 1, 1], [], []>} : vector<2x32xf32>, vector<32x32xf32>, vector<2x32xf32> -> vector<2x32xf32>
    %c0_41 = arith.constant 0 : index
    %c0_42 = arith.constant 0 : index
    %38 = vector.load %arg16[%c0_41, %c0_42] : memref<3x32xf32, #tpu.memory_space<vmem>>, vector<3x32xf32>
    %cst_43 = arith.constant dense<0.000000e+00> : vector<2x32xf32>
    %39 = tpu.matmul %0, %38, %cst_43 {dimension_numbers = #tpu.dot_dimension_numbers<[1], [0], [0], [1], [0, 0, 1, 1], [], []>} : vector<2x3xf32>, vector<3x32xf32>, vector<2x32xf32> -> vector<2x32xf32>
    %40 = arith.addf %37, %39 : vector<2x32xf32>
    %c0_44 = arith.constant 0 : index
    %c0_45 = arith.constant 0 : index
    %41 = vector.load %arg17[%c0_44, %c0_45] : memref<1x32xf32, #tpu.memory_space<vmem>>, vector<1x32xf32>
    %42 = vector.broadcast %41 : vector<1x32xf32> to vector<2x32xf32>
    %43 = arith.addf %40, %42 : vector<2x32xf32>
    %cst_46 = arith.constant 0.000000e+00 : f32
    %44 = vector.broadcast %cst_46 : f32 to vector<2x32xf32>
    %45 = arith.maximumf %43, %44 : vector<2x32xf32>
    %c0_47 = arith.constant 0 : index
    %c0_48 = arith.constant 0 : index
    %46 = vector.load %arg18[%c0_47, %c0_48] : memref<32x3xf32, #tpu.memory_space<vmem>>, vector<32x3xf32>
    %cst_49 = arith.constant dense<0.000000e+00> : vector<2x3xf32>
    %47 = tpu.matmul %45, %46, %cst_49 {dimension_numbers = #tpu.dot_dimension_numbers<[1], [0], [0], [1], [0, 0, 1, 1], [], []>} : vector<2x32xf32>, vector<32x3xf32>, vector<2x3xf32> -> vector<2x3xf32>
    %c0_50 = arith.constant 0 : index
    %c0_51 = arith.constant 0 : index
    %48 = vector.load %arg19[%c0_50, %c0_51] : memref<1x3xf32, #tpu.memory_space<vmem>>, vector<1x3xf32>
    %49 = vector.broadcast %48 : vector<1x3xf32> to vector<2x3xf32>
    %50 = arith.addf %47, %49 : vector<2x3xf32>
    %c0_52 = arith.constant 0 : index
    %c0_53 = arith.constant 0 : index
    %51 = vector.load %arg22[%c0_52, %c0_53] : memref<2x3xf32, #tpu.memory_space<vmem>>, vector<2x3xf32>
    tpu.vector_store %arg22[%c0_52, %c0_53], %50 {strides = array<i32>} : memref<2x3xf32, #tpu.memory_space<vmem>>, vector<2x3xf32>,
    return
  }
  func.func @transform_0(%arg0: i32) -> (i32, i32) {
    %c0_i32 = arith.constant 0 : i32
    %c0_i32_0 = arith.constant 0 : i32
    %c0_i32_1 = arith.constant 0 : i32
    return %c0_i32, %c0_i32_0 : i32, i32
  }
  func.func @transform_1(%arg0: i32) -> (i32, i32) {
    %c0_i32 = arith.constant 0 : i32
    %c0_i32_0 = arith.constant 0 : i32
    %c0_i32_1 = arith.constant 0 : i32
    return %c0_i32, %c0_i32_0 : i32, i32
  }
  func.func @transform_2(%arg0: i32) -> (i32, i32) {
    %c0_i32 = arith.constant 0 : i32
    %c0_i32_0 = arith.constant 0 : i32
    %c0_i32_1 = arith.constant 0 : i32
    return %c0_i32, %c0_i32_0 : i32, i32
  }
  func.func @transform_3(%arg0: i32) -> (i32, i32) {
    %c0_i32 = arith.constant 0 : i32
    %c0_i32_0 = arith.constant 0 : i32
    %c0_i32_1 = arith.constant 0 : i32
    return %c0_i32, %c0_i32_0 : i32, i32
  }
  func.func @transform_4(%arg0: i32) -> (i32, i32) {
    %c0_i32 = arith.constant 0 : i32
    %c0_i32_0 = arith.constant 0 : i32
    %c0_i32_1 = arith.constant 0 : i32
    return %c0_i32, %c0_i32_0 : i32, i32
  }
  func.func @transform_5(%arg0: i32) -> (i32, i32) {
    %c0_i32 = arith.constant 0 : i32
    %c0_i32_0 = arith.constant 0 : i32
    %c0_i32_1 = arith.constant 0 : i32
    return %c0_i32, %c0_i32_0 : i32, i32
  }
  func.func @transform_6(%arg0: i32) -> (i32, i32) {
    %c0_i32 = arith.constant 0 : i32
    %c0_i32_0 = arith.constant 0 : i32
    %c0_i32_1 = arith.constant 0 : i32
    return %c0_i32, %c0_i32_0 : i32, i32
  }
  func.func @transform_7(%arg0: i32) -> (i32, i32) {
    %c0_i32 = arith.constant 0 : i32
    %c0_i32_0 = arith.constant 0 : i32
    %c0_i32_1 = arith.constant 0 : i32
    return %c0_i32, %c0_i32_0 : i32, i32
  }
  func.func @transform_8(%arg0: i32) -> (i32, i32) {
    %c0_i32 = arith.constant 0 : i32
    %c0_i32_0 = arith.constant 0 : i32
    %c0_i32_1 = arith.constant 0 : i32
    return %c0_i32, %c0_i32_0 : i32, i32
  }
  func.func @transform_9(%arg0: i32) -> (i32, i32) {
    %c0_i32 = arith.constant 0 : i32
    %c0_i32_0 = arith.constant 0 : i32
    %c0_i32_1 = arith.constant 0 : i32
    return %c0_i32, %c0_i32_0 : i32, i32
  }
  func.func @transform_10(%arg0: i32) -> (i32, i32) {
    %c0_i32 = arith.constant 0 : i32
    %c0_i32_0 = arith.constant 0 : i32
    %c0_i32_1 = arith.constant 0 : i32
    return %c0_i32, %c0_i32_0 : i32, i32
  }
  func.func @transform_11(%arg0: i32) -> (i32, i32) {
    %c0_i32 = arith.constant 0 : i32
    %c0_i32_0 = arith.constant 0 : i32
    %c0_i32_1 = arith.constant 0 : i32
    return %c0_i32, %c0_i32_0 : i32, i32
  }
  func.func @transform_12(%arg0: i32) -> (i32, i32) {
    %c0_i32 = arith.constant 0 : i32
    %c0_i32_0 = arith.constant 0 : i32
    %c0_i32_1 = arith.constant 0 : i32
    return %c0_i32, %c0_i32_0 : i32, i32
  }
  func.func @transform_13(%arg0: i32) -> (i32, i32) {
    %c0_i32 = arith.constant 0 : i32
    %c0_i32_0 = arith.constant 0 : i32
    %c0_i32_1 = arith.constant 0 : i32
    return %c0_i32, %c0_i32_0 : i32, i32
  }
  func.func @transform_14(%arg0: i32) -> (i32, i32) {
    %c0_i32 = arith.constant 0 : i32
    %c0_i32_0 = arith.constant 0 : i32
    %c0_i32_1 = arith.constant 0 : i32
    return %c0_i32, %c0_i32_0 : i32, i32
  }
  func.func @transform_15(%arg0: i32) -> (i32, i32) {
    %c0_i32 = arith.constant 0 : i32
    %c0_i32_0 = arith.constant 0 : i32
    %c0_i32_1 = arith.constant 0 : i32
    return %c0_i32, %c0_i32_0 : i32, i32
  }
  func.func @transform_16(%arg0: i32) -> (i32, i32) {
    %c0_i32 = arith.constant 0 : i32
    %c0_i32_0 = arith.constant 0 : i32
    %c0_i32_1 = arith.constant 0 : i32
    return %c0_i32, %c0_i32_0 : i32, i32
  }
  func.func @transform_17(%arg0: i32) -> (i32, i32) {
    %c0_i32 = arith.constant 0 : i32
    %c0_i32_0 = arith.constant 0 : i32
    %c0_i32_1 = arith.constant 0 : i32
    return %c0_i32, %c0_i32_0 : i32, i32
  }
  func.func @transform_18(%arg0: i32) -> (i32, i32) {
    %c0_i32 = arith.constant 0 : i32
    %c0_i32_0 = arith.constant 0 : i32
    %c0_i32_1 = arith.constant 0 : i32
    return %c0_i32, %c0_i32_0 : i32, i32
  }
  func.func @transform_19(%arg0: i32) -> (i32, i32) {
    %c0_i32 = arith.constant 0 : i32
    %c0_i32_0 = arith.constant 0 : i32
    %c0_i32_1 = arith.constant 0 : i32
    return %c0_i32, %c0_i32_0 : i32, i32
  }
  func.func @transform_20(%arg0: i32) -> (i32, i32) {
    %c0_i32 = arith.constant 0 : i32
    %c0_i32_0 = arith.constant 0 : i32
    %c0_i32_1 = arith.constant 0 : i32
    return %c0_i32, %c0_i32_0 : i32, i32
  }
  func.func @transform_21(%arg0: i32) -> (i32, i32) {
    %c0_i32 = arith.constant 0 : i32
    %c0_i32_0 = arith.constant 0 : i32
    %c0_i32_1 = arith.constant 0 : i32
    return %c0_i32, %c0_i32_0 : i32, i32
  }
}

</mosaic_0001>

<llo_original>
// kernel: regressor_forward.1
$region0: #{regressor_forward.1}
  #allocation0 [shape = 'u32[]', space=smem, size = 0x4, offset = 0x4, fixed_abs, tag = 'smem constant byte address 0x4 - core index']
  #allocation1 [shape = 'u32[144,128]{1,0:T(1,128)}', space=vmem, size = 0x12000, scoped, tag = 'internal scratch']
  %s0 = inlined_call_operand.vmem [shape: f32[2,768], index: 0, kind: input, shape index: {}]
  %s1 = inlined_call_operand.hbm [shape: f32[2,32], index: 1, kind: input, shape index: {}]
  %s2 = inlined_call_operand.hbm [shape: f32[2,32], index: 2, kind: input, shape index: {}]
  %s3 = inlined_call_operand.hbm [shape: f32[2,3], index: 3, kind: input, shape index: {}]
  %s4 = inlined_call_operand.hbm [shape: f32[768,768], index: 4, kind: input, shape index: {}]
  %s5 = inlined_call_operand.hbm [shape: f32[3,768], index: 5, kind: input, shape index: {}]
  %s6 = inlined_call_operand.hbm [shape: f32[1,768], index: 6, kind: input, shape index: {}]
  %s7 = inlined_call_operand.vmem [shape: f32[768,144], index: 7, kind: input, shape index: {}]
  %s8 = inlined_call_operand.hbm [shape: f32[1,144], index: 8, kind: input, shape index: {}]
  %s9 = inlined_call_operand.hbm [shape: f32[32,32], index: 9, kind: input, shape index: {}]
  %s10 = inlined_call_operand.hbm [shape: f32[3,32], index: 10, kind: input, shape index: {}]
  %s11 = inlined_call_operand.hbm [shape: f32[1,32], index: 11, kind: input, shape index: {}]
  %s12 = inlined_call_operand.vmem [shape: f32[32,10], index: 12, kind: input, shape index: {}]
  %s13 = inlined_call_operand.hbm [shape: f32[1,10], index: 13, kind: input, shape index: {}]
  %s14 = inlined_call_operand.hbm [shape: f32[32,32], index: 14, kind: input, shape index: {}]
  %s15 = inlined_call_operand.hbm [shape: f32[3,32], index: 15, kind: input, shape index: {}]
  %s16 = inlined_call_operand.hbm [shape: f32[1,32], index: 16, kind: input, shape index: {}]
  %s17 = inlined_call_operand.vmem [shape: f32[32,3], index: 17, kind: input, shape index: {}]
  %s18 = inlined_call_operand.hbm [shape: f32[1,3], index: 18, kind: input, shape index: {}]
  %s19 = inlined_call_operand.hbm [shape: f32[2,144], index: 19, kind: output, shape index: {0}]
  %s20 = inlined_call_operand.hbm [shape: f32[2,10], index: 20, kind: output, shape index: {1}]
  %s21 = inlined_call_operand.hbm [shape: f32[2,3], index: 21, kind: output, shape index: {2}]
  %22 = xla_tuple %s19, %s20, %s21
  %s23 = sld [smem:[#allocation0]]
  $region162: #{regressor_forward.1} parent=0
    _
  %s25 = ssub.s32 1, %s23
  %s26 = scalar_select 0, %s25, %s23
  $region1: #{regressor_forward.1} parent=0
    #allocation2 [shape = 'u8[1024]{0}', space=vmem, size = 0x400, scoped, tag = 'input window, operand 1, single buffered']
    #allocation3 [shape = 's32[1]{0}', space=sflag, size = 0x4, scoped, tag = 'scoped memory for regressor_forward.1']
    #allocation4 [shape = 's32[1]{0}', space=sflag, size = 0x4, scoped, tag = 'scoped memory for regressor_forward.1']
    #allocation5 [shape = 'u8[1024]{0}', space=vmem, size = 0x400, scoped, tag = 'input window, operand 2, single buffered']
    #allocation6 [shape = 's32[1]{0}', space=sflag, size = 0x4, scoped, tag = 'scoped memory for regressor_forward.1']
    #allocation7 [shape = 'u8[1024]{0}', space=vmem, size = 0x400, scoped, tag = 'input window, operand 3, single buffered']
    #allocation8 [shape = 'u8[2359296]{0}', space=vmem, size = 0x240000, scoped, tag = 'input window, operand 4, single buffered']
    #allocation9 [shape = 's32[1]{0}', space=sflag, size = 0x4, scoped, tag = 'scoped memory for regressor_forward.1']
    #allocation10 [shape = 'u8[12288]{0}', space=vmem, size = 0x3000, scoped, tag = 'input window, operand 5, single buffered']
    #allocation11 [shape = 'u8[3072]{0}', space=vmem, size = 0xc00, scoped, tag = 'input window, operand 6, single buffered']
    #allocation12 [shape = 's32[1]{0}', space=sflag, size = 0x4, scoped, tag = 'scoped memory for regressor_forward.1']
    #allocation13 [shape = 'u8[1024]{0}', space=vmem, size = 0x400, scoped, tag = 'input window, operand 8, single buffered']
    #allocation14 [shape = 'u8[16384]{0}', space=vmem, size = 0x4000, scoped, tag = 'input window, operand 9, single buffered']
    #allocation15 [shape = 's32[1]{0}', space=sflag, size = 0x4, scoped, tag = 'scoped memory for regressor_forward.1']
    #allocation16 [shape = 'u8[2048]{0}', space=vmem, size = 0x800, scoped, tag = 'input window, operand 10, single buffered']
    #allocation17 [shape = 'u8[512]{0}', space=vmem, size = 0x400, scoped, tag = 'input window, operand 11, single buffered']
    #allocation18 [shape = 's32[1]{0}', space=sflag, size = 0x4, scoped, tag = 'scoped memory for regressor_forward.1']
    #allocation19 [shape = 'u8[512]{0}', space=vmem, size = 0x400, scoped, tag = 'input window, operand 13, single buffered']
    #allocation20 [shape = 'u8[16384]{0}', space=vmem, size = 0x4000, scoped, tag = 'input window, operand 14, single buffered']
    #allocation21 [shape = 's32[1]{0}', space=sflag, size = 0x4, scoped, tag = 'scoped memory for regressor_forward.1']
    #allocation22 [shape = 'u8[2048]{0}', space=vmem, size = 0x800, scoped, tag = 'input window, operand 15, single buffered']
    #allocation23 [shape = 'u8[512]{0}', space=vmem, size = 0x400, scoped, tag = 'input window, operand 16, single buffered']
    #allocation24 [shape = 's32[1]{0}', space=sflag, size = 0x4, scoped, tag = 'scoped memory for regressor_forward.1']
    #allocation25 [shape = 'u8[512]{0}', space=vmem, size = 0x400, scoped, tag = 'input window, operand 18, single buffered']
    #allocation26 [shape = 'u8[2048]{0}', space=vmem, size = 0x800, scoped, tag = 'output window, operand 0, single buffered']
    #allocation27 [shape = 'u8[1024]{0}', space=vmem, size = 0x400, scoped, tag = 'output window, operand 1, single buffered']
    #allocation28 [shape = 's32[1]{0}', space=sflag, size = 0x4, scoped, tag = 'scoped memory for regressor_forward.1']
    #allocation29 [shape = 'u8[1024]{0}', space=vmem, size = 0x400, scoped, tag = 'output window, operand 2, single buffered']
    %27 = vsyncpa [#allocation3], 0
    %28 = vsyncpa [#allocation6], 0
    %29 = vsyncpa [#allocation9], 0
    %30 = vsyncpa [#allocation12], 0
    %31 = vsyncpa [#allocation15], 0
    %32 = vsyncpa [#allocation18], 0
    %33 = vsyncpa [#allocation21], 0
    %34 = vsyncpa [#allocation24], 0
    %35 = vsyncpa [#allocation4], 0
    %36 = vsyncpa [#allocation28], 0
    // Predicated region
    $region2: #{regressor_forward.1} parent=1 // pred_check
      _
    $region3: #{regressor_forward.1} parent=1 // pred_check_branch
      %38 = sbr.rel (0) target = $region5
    $region4: #{regressor_forward.1} parent=1 // pred_region
      _
    $region5: #{regressor_forward.1} parent=1 // pred_fallthru
      _
    // Predicated region
    $region6: #{regressor_forward.1} parent=1 // pred_check
      _
    $region7: #{regressor_forward.1} parent=1 // pred_check_branch
      %40 = sbr.rel (0) target = $region9
    $region8: #{regressor_forward.1} parent=1 // pred_region
      %s42 = ssub.s32 32, 32
      %43 = vsyncadd [#allocation3], %s42
      %s45 = sshll.u32 [#allocation2], 4
      %s46 = int_to_ptr.vmem [resolvable:$true] %s45
      %48 = dma.hbm_to_vmem [thread:$0]  %s1, 32, %s46, [#allocation3]
    $region9: #{regressor_forward.1} parent=1 // pred_fallthru
      _
    // Predicated region
    $region10: #{regressor_forward.1} parent=1 // pred_check
      _
    $region11: #{regressor_forward.1} parent=1 // pred_check_branch
      %50 = sbr.rel (0) target = $region13
    $region12: #{regressor_forward.1} parent=1 // pred_region
      %s52 = ssub.s32 32, 32
      %53 = vsyncadd [#allocation6], %s52
      %s55 = sshll.u32 [#allocation5], 4
      %s56 = int_to_ptr.vmem [resolvable:$true] %s55
      %58 = dma.hbm_to_vmem [thread:$0]  %s2, 32, %s56, [#allocation6]
    $region13: #{regressor_forward.1} parent=1 // pred_fallthru
      _
    // Predicated region
    $region14: #{regressor_forward.1} parent=1 // pred_check
      _
    $region15: #{regressor_forward.1} parent=1 // pred_check_branch
      %60 = sbr.rel (0) target = $region17
    $region16: #{regressor_forward.1} parent=1 // pred_region
      %s62 = ssub.s32 32, 32
      %63 = vsyncadd [#allocation6], %s62
      %s65 = sshll.u32 [#allocation7], 4
      %s66 = int_to_ptr.vmem [resolvable:$true] %s65
      %68 = dma.hbm_to_vmem [thread:$0]  %s3, 32, %s66, [#allocation6]
    $region17: #{regressor_forward.1} parent=1 // pred_fallthru
      _
    // Predicated region
    $region18: #{regressor_forward.1} parent=1 // pred_check
      _
    $region19: #{regressor_forward.1} parent=1 // pred_check_branch
      %70 = sbr.rel (0) target = $region21
    $region20: #{regressor_forward.1} parent=1 // pred_region
      %s72 = ssub.s32 73728, 73728
      %73 = vsyncadd [#allocation9], %s72
      %s74 = sshll.u32 [#allocation8], 4
      %s75 = int_to_ptr.vmem [resolvable:$true] %s74
      %80 = dma.hbm_to_vmem [thread:$0]  %s4, 73728, %s75, [#allocation9], 768, 768, 48
    $region21: #{regressor_forward.1} parent=1 // pred_fallthru
      _
    // Predicated region
    $region22: #{regressor_forward.1} parent=1 // pred_check
      _
    $region23: #{regressor_forward.1} parent=1 // pred_check_branch
      %82 = sbr.rel (0) target = $region25
    $region24: #{regressor_forward.1} parent=1 // pred_region
      %s84 = ssub.s32 384, 384
      %85 = vsyncadd [#allocation9], %s84
      %s87 = sshll.u32 [#allocation10], 4
      %s88 = int_to_ptr.vmem [resolvable:$true] %s87
      %90 = dma.hbm_to_vmem [thread:$0]  %s5, 384, %s88, [#allocation9]
    $region25: #{regressor_forward.1} parent=1 // pred_fallthru
      _
    // Predicated region
    $region26: #{regressor_forward.1} parent=1 // pred_check
      _
    $region27: #{regressor_forward.1} parent=1 // pred_check_branch
      %92 = sbr.rel (0) target = $region29
    $region28: #{regressor_forward.1} parent=1 // pred_region
      %s94 = ssub.s32 96, 96
      %95 = vsyncadd [#allocation12], %s94
      %s97 = sshll.u32 [#allocation11], 4
      %s98 = int_to_ptr.vmem [resolvable:$true] %s97
      %100 = dma.hbm_to_vmem [thread:$0]  %s6, 96, %s98, [#allocation12]
    $region29: #{regressor_forward.1} parent=1 // pred_fallthru
      _
    // Predicated region
    $region30: #{regressor_forward.1} parent=1 // pred_check
      _
    $region31: #{regressor_forward.1} parent=1 // pred_check_branch
      %102 = sbr.rel (0) target = $region33
    $region32: #{regressor_forward.1} parent=1 // pred_region
      _
    $region33: #{regressor_forward.1} parent=1 // pred_fallthru
      _
    // Predicated region
    $region34: #{regressor_forward.1} parent=1 // pred_check
      _
    $region35: #{regressor_forward.1} parent=1 // pred_check_branch
      %104 = sbr.rel (0) target = $region37
    $region36: #{regressor_forward.1} parent=1 // pred_region
      %s106 = ssub.s32 32, 32
      %107 = vsyncadd [#allocation12], %s106
      %s109 = sshll.u32 [#allocation13], 4
      %s110 = int_to_ptr.vmem [resolvable:$true] %s109
      %112 = dma.hbm_to_vmem [thread:$0]  %s8, 32, %s110, [#allocation12]
    $region37: #{regressor_forward.1} parent=1 // pred_fallthru
      _
    // Predicated region
    $region38: #{regressor_forward.1} parent=1 // pred_check
      _
    $region39: #{regressor_forward.1} parent=1 // pred_check_branch
      %114 = sbr.rel (0) target = $region41
    $region40: #{regressor_forward.1} parent=1 // pred_region
      %s116 = ssub.s32 512, 512
      %117 = vsyncadd [#allocation15], %s116
      %s118 = sshll.u32 [#allocation14], 4
      %s119 = int_to_ptr.vmem [resolvable:$true] %s118
      %124 = dma.hbm_to_vmem [thread:$0]  %s9, 512, %s119, [#allocation15], 128, 128, 8
    $region41: #{regressor_forward.1} parent=1 // pred_fallthru
      _
    // Predicated region
    $region42: #{regressor_forward.1} parent=1 // pred_check
      _
    $region43: #{regressor_forward.1} parent=1 // pred_check_branch
      %126 = sbr.rel (0) target = $region45
    $region44: #{regressor_forward.1} parent=1 // pred_region
      %s128 = ssub.s32 64, 64
      %129 = vsyncadd [#allocation15], %s128
      %s131 = sshll.u32 [#allocation16], 4
      %s132 = int_to_ptr.vmem [resolvable:$true] %s131
      %134 = dma.hbm_to_vmem [thread:$0]  %s10, 64, %s132, [#allocation15]
    $region45: #{regressor_forward.1} parent=1 // pred_fallthru
      _
    // Predicated region
    $region46: #{regressor_forward.1} parent=1 // pred_check
      _
    $region47: #{regressor_forward.1} parent=1 // pred_check_branch
      %136 = sbr.rel (0) target = $region49
    $region48: #{regressor_forward.1} parent=1 // pred_region
      %s138 = ssub.s32 16, 16
      %139 = vsyncadd [#allocation18], %s138
      %s141 = sshll.u32 [#allocation17], 4
      %s142 = int_to_ptr.vmem [resolvable:$true] %s141
      %144 = dma.hbm_to_vmem [thread:$0]  %s11, 16, %s142, [#allocation18]
    $region49: #{regressor_forward.1} parent=1 // pred_fallthru
      _
    // Predicated region
    $region50: #{regressor_forward.1} parent=1 // pred_check
      _
    $region51: #{regressor_forward.1} parent=1 // pred_check_branch
      %146 = sbr.rel (0) target = $region53
    $region52: #{regressor_forward.1} parent=1 // pred_region
      _
    $region53: #{regressor_forward.1} parent=1 // pred_fallthru
      _
    // Predicated region
    $region54: #{regressor_forward.1} parent=1 // pred_check
      _
    $region55: #{regressor_forward.1} parent=1 // pred_check_branch
      %148 = sbr.rel (0) target = $region57
    $region56: #{regressor_forward.1} parent=1 // pred_region
      %s150 = ssub.s32 16, 16
      %151 = vsyncadd [#allocation18], %s150
      %s153 = sshll.u32 [#allocation19], 4
      %s154 = int_to_ptr.vmem [resolvable:$true] %s153
      %156 = dma.hbm_to_vmem [thread:$0]  %s13, 16, %s154, [#allocation18]
    $region57: #{regressor_forward.1} parent=1 // pred_fallthru
      _
    // Predicated region
    $region58: #{regressor_forward.1} parent=1 // pred_check
      _
    $region59: #{regressor_forward.1} parent=1 // pred_check_branch
      %158 = sbr.rel (0) target = $region61
    $region60: #{regressor_forward.1} parent=1 // pred_region
      %s160 = ssub.s32 512, 512
      %161 = vsyncadd [#allocation21], %s160
      %s162 = sshll.u32 [#allocation20], 4
      %s163 = int_to_ptr.vmem [resolvable:$true] %s162
      %168 = dma.hbm_to_vmem [thread:$0]  %s14, 512, %s163, [#allocation21], 128, 128, 8
    $region61: #{regressor_forward.1} parent=1 // pred_fallthru
      _
    // Predicated region
    $region62: #{regressor_forward.1} parent=1 // pred_check
      _
    $region63: #{regressor_forward.1} parent=1 // pred_check_branch
      %170 = sbr.rel (0) target = $region65
    $region64: #{regressor_forward.1} parent=1 // pred_region
      %s172 = ssub.s32 64, 64
      %173 = vsyncadd [#allocation21], %s172
      %s175 = sshll.u32 [#allocation22], 4
      %s176 = int_to_ptr.vmem [resolvable:$true] %s175
      %178 = dma.hbm_to_vmem [thread:$0]  %s15, 64, %s176, [#allocation21]
    $region65: #{regressor_forward.1} parent=1 // pred_fallthru
      _
    // Predicated region
    $region66: #{regressor_forward.1} parent=1 // pred_check
      _
    $region67: #{regressor_forward.1} parent=1 // pred_check_branch
      %180 = sbr.rel (0) target = $region69
    $region68: #{regressor_forward.1} parent=1 // pred_region
      %s182 = ssub.s32 16, 16
      %183 = vsyncadd [#allocation24], %s182
      %s185 = sshll.u32 [#allocation23], 4
      %s186 = int_to_ptr.vmem [resolvable:$true] %s185
      %188 = dma.hbm_to_vmem [thread:$0]  %s16, 16, %s186, [#allocation24]
    $region69: #{regressor_forward.1} parent=1 // pred_fallthru
      _
    // Predicated region
    $region70: #{regressor_forward.1} parent=1 // pred_check
      _
    $region71: #{regressor_forward.1} parent=1 // pred_check_branch
      %190 = sbr.rel (0) target = $region73
    $region72: #{regressor_forward.1} parent=1 // pred_region
      _
    $region73: #{regressor_forward.1} parent=1 // pred_fallthru
      _
    // Predicated region
    $region74: #{regressor_forward.1} parent=1 // pred_check
      _
    $region75: #{regressor_forward.1} parent=1 // pred_check_branch
      %192 = sbr.rel (0) target = $region77
    $region76: #{regressor_forward.1} parent=1 // pred_region
      %s194 = ssub.s32 16, 16
      %195 = vsyncadd [#allocation24], %s194
      %s197 = sshll.u32 [#allocation25], 4
      %s198 = int_to_ptr.vmem [resolvable:$true] %s197
      %200 = dma.hbm_to_vmem [thread:$0]  %s18, 16, %s198, [#allocation24]
    $region77: #{regressor_forward.1} parent=1 // pred_fallthru
      _
    // Predicated region
    $region78: #{regressor_forward.1} parent=1 // pred_check
      _
    $region79: #{regressor_forward.1} parent=1 // pred_check_branch
      %202 = sbr.rel (0) target = $region81
    $region80: #{regressor_forward.1} parent=1 // pred_region
      %203 = dma.done [#allocation3], 32
    $region81: #{regressor_forward.1} parent=1 // pred_fallthru
      _
    // Predicated region
    $region82: #{regressor_forward.1} parent=1 // pred_check
      _
    $region83: #{regressor_forward.1} parent=1 // pred_check_branch
      %205 = sbr.rel (0) target = $region85
    $region84: #{regressor_forward.1} parent=1 // pred_region
      %206 = dma.done [#allocation6], 32
    $region85: #{regressor_forward.1} parent=1 // pred_fallthru
      _
    // Predicated region
    $region86: #{regressor_forward.1} parent=1 // pred_check
      _
    $region87: #{regressor_forward.1} parent=1 // pred_check_branch
      %208 = sbr.rel (0) target = $region89
    $region88: #{regressor_forward.1} parent=1 // pred_region
      %209 = dma.done [#allocation6], 32
    $region89: #{regressor_forward.1} parent=1 // pred_fallthru
      _
    // Predicated region
    $region90: #{regressor_forward.1} parent=1 // pred_check
      _
    $region91: #{regressor_forward.1} parent=1 // pred_check_branch
      %211 = sbr.rel (0) target = $region93
    $region92: #{regressor_forward.1} parent=1 // pred_region
      %212 = dma.done [#allocation9], 73728
    $region93: #{regressor_forward.1} parent=1 // pred_fallthru
      _
    // Predicated region
    $region94: #{regressor_forward.1} parent=1 // pred_check
      _
    $region95: #{regressor_forward.1} parent=1 // pred_check_branch
      %214 = sbr.rel (0) target = $region97
    $region96: #{regressor_forward.1} parent=1 // pred_region
      %215 = dma.done [#allocation9], 384
    $region97: #{regressor_forward.1} parent=1 // pred_fallthru
      _
    // Predicated region
    $region98: #{regressor_forward.1} parent=1 // pred_check
      _
    $region99: #{regressor_forward.1} parent=1 // pred_check_branch
      %217 = sbr.rel (0) target = $region101
    $region100: #{regressor_forward.1} parent=1 // pred_region
      %218 = dma.done [#allocation12], 96
    $region101: #{regressor_forward.1} parent=1 // pred_fallthru
      _
    // Predicated region
    $region102: #{regressor_forward.1} parent=1 // pred_check
      _
    $region103: #{regressor_forward.1} parent=1 // pred_check_branch
      %220 = sbr.rel (0) target = $region105
    $region104: #{regressor_forward.1} parent=1 // pred_region
      %221 = dma.done [#allocation12], 32
    $region105: #{regressor_forward.1} parent=1 // pred_fallthru
      _
    // Predicated region
    $region106: #{regressor_forward.1} parent=1 // pred_check
      _
    $region107: #{regressor_forward.1} parent=1 // pred_check_branch
      %223 = sbr.rel (0) target = $region109
    $region108: #{regressor_forward.1} parent=1 // pred_region
      %224 = dma.done [#allocation15], 512
    $region109: #{regressor_forward.1} parent=1 // pred_fallthru
      _
    // Predicated region
    $region110: #{regressor_forward.1} parent=1 // pred_check
      _
    $region111: #{regressor_forward.1} parent=1 // pred_check_branch
      %226 = sbr.rel (0) target = $region113
    $region112: #{regressor_forward.1} parent=1 // pred_region
      %227 = dma.done [#allocation15], 64
    $region113: #{regressor_forward.1} parent=1 // pred_fallthru
      _
    // Predicated region
    $region114: #{regressor_forward.1} parent=1 // pred_check
      _
    $region115: #{regressor_forward.1} parent=1 // pred_check_branch
      %229 = sbr.rel (0) target = $region117
    $region116: #{regressor_forward.1} parent=1 // pred_region
      %230 = dma.done [#allocation18], 16
    $region117: #{regressor_forward.1} parent=1 // pred_fallthru
      _
    // Predicated region
    $region118: #{regressor_forward.1} parent=1 // pred_check
      _
    $region119: #{regressor_forward.1} parent=1 // pred_check_branch
      %232 = sbr.rel (0) target = $region121
    $region120: #{regressor_forward.1} parent=1 // pred_region
      %233 = dma.done [#allocation18], 16
    $region121: #{regressor_forward.1} parent=1 // pred_fallthru
      _
    // Predicated region
    $region122: #{regressor_forward.1} parent=1 // pred_check
      _
    $region123: #{regressor_forward.1} parent=1 // pred_check_branch
      %235 = sbr.rel (0) target = $region125
    $region124: #{regressor_forward.1} parent=1 // pred_region
      %236 = dma.done [#allocation21], 512
    $region125: #{regressor_forward.1} parent=1 // pred_fallthru
      _
    // Predicated region
    $region126: #{regressor_forward.1} parent=1 // pred_check
      _
    $region127: #{regressor_forward.1} parent=1 // pred_check_branch
      %238 = sbr.rel (0) target = $region129
    $region128: #{regressor_forward.1} parent=1 // pred_region
      %239 = dma.done [#allocation21], 64
    $region129: #{regressor_forward.1} parent=1 // pred_fallthru
      _
    // Predicated region
    $region130: #{regressor_forward.1} parent=1 // pred_check
      _
    $region131: #{regressor_forward.1} parent=1 // pred_check_branch
      %241 = sbr.rel (0) target = $region133
    $region132: #{regressor_forward.1} parent=1 // pred_region
      %242 = dma.done [#allocation24], 16
    $region133: #{regressor_forward.1} parent=1 // pred_fallthru
      _
    // Predicated region
    $region134: #{regressor_forward.1} parent=1 // pred_check
      _
    $region135: #{regressor_forward.1} parent=1 // pred_check_branch
      %244 = sbr.rel (0) target = $region137
    $region136: #{regressor_forward.1} parent=1 // pred_region
      %245 = dma.done [#allocation24], 16
    $region137: #{regressor_forward.1} parent=1 // pred_fallthru
      _
    %v246 = vld [vmem:[#allocation7] sm:$0x3]
    %v247 = vld [vmem:[%s0] sm:$0xff]
    %v248 = vld [vmem:[%s0 + $0x8] sm:$0xf]
    %v249 = vld [vmem:[#allocation8] sm:$0xff]
    %v250 = vld [vmem:[#allocation8 + $0x8] sm:$0xff]
    %v251 = vld [vmem:[#allocation8 + $0x10] sm:$0xff]
    %v252 = vld [vmem:[#allocation8 + $0x18] sm:$0xff]
    %v253 = vld [vmem:[#allocation8 + $0x20] sm:$0xff]
    %v254 = vld [vmem:[#allocation8 + $0x28] sm:$0xff]
    %v255 = vld [vmem:[#allocation8 + $0x30] sm:$0xff]
    %v256 = vld [vmem:[#allocation8 + $0x38] sm:$0xff]
    %v257 = vld [vmem:[#allocation8 + $0x40] sm:$0xff]
    %v258 = vld [vmem:[#allocation8 + $0x48] sm:$0xff]
    %v259 = vld [vmem:[#allocation8 + $0x50] sm:$0xff]
    %v260 = vld [vmem:[#allocation8 + $0x58] sm:$0xff]
    %v261 = vld [vmem:[#allocation8 + $0x60] sm:$0xff]
    %v262 = vld [vmem:[#allocation8 + $0x68] sm:$0xff]
    %v263 = vld [vmem:[#allocation8 + $0x70] sm:$0xff]
    %v264 = vld [vmem:[#allocation8 + $0x78] sm:$0xff]
    %v265 = vld [vmem:[#allocation8 + $0x80] sm:$0xff]
    %v266 = vld [vmem:[#allocation8 + $0x88] sm:$0xff]
    %v267 = vld [vmem:[#allocation8 + $0x90] sm:$0xff]
    %v268 = vld [vmem:[#allocation8 + $0x98] sm:$0xff]
    %v269 = vld [vmem:[#allocation8 + $0xa0] sm:$0xff]
    %v270 = vld [vmem:[#allocation8 + $0xa8] sm:$0xff]
    %v271 = vld [vmem:[#allocation8 + $0xb0] sm:$0xff]
    %v272 = vld [vmem:[#allocation8 + $0xb8] sm:$0xff]
    %v273 = vld [vmem:[#allocation8 + $0xc0] sm:$0xff]
    %v274 = vld [vmem:[#allocation8 + $0xc8] sm:$0xff]
    %v275 = vld [vmem:[#allocation8 + $0xd0] sm:$0xff]
    %v276 = vld [vmem:[#allocation8 + $0xd8] sm:$0xff]
    %v277 = vld [vmem:[#allocation8 + $0xe0] sm:$0xff]
    %v278 = vld [vmem:[#allocation8 + $0xe8] sm:$0xff]
    %v279 = vld [vmem:[#allocation8 + $0xf0] sm:$0xff]
    %v280 = vld [vmem:[#allocation8 + $0xf8] sm:$0xff]
    %v281 = vld [vmem:[#allocation8 + $0x100] sm:$0xff]
    %v282 = vld [vmem:[#allocation8 + $0x108] sm:$0xff]
    %v283 = vld [vmem:[#allocation8 + $0x110] sm:$0xff]
    %v284 = vld [vmem:[#allocation8 + $0x118] sm:$0xff]
    %v285 = vld [vmem:[#allocation8 + $0x120] sm:$0xff]
    %v286 = vld [vmem:[#allocation8 + $0x128] sm:$0xff]
    %v287 = vld [vmem:[#allocation8 + $0x130] sm:$0xff]
    %v288 = vld [vmem:[#allocation8 + $0x138] sm:$0xff]
    %v289 = vld [vmem:[#allocation8 + $0x140] sm:$0xff]
    %v290 = vld [vmem:[#allocation8 + $0x148] sm:$0xff]
    %v291 = vld [vmem:[#allocation8 + $0x150] sm:$0xff]
    %v292 = vld [vmem:[#allocation8 + $0x158] sm:$0xff]
    %v293 = vld [vmem:[#allocation8 + $0x160] sm:$0xff]
    %v294 = vld [vmem:[#allocation8 + $0x168] sm:$0xff]
    %v295 = vld [vmem:[#allocation8 + $0x170] sm:$0xff]
    %v296 = vld [vmem:[#allocation8 + $0x178] sm:$0xff]
    %v297 = vld [vmem:[#allocation8 + $0x180] sm:$0xff]
    %v298 = vld [vmem:[#allocation8 + $0x188] sm:$0xff]
    %v299 = vld [vmem:[#allocation8 + $0x190] sm:$0xff]
    %v300 = vld [vmem:[#allocation8 + $0x198] sm:$0xff]
    %v301 = vld [vmem:[#allocation8 + $0x1a0] sm:$0xff]
    %v302 = vld [vmem:[#allocation8 + $0x1a8] sm:$0xff]
    %v303 = vld [vmem:[#allocation8 + $0x1b0] sm:$0xff]
    %v304 = vld [vmem:[#allocation8 + $0x1b8] sm:$0xff]
    %v305 = vld [vmem:[#allocation8 + $0x1c0] sm:$0xff]
    %v306 = vld [vmem:[#allocation8 + $0x1c8] sm:$0xff]
    %v307 = vld [vmem:[#allocation8 + $0x1d0] sm:$0xff]
    %v308 = vld [vmem:[#allocation8 + $0x1d8] sm:$0xff]
    %v309 = vld [vmem:[#allocation8 + $0x1e0] sm:$0xff]
    %v310 = vld [vmem:[#allocation8 + $0x1e8] sm:$0xff]
    %v311 = vld [vmem:[#allocation8 + $0x1f0] sm:$0xff]
    %v312 = vld [vmem:[#allocation8 + $0x1f8] sm:$0xff]
    %v313 = vld [vmem:[#allocation8 + $0x200] sm:$0xff]
    %v314 = vld [vmem:[#allocation8 + $0x208] sm:$0xff]
    %v315 = vld [vmem:[#allocation8 + $0x210] sm:$0xff]
    %v316 = vld [vmem:[#allocation8 + $0x218] sm:$0xff]
    %v317 = vld [vmem:[#allocation8 + $0x220] sm:$0xff]
    %v318 = vld [vmem:[#allocation8 + $0x228] sm:$0xff]
    %v319 = vld [vmem:[#allocation8 + $0x230] sm:$0xff]
    %v320 = vld [vmem:[#allocation8 + $0x238] sm:$0xff]
    %v321 = vld [vmem:[#allocation8 + $0x240] sm:$0xff]
    %v322 = vld [vmem:[#allocation8 + $0x248] sm:$0xff]
    %v323 = vld [vmem:[#allocation8 + $0x250] sm:$0xff]
    %v324 = vld [vmem:[#allocation8 + $0x258] sm:$0xff]
    %v325 = vld [vmem:[#allocation8 + $0x260] sm:$0xff]
    %v326 = vld [vmem:[#allocation8 + $0x268] sm:$0xff]
    %v327 = vld [vmem:[#allocation8 + $0x270] sm:$0xff]
    %v328 = vld [vmem:[#allocation8 + $0x278] sm:$0xff]
    %v329 = vld [vmem:[#allocation8 + $0x280] sm:$0xff]
    %v330 = vld [vmem:[#allocation8 + $0x288] sm:$0xff]
    %v331 = vld [vmem:[#allocation8 + $0x290] sm:$0xff]
    %v332 = vld [vmem:[#allocation8 + $0x298] sm:$0xff]
    %v333 = vld [vmem:[#allocation8 + $0x2a0] sm:$0xff]
    %v334 = vld [vmem:[#allocation8 + $0x2a8] sm:$0xff]
    %v335 = vld [vmem:[#allocation8 + $0x2b0] sm:$0xff]
    %v336 = vld [vmem:[#allocation8 + $0x2b8] sm:$0xff]
    %v337 = vld [vmem:[#allocation8 + $0x2c0] sm:$0xff]
    %v338 = vld [vmem:[#allocation8 + $0x2c8] sm:$0xff]
    %v339 = vld [vmem:[#allocation8 + $0x2d0] sm:$0xff]
    %v340 = vld [vmem:[#allocation8 + $0x2d8] sm:$0xff]
    %v341 = vld [vmem:[#allocation8 + $0x2e0] sm:$0xff]
    %v342 = vld [vmem:[#allocation8 + $0x2e8] sm:$0xff]
    %v343 = vld [vmem:[#allocation8 + $0x2f0] sm:$0xff]
    %v344 = vld [vmem:[#allocation8 + $0x2f8] sm:$0xff]
    %v345 = vld [vmem:[#allocation8 + $0x300] sm:$0xff]
    %v346 = vld [vmem:[#allocation8 + $0x308] sm:$0xff]
    %v347 = vld [vmem:[#allocation8 + $0x310] sm:$0xff]
    %v348 = vld [vmem:[#allocation8 + $0x318] sm:$0xff]
    %v349 = vld [vmem:[#allocation8 + $0x320] sm:$0xff]
    %v350 = vld [vmem:[#allocation8 + $0x328] sm:$0xff]
    %v351 = vld [vmem:[#allocation8 + $0x330] sm:$0xff]
    %v352 = vld [vmem:[#allocation8 + $0x338] sm:$0xff]
    %v353 = vld [vmem:[#allocation8 + $0x340] sm:$0xff]
    %v354 = vld [vmem:[#allocation8 + $0x348] sm:$0xff]
    %v355 = vld [vmem:[#allocation8 + $0x350] sm:$0xff]
    %v356 = vld [vmem:[#allocation8 + $0x358] sm:$0xff]
    %v357 = vld [vmem:[#allocation8 + $0x360] sm:$0xff]
    %v358 = vld [vmem:[#allocation8 + $0x368] sm:$0xff]
    %v359 = vld [vmem:[#allocation8 + $0x370] sm:$0xff]
    %v360 = vld [vmem:[#allocation8 + $0x378] sm:$0xff]
    %v361 = vld [vmem:[#allocation8 + $0x380] sm:$0xff]
    %v362 = vld [vmem:[#allocation8 + $0x388] sm:$0xff]
    %v363 = vld [vmem:[#allocation8 + $0x390] sm:$0xff]
    %v364 = vld [vmem:[#allocation8 + $0x398] sm:$0xff]
    %v365 = vld [vmem:[#allocation8 + $0x3a0] sm:$0xff]
    %v366 = vld [vmem:[#allocation8 + $0x3a8] sm:$0xff]
    %v367 = vld [vmem:[#allocation8 + $0x3b0] sm:$0xff]
    %v368 = vld [vmem:[#allocation8 + $0x3b8] sm:$0xff]
    %v369 = vld [vmem:[#allocation8 + $0x3c0] sm:$0xff]
    %v370 = vld [vmem:[#allocation8 + $0x3c8] sm:$0xff]
    %v371 = vld [vmem:[#allocation8 + $0x3d0] sm:$0xff]
    %v372 = vld [vmem:[#allocation8 + $0x3d8] sm:$0xff]
    %v373 = vld [vmem:[#allocation8 + $0x3e0] sm:$0xff]
    %v374 = vld [vmem:[#allocation8 + $0x3e8] sm:$0xff]
    %v375 = vld [vmem:[#allocation8 + $0x3f0] sm:$0xff]
    %v376 = vld [vmem:[#allocation8 + $0x3f8] sm:$0xff]
    %v377 = vld [vmem:[#allocation8 + $0x400] sm:$0xff]
    %v378 = vld [vmem:[#allocation8 + $0x408] sm:$0xff]
    %v379 = vld [vmem:[#allocation8 + $0x410] sm:$0xff]
    %v380 = vld [vmem:[#allocation8 + $0x418] sm:$0xff]
    %v381 = vld [vmem:[#allocation8 + $0x420] sm:$0xff]
    %v382 = vld [vmem:[#allocation8 + $0x428] sm:$0xff]
    %v383 = vld [vmem:[#allocation8 + $0x430] sm:$0xff]
    %v384 = vld [vmem:[#allocation8 + $0x438] sm:$0xff]
    %v385 = vld [vmem:[#allocation8 + $0x440] sm:$0xff]
    %v386 = vld [vmem:[#allocation8 + $0x448] sm:$0xff]
    %v387 = vld [vmem:[#allocation8 + $0x450] sm:$0xff]
    %v388 = vld [vmem:[#allocation8 + $0x458] sm:$0xff]
    %v389 = vld [vmem:[#allocation8 + $0x460] sm:$0xff]
    %v390 = vld [vmem:[#allocation8 + $0x468] sm:$0xff]
    %v391 = vld [vmem:[#allocation8 + $0x470] sm:$0xff]
    %v392 = vld [vmem:[#allocation8 + $0x478] sm:$0xff]
    %v393 = vld [vmem:[#allocation8 + $0x480] sm:$0xff]
    %v394 = vld [vmem:[#allocation8 + $0x488] sm:$0xff]
    %v395 = vld [vmem:[#allocation8 + $0x490] sm:$0xff]
    %v396 = vld [vmem:[#allocation8 + $0x498] sm:$0xff]
    %v397 = vld [vmem:[#allocation8 + $0x4a0] sm:$0xff]
    %v398 = vld [vmem:[#allocation8 + $0x4a8] sm:$0xff]
    %v399 = vld [vmem:[#allocation8 + $0x4b0] sm:$0xff]
    %v400 = vld [vmem:[#allocation8 + $0x4b8] sm:$0xff]
    %v401 = vld [vmem:[#allocation8 + $0x4c0] sm:$0xff]
    %v402 = vld [vmem:[#allocation8 + $0x4c8] sm:$0xff]
    %v403 = vld [vmem:[#allocation8 + $0x4d0] sm:$0xff]
    %v404 = vld [vmem:[#allocation8 + $0x4d8] sm:$0xff]
    %v405 = vld [vmem:[#allocation8 + $0x4e0] sm:$0xff]
    %v406 = vld [vmem:[#allocation8 + $0x4e8] sm:$0xff]
    %v407 = vld [vmem:[#allocation8 + $0x4f0] sm:$0xff]
    %v408 = vld [vmem:[#allocation8 + $0x4f8] sm:$0xff]
    %v409 = vld [vmem:[#allocation8 + $0x500] sm:$0xff]
    %v410 = vld [vmem:[#allocation8 + $0x508] sm:$0xff]
    %v411 = vld [vmem:[#allocation8 + $0x510] sm:$0xff]
    %v412 = vld [vmem:[#allocation8 + $0x518] sm:$0xff]
    %v413 = vld [vmem:[#allocation8 + $0x520] sm:$0xff]
    %v414 = vld [vmem:[#allocation8 + $0x528] sm:$0xff]
    %v415 = vld [vmem:[#allocation8 + $0x530] sm:$0xff]
    %v416 = vld [vmem:[#allocation8 + $0x538] sm:$0xff]
    %v417 = vld [vmem:[#allocation8 + $0x540] sm:$0xff]
    %v418 = vld [vmem:[#allocation8 + $0x548] sm:$0xff]
    %v419 = vld [vmem:[#allocation8 + $0x550] sm:$0xff]
    %v420 = vld [vmem:[#allocation8 + $0x558] sm:$0xff]
    %v421 = vld [vmem:[#allocation8 + $0x560] sm:$0xff]
    %v422 = vld [vmem:[#allocation8 + $0x568] sm:$0xff]
    %v423 = vld [vmem:[#allocation8 + $0x570] sm:$0xff]
    %v424 = vld [vmem:[#allocation8 + $0x578] sm:$0xff]
    %v425 = vld [vmem:[#allocation8 + $0x580] sm:$0xff]
    %v426 = vld [vmem:[#allocation8 + $0x588] sm:$0xff]
    %v427 = vld [vmem:[#allocation8 + $0x590] sm:$0xff]
    %v428 = vld [vmem:[#allocation8 + $0x598] sm:$0xff]
    %v429 = vld [vmem:[#allocation8 + $0x5a0] sm:$0xff]
    %v430 = vld [vmem:[#allocation8 + $0x5a8] sm:$0xff]
    %v431 = vld [vmem:[#allocation8 + $0x5b0] sm:$0xff]
    %v432 = vld [vmem:[#allocation8 + $0x5b8] sm:$0xff]
    %v433 = vld [vmem:[#allocation8 + $0x5c0] sm:$0xff]
    %v434 = vld [vmem:[#allocation8 + $0x5c8] sm:$0xff]
    %v435 = vld [vmem:[#allocation8 + $0x5d0] sm:$0xff]
    %v436 = vld [vmem:[#allocation8 + $0x5d8] sm:$0xff]
    %v437 = vld [vmem:[#allocation8 + $0x5e0] sm:$0xff]
    %v438 = vld [vmem:[#allocation8 + $0x5e8] sm:$0xff]
    %v439 = vld [vmem:[#allocation8 + $0x5f0] sm:$0xff]
    %v440 = vld [vmem:[#allocation8 + $0x5f8] sm:$0xff]
    %v441 = vld [vmem:[#allocation8 + $0x600] sm:$0xff]
    %v442 = vld [vmem:[#allocation8 + $0x608] sm:$0xff]
    %v443 = vld [vmem:[#allocation8 + $0x610] sm:$0xff]
    %v444 = vld [vmem:[#allocation8 + $0x618] sm:$0xff]
    %v445 = vld [vmem:[#allocation8 + $0x620] sm:$0xff]
    %v446 = vld [vmem:[#allocation8 + $0x628] sm:$0xff]
    %v447 = vld [vmem:[#allocation8 + $0x630] sm:$0xff]
    %v448 = vld [vmem:[#allocation8 + $0x638] sm:$0xff]
    %v449 = vld [vmem:[#allocation8 + $0x640] sm:$0xff]
    %v450 = vld [vmem:[#allocation8 + $0x648] sm:$0xff]
    %v451 = vld [vmem:[#allocation8 + $0x650] sm:$0xff]
    %v452 = vld [vmem:[#allocation8 + $0x658] sm:$0xff]
    %v453 = vld [vmem:[#allocation8 + $0x660] sm:$0xff]
    %v454 = vld [vmem:[#allocation8 + $0x668] sm:$0xff]
    %v455 = vld [vmem:[#allocation8 + $0x670] sm:$0xff]
    %v456 = vld [vmem:[#allocation8 + $0x678] sm:$0xff]
    %v457 = vld [vmem:[#allocation8 + $0x680] sm:$0xff]
    %v458 = vld [vmem:[#allocation8 + $0x688] sm:$0xff]
    %v459 = vld [vmem:[#allocation8 + $0x690] sm:$0xff]
    %v460 = vld [vmem:[#allocation8 + $0x698] sm:$0xff]
    %v461 = vld [vmem:[#allocation8 + $0x6a0] sm:$0xff]
    %v462 = vld [vmem:[#allocation8 + $0x6a8] sm:$0xff]
    %v463 = vld [vmem:[#allocation8 + $0x6b0] sm:$0xff]
    %v464 = vld [vmem:[#allocation8 + $0x6b8] sm:$0xff]
    %v465 = vld [vmem:[#allocation8 + $0x6c0] sm:$0xff]
    %v466 = vld [vmem:[#allocation8 + $0x6c8] sm:$0xff]
    %v467 = vld [vmem:[#allocation8 + $0x6d0] sm:$0xff]
    %v468 = vld [vmem:[#allocation8 + $0x6d8] sm:$0xff]
    %v469 = vld [vmem:[#allocation8 + $0x6e0] sm:$0xff]
    %v470 = vld [vmem:[#allocation8 + $0x6e8] sm:$0xff]
    %v471 = vld [vmem:[#allocation8 + $0x6f0] sm:$0xff]
    %v472 = vld [vmem:[#allocation8 + $0x6f8] sm:$0xff]
    %v473 = vld [vmem:[#allocation8 + $0x700] sm:$0xff]
    %v474 = vld [vmem:[#allocation8 + $0x708] sm:$0xff]
    %v475 = vld [vmem:[#allocation8 + $0x710] sm:$0xff]
    %v476 = vld [vmem:[#allocation8 + $0x718] sm:$0xff]
    %v477 = vld [vmem:[#allocation8 + $0x720] sm:$0xff]
    %v478 = vld [vmem:[#allocation8 + $0x728] sm:$0xff]
    %v479 = vld [vmem:[#allocation8 + $0x730] sm:$0xff]
    %v480 = vld [vmem:[#allocation8 + $0x738] sm:$0xff]
    %v481 = vld [vmem:[#allocation8 + $0x740] sm:$0xff]
    %v482 = vld [vmem:[#allocation8 + $0x748] sm:$0xff]
    %v483 = vld [vmem:[#allocation8 + $0x750] sm:$0xff]
    %v484 = vld [vmem:[#allocation8 + $0x758] sm:$0xff]
    %v485 = vld [vmem:[#allocation8 + $0x760] sm:$0xff]
    %v486 = vld [vmem:[#allocation8 + $0x768] sm:$0xff]
    %v487 = vld [vmem:[#allocation8 + $0x770] sm:$0xff]
    %v488 = vld [vmem:[#allocation8 + $0x778] sm:$0xff]
    %v489 = vld [vmem:[#allocation8 + $0x780] sm:$0xff]
    %v490 = vld [vmem:[#allocation8 + $0x788] sm:$0xff]
    %v491 = vld [vmem:[#allocation8 + $0x790] sm:$0xff]
    %v492 = vld [vmem:[#allocation8 + $0x798] sm:$0xff]
    %v493 = vld [vmem:[#allocation8 + $0x7a0] sm:$0xff]
    %v494 = vld [vmem:[#allocation8 + $0x7a8] sm:$0xff]
    %v495 = vld [vmem:[#allocation8 + $0x7b0] sm:$0xff]
    %v496 = vld [vmem:[#allocation8 + $0x7b8] sm:$0xff]
    %v497 = vld [vmem:[#allocation8 + $0x7c0] sm:$0xff]
    %v498 = vld [vmem:[#allocation8 + $0x7c8] sm:$0xff]
    %v499 = vld [vmem:[#allocation8 + $0x7d0] sm:$0xff]
    %v500 = vld [vmem:[#allocation8 + $0x7d8] sm:$0xff]
    %v501 = vld [vmem:[#allocation8 + $0x7e0] sm:$0xff]
    %v502 = vld [vmem:[#allocation8 + $0x7e8] sm:$0xff]
    %v503 = vld [vmem:[#allocation8 + $0x7f0] sm:$0xff]
    %v504 = vld [vmem:[#allocation8 + $0x7f8] sm:$0xff]
    %v505 = vld [vmem:[#allocation8 + $0x800] sm:$0xff]
    %v506 = vld [vmem:[#allocation8 + $0x808] sm:$0xff]
    %v507 = vld [vmem:[#allocation8 + $0x810] sm:$0xff]
    %v508 = vld [vmem:[#allocation8 + $0x818] sm:$0xff]
    %v509 = vld [vmem:[#allocation8 + $0x820] sm:$0xff]
    %v510 = vld [vmem:[#allocation8 + $0x828] sm:$0xff]
    %v511 = vld [vmem:[#allocation8 + $0x830] sm:$0xff]
    %v512 = vld [vmem:[#allocation8 + $0x838] sm:$0xff]
    %v513 = vld [vmem:[#allocation8 + $0x840] sm:$0xff]
    %v514 = vld [vmem:[#allocation8 + $0x848] sm:$0xff]
    %v515 = vld [vmem:[#allocation8 + $0x850] sm:$0xff]
    %v516 = vld [vmem:[#allocation8 + $0x858] sm:$0xff]
    %v517 = vld [vmem:[#allocation8 + $0x860] sm:$0xff]
    %v518 = vld [vmem:[#allocation8 + $0x868] sm:$0xff]
    %v519 = vld [vmem:[#allocation8 + $0x870] sm:$0xff]
    %v520 = vld [vmem:[#allocation8 + $0x878] sm:$0xff]
    %v521 = vld [vmem:[#allocation8 + $0x880] sm:$0xff]
    %v522 = vld [vmem:[#allocation8 + $0x888] sm:$0xff]
    %v523 = vld [vmem:[#allocation8 + $0x890] sm:$0xff]
    %v524 = vld [vmem:[#allocation8 + $0x898] sm:$0xff]
    %v525 = vld [vmem:[#allocation8 + $0x8a0] sm:$0xff]
    %v526 = vld [vmem:[#allocation8 + $0x8a8] sm:$0xff]
    %v527 = vld [vmem:[#allocation8 + $0x8b0] sm:$0xff]
    %v528 = vld [vmem:[#allocation8 + $0x8b8] sm:$0xff]
    %v529 = vld [vmem:[#allocation8 + $0x8c0] sm:$0xff]
    %v530 = vld [vmem:[#allocation8 + $0x8c8] sm:$0xff]
    %v531 = vld [vmem:[#allocation8 + $0x8d0] sm:$0xff]
    %v532 = vld [vmem:[#allocation8 + $0x8d8] sm:$0xff]
    %v533 = vld [vmem:[#allocation8 + $0x8e0] sm:$0xff]
    %v534 = vld [vmem:[#allocation8 + $0x8e8] sm:$0xff]
    %v535 = vld [vmem:[#allocation8 + $0x8f0] sm:$0xff]
    %v536 = vld [vmem:[#allocation8 + $0x8f8] sm:$0xff]
    %v537 = vld [vmem:[#allocation8 + $0x900] sm:$0xff]
    %v538 = vld [vmem:[#allocation8 + $0x908] sm:$0xff]
    %v539 = vld [vmem:[#allocation8 + $0x910] sm:$0xff]
    %v540 = vld [vmem:[#allocation8 + $0x918] sm:$0xff]
    %v541 = vld [vmem:[#allocation8 + $0x920] sm:$0xff]
    %v542 = vld [vmem:[#allocation8 + $0x928] sm:$0xff]
    %v543 = vld [vmem:[#allocation8 + $0x930] sm:$0xff]
    %v544 = vld [vmem:[#allocation8 + $0x938] sm:$0xff]
    %v545 = vld [vmem:[#allocation8 + $0x940] sm:$0xff]
    %v546 = vld [vmem:[#allocation8 + $0x948] sm:$0xff]
    %v547 = vld [vmem:[#allocation8 + $0x950] sm:$0xff]
    %v548 = vld [vmem:[#allocation8 + $0x958] sm:$0xff]
    %v549 = vld [vmem:[#allocation8 + $0x960] sm:$0xff]
    %v550 = vld [vmem:[#allocation8 + $0x968] sm:$0xff]
    %v551 = vld [vmem:[#allocation8 + $0x970] sm:$0xff]
    %v552 = vld [vmem:[#allocation8 + $0x978] sm:$0xff]
    %v553 = vld [vmem:[#allocation8 + $0x980] sm:$0xff]
    %v554 = vld [vmem:[#allocation8 + $0x988] sm:$0xff]
    %v555 = vld [vmem:[#allocation8 + $0x990] sm:$0xff]
    %v556 = vld [vmem:[#allocation8 + $0x998] sm:$0xff]
    %v557 = vld [vmem:[#allocation8 + $0x9a0] sm:$0xff]
    %v558 = vld [vmem:[#allocation8 + $0x9a8] sm:$0xff]
    %v559 = vld [vmem:[#allocation8 + $0x9b0] sm:$0xff]
    %v560 = vld [vmem:[#allocation8 + $0x9b8] sm:$0xff]
    %v561 = vld [vmem:[#allocation8 + $0x9c0] sm:$0xff]
    %v562 = vld [vmem:[#allocation8 + $0x9c8] sm:$0xff]
    %v563 = vld [vmem:[#allocation8 + $0x9d0] sm:$0xff]
    %v564 = vld [vmem:[#allocation8 + $0x9d8] sm:$0xff]
    %v565 = vld [vmem:[#allocation8 + $0x9e0] sm:$0xff]
    %v566 = vld [vmem:[#allocation8 + $0x9e8] sm:$0xff]
    %v567 = vld [vmem:[#allocation8 + $0x9f0] sm:$0xff]
    %v568 = vld [vmem:[#allocation8 + $0x9f8] sm:$0xff]
    %v569 = vld [vmem:[#allocation8 + $0xa00] sm:$0xff]
    %v570 = vld [vmem:[#allocation8 + $0xa08] sm:$0xff]
    %v571 = vld [vmem:[#allocation8 + $0xa10] sm:$0xff]
    %v572 = vld [vmem:[#allocation8 + $0xa18] sm:$0xff]
    %v573 = vld [vmem:[#allocation8 + $0xa20] sm:$0xff]
    %v574 = vld [vmem:[#allocation8 + $0xa28] sm:$0xff]
    %v575 = vld [vmem:[#allocation8 + $0xa30] sm:$0xff]
    %v576 = vld [vmem:[#allocation8 + $0xa38] sm:$0xff]
    %v577 = vld [vmem:[#allocation8 + $0xa40] sm:$0xff]
    %v578 = vld [vmem:[#allocation8 + $0xa48] sm:$0xff]
    %v579 = vld [vmem:[#allocation8 + $0xa50] sm:$0xff]
    %v580 = vld [vmem:[#allocation8 + $0xa58] sm:$0xff]
    %v581 = vld [vmem:[#allocation8 + $0xa60] sm:$0xff]
    %v582 = vld [vmem:[#allocation8 + $0xa68] sm:$0xff]
    %v583 = vld [vmem:[#allocation8 + $0xa70] sm:$0xff]
    %v584 = vld [vmem:[#allocation8 + $0xa78] sm:$0xff]
    %v585 = vld [vmem:[#allocation8 + $0xa80] sm:$0xff]
    %v586 = vld [vmem:[#allocation8 + $0xa88] sm:$0xff]
    %v587 = vld [vmem:[#allocation8 + $0xa90] sm:$0xff]
    %v588 = vld [vmem:[#allocation8 + $0xa98] sm:$0xff]
    %v589 = vld [vmem:[#allocation8 + $0xaa0] sm:$0xff]
    %v590 = vld [vmem:[#allocation8 + $0xaa8] sm:$0xff]
    %v591 = vld [vmem:[#allocation8 + $0xab0] sm:$0xff]
    %v592 = vld [vmem:[#allocation8 + $0xab8] sm:$0xff]
    %v593 = vld [vmem:[#allocation8 + $0xac0] sm:$0xff]
    %v594 = vld [vmem:[#allocation8 + $0xac8] sm:$0xff]
    %v595 = vld [vmem:[#allocation8 + $0xad0] sm:$0xff]
    %v596 = vld [vmem:[#allocation8 + $0xad8] sm:$0xff]
    %v597 = vld [vmem:[#allocation8 + $0xae0] sm:$0xff]
    %v598 = vld [vmem:[#allocation8 + $0xae8] sm:$0xff]
    %v599 = vld [vmem:[#allocation8 + $0xaf0] sm:$0xff]
    %v600 = vld [vmem:[#allocation8 + $0xaf8] sm:$0xff]
    %v601 = vld [vmem:[#allocation8 + $0xb00] sm:$0xff]
    %v602 = vld [vmem:[#allocation8 + $0xb08] sm:$0xff]
    %v603 = vld [vmem:[#allocation8 + $0xb10] sm:$0xff]
    %v604 = vld [vmem:[#allocation8 + $0xb18] sm:$0xff]
    %v605 = vld [vmem:[#allocation8 + $0xb20] sm:$0xff]
    %v606 = vld [vmem:[#allocation8 + $0xb28] sm:$0xff]
    %v607 = vld [vmem:[#allocation8 + $0xb30] sm:$0xff]
    %v608 = vld [vmem:[#allocation8 + $0xb38] sm:$0xff]
    %v609 = vld [vmem:[#allocation8 + $0xb40] sm:$0xff]
    %v610 = vld [vmem:[#allocation8 + $0xb48] sm:$0xff]
    %v611 = vld [vmem:[#allocation8 + $0xb50] sm:$0xff]
    %v612 = vld [vmem:[#allocation8 + $0xb58] sm:$0xff]
    %v613 = vld [vmem:[#allocation8 + $0xb60] sm:$0xff]
    %v614 = vld [vmem:[#allocation8 + $0xb68] sm:$0xff]
    %v615 = vld [vmem:[#allocation8 + $0xb70] sm:$0xff]
    %v616 = vld [vmem:[#allocation8 + $0xb78] sm:$0xff]
    %v617 = vld [vmem:[#allocation8 + $0xb80] sm:$0xff]
    %v618 = vld [vmem:[#allocation8 + $0xb88] sm:$0xff]
    %v619 = vld [vmem:[#allocation8 + $0xb90] sm:$0xff]
    %v620 = vld [vmem:[#allocation8 + $0xb98] sm:$0xff]
    %v621 = vld [vmem:[#allocation8 + $0xba0] sm:$0xff]
    %v622 = vld [vmem:[#allocation8 + $0xba8] sm:$0xff]
    %v623 = vld [vmem:[#allocation8 + $0xbb0] sm:$0xff]
    %v624 = vld [vmem:[#allocation8 + $0xbb8] sm:$0xff]
    %v625 = vld [vmem:[#allocation8 + $0xbc0] sm:$0xff]
    %v626 = vld [vmem:[#allocation8 + $0xbc8] sm:$0xff]
    %v627 = vld [vmem:[#allocation8 + $0xbd0] sm:$0xff]
    %v628 = vld [vmem:[#allocation8 + $0xbd8] sm:$0xff]
    %v629 = vld [vmem:[#allocation8 + $0xbe0] sm:$0xff]
    %v630 = vld [vmem:[#allocation8 + $0xbe8] sm:$0xff]
    %v631 = vld [vmem:[#allocation8 + $0xbf0] sm:$0xff]
    %v632 = vld [vmem:[#allocation8 + $0xbf8] sm:$0xff]
    %v633 = vld [vmem:[#allocation8 + $0xc00] sm:$0xff]
    %v634 = vld [vmem:[#allocation8 + $0xc08] sm:$0xff]
    %v635 = vld [vmem:[#allocation8 + $0xc10] sm:$0xff]
    %v636 = vld [vmem:[#allocation8 + $0xc18] sm:$0xff]
    %v637 = vld [vmem:[#allocation8 + $0xc20] sm:$0xff]
    %v638 = vld [vmem:[#allocation8 + $0xc28] sm:$0xff]
    %v639 = vld [vmem:[#allocation8 + $0xc30] sm:$0xff]
    %v640 = vld [vmem:[#allocation8 + $0xc38] sm:$0xff]
    %v641 = vld [vmem:[#allocation8 + $0xc40] sm:$0xff]
    %v642 = vld [vmem:[#allocation8 + $0xc48] sm:$0xff]
    %v643 = vld [vmem:[#allocation8 + $0xc50] sm:$0xff]
    %v644 = vld [vmem:[#allocation8 + $0xc58] sm:$0xff]
    %v645 = vld [vmem:[#allocation8 + $0xc60] sm:$0xff]
    %v646 = vld [vmem:[#allocation8 + $0xc68] sm:$0xff]
    %v647 = vld [vmem:[#allocation8 + $0xc70] sm:$0xff]
    %v648 = vld [vmem:[#allocation8 + $0xc78] sm:$0xff]
    %v649 = vld [vmem:[#allocation8 + $0xc80] sm:$0xff]
    %v650 = vld [vmem:[#allocation8 + $0xc88] sm:$0xff]
    %v651 = vld [vmem:[#allocation8 + $0xc90] sm:$0xff]
    %v652 = vld [vmem:[#allocation8 + $0xc98] sm:$0xff]
    %v653 = vld [vmem:[#allocation8 + $0xca0] sm:$0xff]
    %v654 = vld [vmem:[#allocation8 + $0xca8] sm:$0xff]
    %v655 = vld [vmem:[#allocation8 + $0xcb0] sm:$0xff]
    %v656 = vld [vmem:[#allocation8 + $0xcb8] sm:$0xff]
    %v657 = vld [vmem:[#allocation8 + $0xcc0] sm:$0xff]
    %v658 = vld [vmem:[#allocation8 + $0xcc8] sm:$0xff]
    %v659 = vld [vmem:[#allocation8 + $0xcd0] sm:$0xff]
    %v660 = vld [vmem:[#allocation8 + $0xcd8] sm:$0xff]
    %v661 = vld [vmem:[#allocation8 + $0xce0] sm:$0xff]
    %v662 = vld [vmem:[#allocation8 + $0xce8] sm:$0xff]
    %v663 = vld [vmem:[#allocation8 + $0xcf0] sm:$0xff]
    %v664 = vld [vmem:[#allocation8 + $0xcf8] sm:$0xff]
    %v665 = vld [vmem:[#allocation8 + $0xd00] sm:$0xff]
    %v666 = vld [vmem:[#allocation8 + $0xd08] sm:$0xff]
    %v667 = vld [vmem:[#allocation8 + $0xd10] sm:$0xff]
    %v668 = vld [vmem:[#allocation8 + $0xd18] sm:$0xff]
    %v669 = vld [vmem:[#allocation8 + $0xd20] sm:$0xff]
    %v670 = vld [vmem:[#allocation8 + $0xd28] sm:$0xff]
    %v671 = vld [vmem:[#allocation8 + $0xd30] sm:$0xff]
    %v672 = vld [vmem:[#allocation8 + $0xd38] sm:$0xff]
    %v673 = vld [vmem:[#allocation8 + $0xd40] sm:$0xff]
    %v674 = vld [vmem:[#allocation8 + $0xd48] sm:$0xff]
    %v675 = vld [vmem:[#allocation8 + $0xd50] sm:$0xff]
    %v676 = vld [vmem:[#allocation8 + $0xd58] sm:$0xff]
    %v677 = vld [vmem:[#allocation8 + $0xd60] sm:$0xff]
    %v678 = vld [vmem:[#allocation8 + $0xd68] sm:$0xff]
    %v679 = vld [vmem:[#allocation8 + $0xd70] sm:$0xff]
    %v680 = vld [vmem:[#allocation8 + $0xd78] sm:$0xff]
    %v681 = vld [vmem:[#allocation8 + $0xd80] sm:$0xff]
    %v682 = vld [vmem:[#allocation8 + $0xd88] sm:$0xff]
    %v683 = vld [vmem:[#allocation8 + $0xd90] sm:$0xff]
    %v684 = vld [vmem:[#allocation8 + $0xd98] sm:$0xff]
    %v685 = vld [vmem:[#allocation8 + $0xda0] sm:$0xff]
    %v686 = vld [vmem:[#allocation8 + $0xda8] sm:$0xff]
    %v687 = vld [vmem:[#allocation8 + $0xdb0] sm:$0xff]
    %v688 = vld [vmem:[#allocation8 + $0xdb8] sm:$0xff]
    %v689 = vld [vmem:[#allocation8 + $0xdc0] sm:$0xff]
    %v690 = vld [vmem:[#allocation8 + $0xdc8] sm:$0xff]
    %v691 = vld [vmem:[#allocation8 + $0xdd0] sm:$0xff]
    %v692 = vld [vmem:[#allocation8 + $0xdd8] sm:$0xff]
    %v693 = vld [vmem:[#allocation8 + $0xde0] sm:$0xff]
    %v694 = vld [vmem:[#allocation8 + $0xde8] sm:$0xff]
    %v695 = vld [vmem:[#allocation8 + $0xdf0] sm:$0xff]
    %v696 = vld [vmem:[#allocation8 + $0xdf8] sm:$0xff]
    %v697 = vld [vmem:[#allocation8 + $0xe00] sm:$0xff]
    %v698 = vld [vmem:[#allocation8 + $0xe08] sm:$0xff]
    %v699 = vld [vmem:[#allocation8 + $0xe10] sm:$0xff]
    %v700 = vld [vmem:[#allocation8 + $0xe18] sm:$0xff]
    %v701 = vld [vmem:[#allocation8 + $0xe20] sm:$0xff]
    %v702 = vld [vmem:[#allocation8 + $0xe28] sm:$0xff]
    %v703 = vld [vmem:[#allocation8 + $0xe30] sm:$0xff]
    %v704 = vld [vmem:[#allocation8 + $0xe38] sm:$0xff]
    %v705 = vld [vmem:[#allocation8 + $0xe40] sm:$0xff]
    %v706 = vld [vmem:[#allocation8 + $0xe48] sm:$0xff]
    %v707 = vld [vmem:[#allocation8 + $0xe50] sm:$0xff]
    %v708 = vld [vmem:[#allocation8 + $0xe58] sm:$0xff]
    %v709 = vld [vmem:[#allocation8 + $0xe60] sm:$0xff]
    %v710 = vld [vmem:[#allocation8 + $0xe68] sm:$0xff]
    %v711 = vld [vmem:[#allocation8 + $0xe70] sm:$0xff]
    %v712 = vld [vmem:[#allocation8 + $0xe78] sm:$0xff]
    %v713 = vld [vmem:[#allocation8 + $0xe80] sm:$0xff]
    %v714 = vld [vmem:[#allocation8 + $0xe88] sm:$0xff]
    %v715 = vld [vmem:[#allocation8 + $0xe90] sm:$0xff]
    %v716 = vld [vmem:[#allocation8 + $0xe98] sm:$0xff]
    %v717 = vld [vmem:[#allocation8 + $0xea0] sm:$0xff]
    %v718 = vld [vmem:[#allocation8 + $0xea8] sm:$0xff]
    %v719 = vld [vmem:[#allocation8 + $0xeb0] sm:$0xff]
    %v720 = vld [vmem:[#allocation8 + $0xeb8] sm:$0xff]
    %v721 = vld [vmem:[#allocation8 + $0xec0] sm:$0xff]
    %v722 = vld [vmem:[#allocation8 + $0xec8] sm:$0xff]
    %v723 = vld [vmem:[#allocation8 + $0xed0] sm:$0xff]
    %v724 = vld [vmem:[#allocation8 + $0xed8] sm:$0xff]
    %v725 = vld [vmem:[#allocation8 + $0xee0] sm:$0xff]
    %v726 = vld [vmem:[#allocation8 + $0xee8] sm:$0xff]
    %v727 = vld [vmem:[#allocation8 + $0xef0] sm:$0xff]
    %v728 = vld [vmem:[#allocation8 + $0xef8] sm:$0xff]
    %v729 = vld [vmem:[#allocation8 + $0xf00] sm:$0xff]
    %v730 = vld [vmem:[#allocation8 + $0xf08] sm:$0xff]
    %v731 = vld [vmem:[#allocation8 + $0xf10] sm:$0xff]
    %v732 = vld [vmem:[#allocation8 + $0xf18] sm:$0xff]
    %v733 = vld [vmem:[#allocation8 + $0xf20] sm:$0xff]
    %v734 = vld [vmem:[#allocation8 + $0xf28] sm:$0xff]
    %v735 = vld [vmem:[#allocation8 + $0xf30] sm:$0xff]
    %v736 = vld [vmem:[#allocation8 + $0xf38] sm:$0xff]
    %v737 = vld [vmem:[#allocation8 + $0xf40] sm:$0xff]
    %v738 = vld [vmem:[#allocation8 + $0xf48] sm:$0xff]
    %v739 = vld [vmem:[#allocation8 + $0xf50] sm:$0xff]
    %v740 = vld [vmem:[#allocation8 + $0xf58] sm:$0xff]
    %v741 = vld [vmem:[#allocation8 + $0xf60] sm:$0xff]
    %v742 = vld [vmem:[#allocation8 + $0xf68] sm:$0xff]
    %v743 = vld [vmem:[#allocation8 + $0xf70] sm:$0xff]
    %v744 = vld [vmem:[#allocation8 + $0xf78] sm:$0xff]
    %v745 = vld [vmem:[#allocation8 + $0xf80] sm:$0xff]
    %v746 = vld [vmem:[#allocation8 + $0xf88] sm:$0xff]
    %v747 = vld [vmem:[#allocation8 + $0xf90] sm:$0xff]
    %v748 = vld [vmem:[#allocation8 + $0xf98] sm:$0xff]
    %v749 = vld [vmem:[#allocation8 + $0xfa0] sm:$0xff]
    %v750 = vld [vmem:[#allocation8 + $0xfa8] sm:$0xff]
    %v751 = vld [vmem:[#allocation8 + $0xfb0] sm:$0xff]
    %v752 = vld [vmem:[#allocation8 + $0xfb8] sm:$0xff]
    %v753 = vld [vmem:[#allocation8 + $0xfc0] sm:$0xff]
    %v754 = vld [vmem:[#allocation8 + $0xfc8] sm:$0xff]
    %v755 = vld [vmem:[#allocation8 + $0xfd0] sm:$0xff]
    %v756 = vld [vmem:[#allocation8 + $0xfd8] sm:$0xff]
    %v757 = vld [vmem:[#allocation8 + $0xfe0] sm:$0xff]
    %v758 = vld [vmem:[#allocation8 + $0xfe8] sm:$0xff]
    %v759 = vld [vmem:[#allocation8 + $0xff0] sm:$0xff]
    %v760 = vld [vmem:[#allocation8 + $0xff8] sm:$0xff]
    %v761 = vld [vmem:[#allocation8 + $0x1000] sm:$0xff]
    %v762 = vld [vmem:[#allocation8 + $0x1008] sm:$0xff]
    %v763 = vld [vmem:[#allocation8 + $0x1010] sm:$0xff]
    %v764 = vld [vmem:[#allocation8 + $0x1018] sm:$0xff]
    %v765 = vld [vmem:[#allocation8 + $0x1020] sm:$0xff]
    %v766 = vld [vmem:[#allocation8 + $0x1028] sm:$0xff]
    %v767 = vld [vmem:[#allocation8 + $0x1030] sm:$0xff]
    %v768 = vld [vmem:[#allocation8 + $0x1038] sm:$0xff]
    %v769 = vld [vmem:[#allocation8 + $0x1040] sm:$0xff]
    %v770 = vld [vmem:[#allocation8 + $0x1048] sm:$0xff]
    %v771 = vld [vmem:[#allocation8 + $0x1050] sm:$0xff]
    %v772 = vld [vmem:[#allocation8 + $0x1058] sm:$0xff]
    %v773 = vld [vmem:[#allocation8 + $0x1060] sm:$0xff]
    %v774 = vld [vmem:[#allocation8 + $0x1068] sm:$0xff]
    %v775 = vld [vmem:[#allocation8 + $0x1070] sm:$0xff]
    %v776 = vld [vmem:[#allocation8 + $0x1078] sm:$0xff]
    %v777 = vld [vmem:[#allocation8 + $0x1080] sm:$0xff]
    %v778 = vld [vmem:[#allocation8 + $0x1088] sm:$0xff]
    %v779 = vld [vmem:[#allocation8 + $0x1090] sm:$0xff]
    %v780 = vld [vmem:[#allocation8 + $0x1098] sm:$0xff]
    %v781 = vld [vmem:[#allocation8 + $0x10a0] sm:$0xff]
    %v782 = vld [vmem:[#allocation8 + $0x10a8] sm:$0xff]
    %v783 = vld [vmem:[#allocation8 + $0x10b0] sm:$0xff]
    %v784 = vld [vmem:[#allocation8 + $0x10b8] sm:$0xff]
    %v785 = vld [vmem:[#allocation8 + $0x10c0] sm:$0xff]
    %v786 = vld [vmem:[#allocation8 + $0x10c8] sm:$0xff]
    %v787 = vld [vmem:[#allocation8 + $0x10d0] sm:$0xff]
    %v788 = vld [vmem:[#allocation8 + $0x10d8] sm:$0xff]
    %v789 = vld [vmem:[#allocation8 + $0x10e0] sm:$0xff]
    %v790 = vld [vmem:[#allocation8 + $0x10e8] sm:$0xff]
    %v791 = vld [vmem:[#allocation8 + $0x10f0] sm:$0xff]
    %v792 = vld [vmem:[#allocation8 + $0x10f8] sm:$0xff]
    %v793 = vld [vmem:[#allocation8 + $0x1100] sm:$0xff]
    %v794 = vld [vmem:[#allocation8 + $0x1108] sm:$0xff]
    %v795 = vld [vmem:[#allocation8 + $0x1110] sm:$0xff]
    %v796 = vld [vmem:[#allocation8 + $0x1118] sm:$0xff]
    %v797 = vld [vmem:[#allocation8 + $0x1120] sm:$0xff]
    %v798 = vld [vmem:[#allocation8 + $0x1128] sm:$0xff]
    %v799 = vld [vmem:[#allocation8 + $0x1130] sm:$0xff]
    %v800 = vld [vmem:[#allocation8 + $0x1138] sm:$0xff]
    %v801 = vld [vmem:[#allocation8 + $0x1140] sm:$0xff]
    %v802 = vld [vmem:[#allocation8 + $0x1148] sm:$0xff]
    %v803 = vld [vmem:[#allocation8 + $0x1150] sm:$0xff]
    %v804 = vld [vmem:[#allocation8 + $0x1158] sm:$0xff]
    %v805 = vld [vmem:[#allocation8 + $0x1160] sm:$0xff]
    %v806 = vld [vmem:[#allocation8 + $0x1168] sm:$0xff]
    %v807 = vld [vmem:[#allocation8 + $0x1170] sm:$0xff]
    %v808 = vld [vmem:[#allocation8 + $0x1178] sm:$0xff]
    %v809 = vld [vmem:[#allocation8 + $0x1180] sm:$0xff]
    %v810 = vld [vmem:[#allocation8 + $0x1188] sm:$0xff]
    %v811 = vld [vmem:[#allocation8 + $0x1190] sm:$0xff]
    %v812 = vld [vmem:[#allocation8 + $0x1198] sm:$0xff]
    %v813 = vld [vmem:[#allocation8 + $0x11a0] sm:$0xff]
    %v814 = vld [vmem:[#allocation8 + $0x11a8] sm:$0xff]
    %v815 = vld [vmem:[#allocation8 + $0x11b0] sm:$0xff]
    %v816 = vld [vmem:[#allocation8 + $0x11b8] sm:$0xff]
    %v817 = vld [vmem:[#allocation8 + $0x11c0] sm:$0xff]
    %v818 = vld [vmem:[#allocation8 + $0x11c8] sm:$0xff]
    %v819 = vld [vmem:[#allocation8 + $0x11d0] sm:$0xff]
    %v820 = vld [vmem:[#allocation8 + $0x11d8] sm:$0xff]
    %v821 = vld [vmem:[#allocation8 + $0x11e0] sm:$0xff]
    %v822 = vld [vmem:[#allocation8 + $0x11e8] sm:$0xff]
    %v823 = vld [vmem:[#allocation8 + $0x11f0] sm:$0xff]
    %v824 = vld [vmem:[#allocation8 + $0x11f8] sm:$0xff]
    %v825 = vld [vmem:[#allocation10] sm:$0x77]
    %v826 = vld [vmem:[#allocation10 + $0x8] sm:$0x77]
    %v827 = vld [vmem:[#allocation10 + $0x10] sm:$0x77]
    %v831 = vcombine.high %v825, %v825
    %v832 = vcombine.high %v826, %v826
    %v833 = vcombine.high %v827, %v827
    %vm834 = vcmask 23552
    %v836 = vsel %vm834, %v246, 0
    %vm838 = vcmask 1042432
    %v839 = vsel %vm838, %v825, 0
    %v841 = vsel %vm838, %v831, 0
    %v843 = vsel %vm838, %v826, 0
    %v845 = vsel %vm838, %v832, 0
    %v847 = vsel %vm838, %v827, 0
    %v849 = vsel %vm838, %v833, 0
    %851 = vmatprep.subr.mxu0 %v841
    %852 = vmatpush1.msra.mxu0 %v839
    %853 = vmatprep.subr.mxu0 0.0
    %854 = vmatpush1.msra.mxu0 0.0
    %855 = vmatprep.subr.mxu0 0.0
    %856 = vmatpush1.msra.mxu0 0.0
    %857 = vmatprep.subr.mxu0 0.0
    %858 = vmatpush1.msra.mxu0 0.0
    %859 = vmatprep.subr.mxu0 0.0
    %860 = vmatpush1.msra.mxu0 0.0
    %861 = vmatprep.subr.mxu0 0.0
    %862 = vmatpush1.msra.mxu0 0.0
    %863 = vmatprep.subr.mxu0 0.0
    %864 = vmatpush1.msra.mxu0 0.0
    %865 = vmatprep.subr.mxu0 0.0
    %866 = vmatpush1.msra.mxu0 0.0
    %867 = vmatprep.subr.mxu0 0.0
    %868 = vmatpush1.msra.mxu0 0.0
    %869 = vmatprep.subr.mxu0 0.0
    %870 = vmatpush1.msra.mxu0 0.0
    %871 = vmatprep.subr.mxu0 0.0
    %872 = vmatpush1.msra.mxu0 0.0
    %873 = vmatprep.subr.mxu0 0.0
    %874 = vmatpush1.msra.mxu0 0.0
    %875 = vmatprep.subr.mxu0 0.0
    %876 = vmatpush1.msra.mxu0 0.0
    %877 = vmatprep.subr.mxu0 0.0
    %878 = vmatpush1.msra.mxu0 0.0
    %879 = vmatprep.subr.mxu0 0.0
    %880 = vmatpush1.msra.mxu0 0.0
    %881 = vmatprep.subr.mxu0 0.0
    %882 = vmatpush1.msra.mxu0 0.0
    %883 = vmatprep.subr.mxu0 0.0
    %884 = vmatpush1.msra.mxu0 0.0
    %885 = vmatprep.subr.mxu0 0.0
    %886 = vmatpush1.msra.mxu0 0.0
    %887 = vmatprep.subr.mxu0 0.0
    %888 = vmatpush1.msra.mxu0 0.0
    %889 = vmatprep.subr.mxu0 0.0
    %890 = vmatpush1.msra.mxu0 0.0
    %891 = vmatprep.subr.mxu0 0.0
    %892 = vmatpush1.msra.mxu0 0.0
    %893 = vmatprep.subr.mxu0 0.0
    %894 = vmatpush1.msra.mxu0 0.0
    %895 = vmatprep.subr.mxu0 0.0
    %896 = vmatpush1.msra.mxu0 0.0
    %897 = vmatprep.subr.mxu0 0.0
    %898 = vmatpush1.msra.mxu0 0.0
    %899 = vmatprep.subr.mxu0 0.0
    %900 = vmatpush1.msra.mxu0 0.0
    %901 = vmatprep.subr.mxu0 0.0
    %902 = vmatpush1.msra.mxu0 0.0
    %903 = vmatprep.subr.mxu0 0.0
    %904 = vmatpush1.msra.mxu0 0.0
    %905 = vmatprep.subr.mxu0 0.0
    %906 = vmatpush1.msra.mxu0 0.0
    %907 = vmatprep.subr.mxu0 0.0
    %908 = vmatpush1.msra.mxu0 0.0
    %909 = vmatprep.subr.mxu0 0.0
    %910 = vmatpush1.msra.mxu0 0.0
    %911 = vmatprep.subr.mxu0 0.0
    %912 = vmatpush1.msra.mxu0 0.0
    %913 = vmatprep.subr.mxu0 0.0
    %914 = vmatpush1.msra.mxu0 0.0
    %915 = vmatprep.mubr.f32.mxu0 0.0
    %916 = vmatmul.mubr.f32.gmra.mrb[0].mxu0 %v836
    %v917 = vpop.f32.mrb[0].mxu0
    %v918 = vadd.f32 0.0, %v917
    %v919 = vpop.f32.mrb[0].mxu0
    %v920 = vadd.f32 0.0, %v919
    %921 = vdwg.mxu0
    %922 = vmatprep.subr.mxu0 %v845
    %923 = vmatpush1.msra.mxu0 %v843
    %924 = vmatprep.subr.mxu0 0.0
    %925 = vmatpush1.msra.mxu0 0.0
    %926 = vmatprep.subr.mxu0 0.0
    %927 = vmatpush1.msra.mxu0 0.0
    %928 = vmatprep.subr.mxu0 0.0
    %929 = vmatpush1.msra.mxu0 0.0
    %930 = vmatprep.subr.mxu0 0.0
    %931 = vmatpush1.msra.mxu0 0.0
    %932 = vmatprep.subr.mxu0 0.0
    %933 = vmatpush1.msra.mxu0 0.0
    %934 = vmatprep.subr.mxu0 0.0
    %935 = vmatpush1.msra.mxu0 0.0
    %936 = vmatprep.subr.mxu0 0.0
    %937 = vmatpush1.msra.mxu0 0.0
    %938 = vmatprep.subr.mxu0 0.0
    %939 = vmatpush1.msra.mxu0 0.0
    %940 = vmatprep.subr.mxu0 0.0
    %941 = vmatpush1.msra.mxu0 0.0
    %942 = vmatprep.subr.mxu0 0.0
    %943 = vmatpush1.msra.mxu0 0.0
    %944 = vmatprep.subr.mxu0 0.0
    %945 = vmatpush1.msra.mxu0 0.0
    %946 = vmatprep.subr.mxu0 0.0
    %947 = vmatpush1.msra.mxu0 0.0
    %948 = vmatprep.subr.mxu0 0.0
    %949 = vmatpush1.msra.mxu0 0.0
    %950 = vmatprep.subr.mxu0 0.0
    %951 = vmatpush1.msra.mxu0 0.0
    %952 = vmatprep.subr.mxu0 0.0
    %953 = vmatpush1.msra.mxu0 0.0
    %954 = vmatprep.subr.mxu0 0.0
    %955 = vmatpush1.msra.mxu0 0.0
    %956 = vmatprep.subr.mxu0 0.0
    %957 = vmatpush1.msra.mxu0 0.0
    %958 = vmatprep.subr.mxu0 0.0
    %959 = vmatpush1.msra.mxu0 0.0
    %960 = vmatprep.subr.mxu0 0.0
    %961 = vmatpush1.msra.mxu0 0.0
    %962 = vmatprep.subr.mxu0 0.0
    %963 = vmatpush1.msra.mxu0 0.0
    %964 = vmatprep.subr.mxu0 0.0
    %965 = vmatpush1.msra.mxu0 0.0
    %966 = vmatprep.subr.mxu0 0.0
    %967 = vmatpush1.msra.mxu0 0.0
    %968 = vmatprep.subr.mxu0 0.0
    %969 = vmatpush1.msra.mxu0 0.0
    %970 = vmatprep.subr.mxu0 0.0
    %971 = vmatpush1.msra.mxu0 0.0
    %972 = vmatprep.subr.mxu0 0.0
    %973 = vmatpush1.msra.mxu0 0.0
    %974 = vmatprep.subr.mxu0 0.0
    %975 = vmatpush1.msra.mxu0 0.0
    %976 = vmatprep.subr.mxu0 0.0
    %977 = vmatpush1.msra.mxu0 0.0
    %978 = vmatprep.subr.mxu0 0.0
    %979 = vmatpush1.msra.mxu0 0.0
    %980 = vmatprep.subr.mxu0 0.0
    %981 = vmatpush1.msra.mxu0 0.0
    %982 = vmatprep.subr.mxu0 0.0
    %983 = vmatpush1.msra.mxu0 0.0
    %984 = vmatprep.subr.mxu0 0.0
    %985 = vmatpush1.msra.mxu0 0.0
    %986 = vmatprep.mubr.f32.mxu0 0.0
    %987 = vmatmul.mubr.f32.gmra.mrb[0].mxu0 %v836
    %v988 = vpop.f32.mrb[0].mxu0
    %v989 = vadd.f32 0.0, %v988
    %v990 = vpop.f32.mrb[0].mxu0
    %v991 = vadd.f32 0.0, %v990
    %992 = vdwg.mxu0
    %993 = vmatprep.subr.mxu0 %v849
    %994 = vmatpush1.msra.mxu0 %v847
    %995 = vmatprep.subr.mxu0 0.0
    %996 = vmatpush1.msra.mxu0 0.0
    %997 = vmatprep.subr.mxu0 0.0
    %998 = vmatpush1.msra.mxu0 0.0
    %999 = vmatprep.subr.mxu0 0.0
    %1000 = vmatpush1.msra.mxu0 0.0
    %1001 = vmatprep.subr.mxu0 0.0
    %1002 = vmatpush1.msra.mxu0 0.0
    %1003 = vmatprep.subr.mxu0 0.0
    %1004 = vmatpush1.msra.mxu0 0.0
    %1005 = vmatprep.subr.mxu0 0.0
    %1006 = vmatpush1.msra.mxu0 0.0
    %1007 = vmatprep.subr.mxu0 0.0
    %1008 = vmatpush1.msra.mxu0 0.0
    %1009 = vmatprep.subr.mxu0 0.0
    %1010 = vmatpush1.msra.mxu0 0.0
    %1011 = vmatprep.subr.mxu0 0.0
    %1012 = vmatpush1.msra.mxu0 0.0
    %1013 = vmatprep.subr.mxu0 0.0
    %1014 = vmatpush1.msra.mxu0 0.0
    %1015 = vmatprep.subr.mxu0 0.0
    %1016 = vmatpush1.msra.mxu0 0.0
    %1017 = vmatprep.subr.mxu0 0.0
    %1018 = vmatpush1.msra.mxu0 0.0
    %1019 = vmatprep.subr.mxu0 0.0
    %1020 = vmatpush1.msra.mxu0 0.0
    %1021 = vmatprep.subr.mxu0 0.0
    %1022 = vmatpush1.msra.mxu0 0.0
    %1023 = vmatprep.subr.mxu0 0.0
    %1024 = vmatpush1.msra.mxu0 0.0
    %1025 = vmatprep.subr.mxu0 0.0
    %1026 = vmatpush1.msra.mxu0 0.0
    %1027 = vmatprep.subr.mxu0 0.0
    %1028 = vmatpush1.msra.mxu0 0.0
    %1029 = vmatprep.subr.mxu0 0.0
    %1030 = vmatpush1.msra.mxu0 0.0
    %1031 = vmatprep.subr.mxu0 0.0
    %1032 = vmatpush1.msra.mxu0 0.0
    %1033 = vmatprep.subr.mxu0 0.0
    %1034 = vmatpush1.msra.mxu0 0.0
    %1035 = vmatprep.subr.mxu0 0.0
    %1036 = vmatpush1.msra.mxu0 0.0
    %1037 = vmatprep.subr.mxu0 0.0
    %1038 = vmatpush1.msra.mxu0 0.0
    %1039 = vmatprep.subr.mxu0 0.0
    %1040 = vmatpush1.msra.mxu0 0.0
    %1041 = vmatprep.subr.mxu0 0.0
    %1042 = vmatpush1.msra.mxu0 0.0
    %1043 = vmatprep.subr.mxu0 0.0
    %1044 = vmatpush1.msra.mxu0 0.0
    %1045 = vmatprep.subr.mxu0 0.0
    %1046 = vmatpush1.msra.mxu0 0.0
    %1047 = vmatprep.subr.mxu0 0.0
    %1048 = vmatpush1.msra.mxu0 0.0
    %1049 = vmatprep.subr.mxu0 0.0
    %1050 = vmatpush1.msra.mxu0 0.0
    %1051 = vmatprep.subr.mxu0 0.0
    %1052 = vmatpush1.msra.mxu0 0.0
    %1053 = vmatprep.subr.mxu0 0.0
    %1054 = vmatpush1.msra.mxu0 0.0
    %1055 = vmatprep.subr.mxu0 0.0
    %1056 = vmatpush1.msra.mxu0 0.0
    %1057 = vmatprep.mubr.f32.mxu0 0.0
    %1058 = vmatmul.mubr.f32.gmra.mrb[0].mxu0 %v836
    %v1059 = vpop.f32.mrb[0].mxu0
    %v1060 = vadd.f32 0.0, %v1059
    %v1061 = vpop.f32.mrb[0].mxu0
    %v1062 = vadd.f32 0.0, %v1061
    %1063 = vdwg.mxu0
    %v1066 = vcombine.high %v247, %v247
    %v1068 = vunpack.c.l.s4 1983009808
    %v1069 = vunpack.c.0.s8 %v1068
    %v1070 = vlaneseq
    %v1071 = vshrl.u32 %v1070, 7
    %v1072 = vsub.s32 %v1069, %v1071
    %v1073 = vrot.slane %v247, %v1072
    %v1075 = vunpack.c.l.s4 1983009808
    %v1076 = vunpack.c.0.s8 %v1075
    %v1077 = vlaneseq
    %v1078 = vshrl.u32 %v1077, 7
    %v1079 = vsub.s32 %v1076, %v1078
    %v1080 = vrot.slane %v1066, %v1079
    %v1081 = vcombine.high %v1073, %v1073
    %v1082 = vcombine.high %v1080, %v1080
    %v1084 = vunpack.c.l.s4 1983009808
    %v1085 = vunpack.c.0.s8 %v1084
    %v1086 = vlaneseq
    %v1087 = vshrl.u32 %v1086, 7
    %v1088 = vsub.s32 %v1085, %v1087
    %v1089 = vrot.slane %v248, %v1088
    %v1090 = vcombine.high %v1089, %v1089
    %1097 = vmatprep.subr.mxu0 %v250
    %1098 = vmatpush1.msra.mxu0 %v249
    %1099 = vmatprep.subr.mxu0 %v256
    %1100 = vmatpush1.msra.mxu0 %v255
    %1101 = vmatprep.subr.mxu0 %v262
    %1102 = vmatpush1.msra.mxu0 %v261
    %1103 = vmatprep.subr.mxu0 %v268
    %1104 = vmatpush1.msra.mxu0 %v267
    %1105 = vmatprep.subr.mxu0 %v274
    %1106 = vmatpush1.msra.mxu0 %v273
    %1107 = vmatprep.subr.mxu0 %v280
    %1108 = vmatpush1.msra.mxu0 %v279
    %1109 = vmatprep.subr.mxu0 %v286
    %1110 = vmatpush1.msra.mxu0 %v285
    %1111 = vmatprep.subr.mxu0 %v292
    %1112 = vmatpush1.msra.mxu0 %v291
    %1113 = vmatprep.subr.mxu0 %v298
    %1114 = vmatpush1.msra.mxu0 %v297
    %1115 = vmatprep.subr.mxu0 %v304
    %1116 = vmatpush1.msra.mxu0 %v303
    %1117 = vmatprep.subr.mxu0 %v310
    %1118 = vmatpush1.msra.mxu0 %v309
    %1119 = vmatprep.subr.mxu0 %v316
    %1120 = vmatpush1.msra.mxu0 %v315
    %1121 = vmatprep.subr.mxu0 %v322
    %1122 = vmatpush1.msra.mxu0 %v321
    %1123 = vmatprep.subr.mxu0 %v328
    %1124 = vmatpush1.msra.mxu0 %v327
    %1125 = vmatprep.subr.mxu0 %v334
    %1126 = vmatpush1.msra.mxu0 %v333
    %1127 = vmatprep.subr.mxu0 %v340
    %1128 = vmatpush1.msra.mxu0 %v339
    %1129 = vmatprep.subr.mxu0 %v346
    %1130 = vmatpush1.msra.mxu0 %v345
    %1131 = vmatprep.subr.mxu0 %v352
    %1132 = vmatpush1.msra.mxu0 %v351
    %1133 = vmatprep.subr.mxu0 %v358
    %1134 = vmatpush1.msra.mxu0 %v357
    %1135 = vmatprep.subr.mxu0 %v364
    %1136 = vmatpush1.msra.mxu0 %v363
    %1137 = vmatprep.subr.mxu0 %v370
    %1138 = vmatpush1.msra.mxu0 %v369
    %1139 = vmatprep.subr.mxu0 %v376
    %1140 = vmatpush1.msra.mxu0 %v375
    %1141 = vmatprep.subr.mxu0 %v382
    %1142 = vmatpush1.msra.mxu0 %v381
    %1143 = vmatprep.subr.mxu0 %v388
    %1144 = vmatpush1.msra.mxu0 %v387
    %1145 = vmatprep.subr.mxu0 %v394
    %1146 = vmatpush1.msra.mxu0 %v393
    %1147 = vmatprep.subr.mxu0 %v400
    %1148 = vmatpush1.msra.mxu0 %v399
    %1149 = vmatprep.subr.mxu0 %v406
    %1150 = vmatpush1.msra.mxu0 %v405
    %1151 = vmatprep.subr.mxu0 %v412
    %1152 = vmatpush1.msra.mxu0 %v411
    %1153 = vmatprep.subr.mxu0 %v418
    %1154 = vmatpush1.msra.mxu0 %v417
    %1155 = vmatprep.subr.mxu0 %v424
    %1156 = vmatpush1.msra.mxu0 %v423
    %1157 = vmatprep.subr.mxu0 %v430
    %1158 = vmatpush1.msra.mxu0 %v429
    %1159 = vmatprep.subr.mxu0 %v436
    %1160 = vmatpush1.msra.mxu0 %v435
    %1161 = vmatprep.mubr.f32.mxu0 %v1081
    %1162 = vmatmul.mubr.f32.gmra.mrb[0].mxu0 %v1073
    %v1163 = vpop.f32.mrb[0].mxu0
    %v1164 = vadd.f32 %v918, %v1163
    %v1165 = vpop.f32.mrb[0].mxu0
    %v1166 = vadd.f32 %v920, %v1165
    %1167 = vdwg.mxu0
    %1168 = vmatprep.subr.mxu0 %v442
    %1169 = vmatpush1.msra.mxu0 %v441
    %1170 = vmatprep.subr.mxu0 %v448
    %1171 = vmatpush1.msra.mxu0 %v447
    %1172 = vmatprep.subr.mxu0 %v454
    %1173 = vmatpush1.msra.mxu0 %v453
    %1174 = vmatprep.subr.mxu0 %v460
    %1175 = vmatpush1.msra.mxu0 %v459
    %1176 = vmatprep.subr.mxu0 %v466
    %1177 = vmatpush1.msra.mxu0 %v465
    %1178 = vmatprep.subr.mxu0 %v472
    %1179 = vmatpush1.msra.mxu0 %v471
    %1180 = vmatprep.subr.mxu0 %v478
    %1181 = vmatpush1.msra.mxu0 %v477
    %1182 = vmatprep.subr.mxu0 %v484
    %1183 = vmatpush1.msra.mxu0 %v483
    %1184 = vmatprep.subr.mxu0 %v490
    %1185 = vmatpush1.msra.mxu0 %v489
    %1186 = vmatprep.subr.mxu0 %v496
    %1187 = vmatpush1.msra.mxu0 %v495
    %1188 = vmatprep.subr.mxu0 %v502
    %1189 = vmatpush1.msra.mxu0 %v501
    %1190 = vmatprep.subr.mxu0 %v508
    %1191 = vmatpush1.msra.mxu0 %v507
    %1192 = vmatprep.subr.mxu0 %v514
    %1193 = vmatpush1.msra.mxu0 %v513
    %1194 = vmatprep.subr.mxu0 %v520
    %1195 = vmatpush1.msra.mxu0 %v519
    %1196 = vmatprep.subr.mxu0 %v526
    %1197 = vmatpush1.msra.mxu0 %v525
    %1198 = vmatprep.subr.mxu0 %v532
    %1199 = vmatpush1.msra.mxu0 %v531
    %1200 = vmatprep.subr.mxu0 %v538
    %1201 = vmatpush1.msra.mxu0 %v537
    %1202 = vmatprep.subr.mxu0 %v544
    %1203 = vmatpush1.msra.mxu0 %v543
    %1204 = vmatprep.subr.mxu0 %v550
    %1205 = vmatpush1.msra.mxu0 %v549
    %1206 = vmatprep.subr.mxu0 %v556
    %1207 = vmatpush1.msra.mxu0 %v555
    %1208 = vmatprep.subr.mxu0 %v562
    %1209 = vmatpush1.msra.mxu0 %v561
    %1210 = vmatprep.subr.mxu0 %v568
    %1211 = vmatpush1.msra.mxu0 %v567
    %1212 = vmatprep.subr.mxu0 %v574
    %1213 = vmatpush1.msra.mxu0 %v573
    %1214 = vmatprep.subr.mxu0 %v580
    %1215 = vmatpush1.msra.mxu0 %v579
    %1216 = vmatprep.subr.mxu0 %v586
    %1217 = vmatpush1.msra.mxu0 %v585
    %1218 = vmatprep.subr.mxu0 %v592
    %1219 = vmatpush1.msra.mxu0 %v591
    %1220 = vmatprep.subr.mxu0 %v598
    %1221 = vmatpush1.msra.mxu0 %v597
    %1222 = vmatprep.subr.mxu0 %v604
    %1223 = vmatpush1.msra.mxu0 %v603
    %1224 = vmatprep.subr.mxu0 %v610
    %1225 = vmatpush1.msra.mxu0 %v609
    %1226 = vmatprep.subr.mxu0 %v616
    %1227 = vmatpush1.msra.mxu0 %v615
    %1228 = vmatprep.subr.mxu0 %v622
    %1229 = vmatpush1.msra.mxu0 %v621
    %1230 = vmatprep.subr.mxu0 %v628
    %1231 = vmatpush1.msra.mxu0 %v627
    %1232 = vmatprep.mubr.f32.mxu0 %v1082
    %1233 = vmatmul.mubr.f32.gmra.mrb[0].mxu0 %v1080
    %v1234 = vpop.f32.mrb[0].mxu0
    %v1235 = vadd.f32 %v1164, %v1234
    %v1236 = vpop.f32.mrb[0].mxu0
    %v1237 = vadd.f32 %v1166, %v1236
    %1238 = vdwg.mxu0
    %1239 = vmatprep.subr.mxu0 %v634
    %1240 = vmatpush1.msra.mxu0 %v633
    %1241 = vmatprep.subr.mxu0 %v640
    %1242 = vmatpush1.msra.mxu0 %v639
    %1243 = vmatprep.subr.mxu0 %v646
    %1244 = vmatpush1.msra.mxu0 %v645
    %1245 = vmatprep.subr.mxu0 %v652
    %1246 = vmatpush1.msra.mxu0 %v651
    %1247 = vmatprep.subr.mxu0 %v658
    %1248 = vmatpush1.msra.mxu0 %v657
    %1249 = vmatprep.subr.mxu0 %v664
    %1250 = vmatpush1.msra.mxu0 %v663
    %1251 = vmatprep.subr.mxu0 %v670
    %1252 = vmatpush1.msra.mxu0 %v669
    %1253 = vmatprep.subr.mxu0 %v676
    %1254 = vmatpush1.msra.mxu0 %v675
    %1255 = vmatprep.subr.mxu0 %v682
    %1256 = vmatpush1.msra.mxu0 %v681
    %1257 = vmatprep.subr.mxu0 %v688
    %1258 = vmatpush1.msra.mxu0 %v687
    %1259 = vmatprep.subr.mxu0 %v694
    %1260 = vmatpush1.msra.mxu0 %v693
    %1261 = vmatprep.subr.mxu0 %v700
    %1262 = vmatpush1.msra.mxu0 %v699
    %1263 = vmatprep.subr.mxu0 %v706
    %1264 = vmatpush1.msra.mxu0 %v705
    %1265 = vmatprep.subr.mxu0 %v712
    %1266 = vmatpush1.msra.mxu0 %v711
    %1267 = vmatprep.subr.mxu0 %v718
    %1268 = vmatpush1.msra.mxu0 %v717
    %1269 = vmatprep.subr.mxu0 %v724
    %1270 = vmatpush1.msra.mxu0 %v723
    %1271 = vmatprep.subr.mxu0 %v730
    %1272 = vmatpush1.msra.mxu0 %v729
    %1273 = vmatprep.subr.mxu0 %v736
    %1274 = vmatpush1.msra.mxu0 %v735
    %1275 = vmatprep.subr.mxu0 %v742
    %1276 = vmatpush1.msra.mxu0 %v741
    %1277 = vmatprep.subr.mxu0 %v748
    %1278 = vmatpush1.msra.mxu0 %v747
    %1279 = vmatprep.subr.mxu0 %v754
    %1280 = vmatpush1.msra.mxu0 %v753
    %1281 = vmatprep.subr.mxu0 %v760
    %1282 = vmatpush1.msra.mxu0 %v759
    %1283 = vmatprep.subr.mxu0 %v766
    %1284 = vmatpush1.msra.mxu0 %v765
    %1285 = vmatprep.subr.mxu0 %v772
    %1286 = vmatpush1.msra.mxu0 %v771
    %1287 = vmatprep.subr.mxu0 %v778
    %1288 = vmatpush1.msra.mxu0 %v777
    %1289 = vmatprep.subr.mxu0 %v784
    %1290 = vmatpush1.msra.mxu0 %v783
    %1291 = vmatprep.subr.mxu0 %v790
    %1292 = vmatpush1.msra.mxu0 %v789
    %1293 = vmatprep.subr.mxu0 %v796
    %1294 = vmatpush1.msra.mxu0 %v795
    %1295 = vmatprep.subr.mxu0 %v802
    %1296 = vmatpush1.msra.mxu0 %v801
    %1297 = vmatprep.subr.mxu0 %v808
    %1298 = vmatpush1.msra.mxu0 %v807
    %1299 = vmatprep.subr.mxu0 %v814
    %1300 = vmatpush1.msra.mxu0 %v813
    %1301 = vmatprep.subr.mxu0 %v820
    %1302 = vmatpush1.msra.mxu0 %v819
    %1303 = vmatprep.mubr.f32.mxu0 %v1090
    %1304 = vmatmul.mubr.f32.gmra.mrb[0].mxu0 %v1089
    %v1305 = vpop.f32.mrb[0].mxu0
    %v1306 = vadd.f32 %v1235, %v1305
    %v1307 = vpop.f32.mrb[0].mxu0
    %v1308 = vadd.f32 %v1237, %v1307
    %1309 = vdwg.mxu0
    %1310 = vmatprep.subr.mxu0 %v252
    %1311 = vmatpush1.msra.mxu0 %v251
    %1312 = vmatprep.subr.mxu0 %v258
    %1313 = vmatpush1.msra.mxu0 %v257
    %1314 = vmatprep.subr.mxu0 %v264
    %1315 = vmatpush1.msra.mxu0 %v263
    %1316 = vmatprep.subr.mxu0 %v270
    %1317 = vmatpush1.msra.mxu0 %v269
    %1318 = vmatprep.subr.mxu0 %v276
    %1319 = vmatpush1.msra.mxu0 %v275
    %1320 = vmatprep.subr.mxu0 %v282
    %1321 = vmatpush1.msra.mxu0 %v281
    %1322 = vmatprep.subr.mxu0 %v288
    %1323 = vmatpush1.msra.mxu0 %v287
    %1324 = vmatprep.subr.mxu0 %v294
    %1325 = vmatpush1.msra.mxu0 %v293
    %1326 = vmatprep.subr.mxu0 %v300
    %1327 = vmatpush1.msra.mxu0 %v299
    %1328 = vmatprep.subr.mxu0 %v306
    %1329 = vmatpush1.msra.mxu0 %v305
    %1330 = vmatprep.subr.mxu0 %v312
    %1331 = vmatpush1.msra.mxu0 %v311
    %1332 = vmatprep.subr.mxu0 %v318
    %1333 = vmatpush1.msra.mxu0 %v317
    %1334 = vmatprep.subr.mxu0 %v324
    %1335 = vmatpush1.msra.mxu0 %v323
    %1336 = vmatprep.subr.mxu0 %v330
    %1337 = vmatpush1.msra.mxu0 %v329
    %1338 = vmatprep.subr.mxu0 %v336
    %1339 = vmatpush1.msra.mxu0 %v335
    %1340 = vmatprep.subr.mxu0 %v342
    %1341 = vmatpush1.msra.mxu0 %v341
    %1342 = vmatprep.subr.mxu0 %v348
    %1343 = vmatpush1.msra.mxu0 %v347
    %1344 = vmatprep.subr.mxu0 %v354
    %1345 = vmatpush1.msra.mxu0 %v353
    %1346 = vmatprep.subr.mxu0 %v360
    %1347 = vmatpush1.msra.mxu0 %v359
    %1348 = vmatprep.subr.mxu0 %v366
    %1349 = vmatpush1.msra.mxu0 %v365
    %1350 = vmatprep.subr.mxu0 %v372
    %1351 = vmatpush1.msra.mxu0 %v371
    %1352 = vmatprep.subr.mxu0 %v378
    %1353 = vmatpush1.msra.mxu0 %v377
    %1354 = vmatprep.subr.mxu0 %v384
    %1355 = vmatpush1.msra.mxu0 %v383
    %1356 = vmatprep.subr.mxu0 %v390
    %1357 = vmatpush1.msra.mxu0 %v389
    %1358 = vmatprep.subr.mxu0 %v396
    %1359 = vmatpush1.msra.mxu0 %v395
    %1360 = vmatprep.subr.mxu0 %v402
    %1361 = vmatpush1.msra.mxu0 %v401
    %1362 = vmatprep.subr.mxu0 %v408
    %1363 = vmatpush1.msra.mxu0 %v407
    %1364 = vmatprep.subr.mxu0 %v414
    %1365 = vmatpush1.msra.mxu0 %v413
    %1366 = vmatprep.subr.mxu0 %v420
    %1367 = vmatpush1.msra.mxu0 %v419
    %1368 = vmatprep.subr.mxu0 %v426
    %1369 = vmatpush1.msra.mxu0 %v425
    %1370 = vmatprep.subr.mxu0 %v432
    %1371 = vmatpush1.msra.mxu0 %v431
    %1372 = vmatprep.subr.mxu0 %v438
    %1373 = vmatpush1.msra.mxu0 %v437
    %1374 = vmatprep.mubr.f32.mxu0 %v1081
    %1375 = vmatmul.mubr.f32.gmra.mrb[0].mxu0 %v1073
    %v1376 = vpop.f32.mrb[0].mxu0
    %v1377 = vadd.f32 %v989, %v1376
    %v1378 = vpop.f32.mrb[0].mxu0
    %v1379 = vadd.f32 %v991, %v1378
    %1380 = vdwg.mxu0
    %1381 = vmatprep.subr.mxu0 %v444
    %1382 = vmatpush1.msra.mxu0 %v443
    %1383 = vmatprep.subr.mxu0 %v450
    %1384 = vmatpush1.msra.mxu0 %v449
    %1385 = vmatprep.subr.mxu0 %v456
    %1386 = vmatpush1.msra.mxu0 %v455
    %1387 = vmatprep.subr.mxu0 %v462
    %1388 = vmatpush1.msra.mxu0 %v461
    %1389 = vmatprep.subr.mxu0 %v468
    %1390 = vmatpush1.msra.mxu0 %v467
    %1391 = vmatprep.subr.mxu0 %v474
    %1392 = vmatpush1.msra.mxu0 %v473
    %1393 = vmatprep.subr.mxu0 %v480
    %1394 = vmatpush1.msra.mxu0 %v479
    %1395 = vmatprep.subr.mxu0 %v486
    %1396 = vmatpush1.msra.mxu0 %v485
    %1397 = vmatprep.subr.mxu0 %v492
    %1398 = vmatpush1.msra.mxu0 %v491
    %1399 = vmatprep.subr.mxu0 %v498
    %1400 = vmatpush1.msra.mxu0 %v497
    %1401 = vmatprep.subr.mxu0 %v504
    %1402 = vmatpush1.msra.mxu0 %v503
    %1403 = vmatprep.subr.mxu0 %v510
    %1404 = vmatpush1.msra.mxu0 %v509
    %1405 = vmatprep.subr.mxu0 %v516
    %1406 = vmatpush1.msra.mxu0 %v515
    %1407 = vmatprep.subr.mxu0 %v522
    %1408 = vmatpush1.msra.mxu0 %v521
    %1409 = vmatprep.subr.mxu0 %v528
    %1410 = vmatpush1.msra.mxu0 %v527
    %1411 = vmatprep.subr.mxu0 %v534
    %1412 = vmatpush1.msra.mxu0 %v533
    %1413 = vmatprep.subr.mxu0 %v540
    %1414 = vmatpush1.msra.mxu0 %v539
    %1415 = vmatprep.subr.mxu0 %v546
    %1416 = vmatpush1.msra.mxu0 %v545
    %1417 = vmatprep.subr.mxu0 %v552
    %1418 = vmatpush1.msra.mxu0 %v551
    %1419 = vmatprep.subr.mxu0 %v558
    %1420 = vmatpush1.msra.mxu0 %v557
    %1421 = vmatprep.subr.mxu0 %v564
    %1422 = vmatpush1.msra.mxu0 %v563
    %1423 = vmatprep.subr.mxu0 %v570
    %1424 = vmatpush1.msra.mxu0 %v569
    %1425 = vmatprep.subr.mxu0 %v576
    %1426 = vmatpush1.msra.mxu0 %v575
    %1427 = vmatprep.subr.mxu0 %v582
    %1428 = vmatpush1.msra.mxu0 %v581
    %1429 = vmatprep.subr.mxu0 %v588
    %1430 = vmatpush1.msra.mxu0 %v587
    %1431 = vmatprep.subr.mxu0 %v594
    %1432 = vmatpush1.msra.mxu0 %v593
    %1433 = vmatprep.subr.mxu0 %v600
    %1434 = vmatpush1.msra.mxu0 %v599
    %1435 = vmatprep.subr.mxu0 %v606
    %1436 = vmatpush1.msra.mxu0 %v605
    %1437 = vmatprep.subr.mxu0 %v612
    %1438 = vmatpush1.msra.mxu0 %v611
    %1439 = vmatprep.subr.mxu0 %v618
    %1440 = vmatpush1.msra.mxu0 %v617
    %1441 = vmatprep.subr.mxu0 %v624
    %1442 = vmatpush1.msra.mxu0 %v623
    %1443 = vmatprep.subr.mxu0 %v630
    %1444 = vmatpush1.msra.mxu0 %v629
    %1445 = vmatprep.mubr.f32.mxu0 %v1082
    %1446 = vmatmul.mubr.f32.gmra.mrb[0].mxu0 %v1080
    %v1447 = vpop.f32.mrb[0].mxu0
    %v1448 = vadd.f32 %v1377, %v1447
    %v1449 = vpop.f32.mrb[0].mxu0
    %v1450 = vadd.f32 %v1379, %v1449
    %1451 = vdwg.mxu0
    %1452 = vmatprep.subr.mxu0 %v636
    %1453 = vmatpush1.msra.mxu0 %v635
    %1454 = vmatprep.subr.mxu0 %v642
    %1455 = vmatpush1.msra.mxu0 %v641
    %1456 = vmatprep.subr.mxu0 %v648
    %1457 = vmatpush1.msra.mxu0 %v647
    %1458 = vmatprep.subr.mxu0 %v654
    %1459 = vmatpush1.msra.mxu0 %v653
    %1460 = vmatprep.subr.mxu0 %v660
    %1461 = vmatpush1.msra.mxu0 %v659
    %1462 = vmatprep.subr.mxu0 %v666
    %1463 = vmatpush1.msra.mxu0 %v665
    %1464 = vmatprep.subr.mxu0 %v672
    %1465 = vmatpush1.msra.mxu0 %v671
    %1466 = vmatprep.subr.mxu0 %v678
    %1467 = vmatpush1.msra.mxu0 %v677
    %1468 = vmatprep.subr.mxu0 %v684
    %1469 = vmatpush1.msra.mxu0 %v683
    %1470 = vmatprep.subr.mxu0 %v690
    %1471 = vmatpush1.msra.mxu0 %v689
    %1472 = vmatprep.subr.mxu0 %v696
    %1473 = vmatpush1.msra.mxu0 %v695
    %1474 = vmatprep.subr.mxu0 %v702
    %1475 = vmatpush1.msra.mxu0 %v701
    %1476 = vmatprep.subr.mxu0 %v708
    %1477 = vmatpush1.msra.mxu0 %v707
    %1478 = vmatprep.subr.mxu0 %v714
    %1479 = vmatpush1.msra.mxu0 %v713
    %1480 = vmatprep.subr.mxu0 %v720
    %1481 = vmatpush1.msra.mxu0 %v719
    %1482 = vmatprep.subr.mxu0 %v726
    %1483 = vmatpush1.msra.mxu0 %v725
    %1484 = vmatprep.subr.mxu0 %v732
    %1485 = vmatpush1.msra.mxu0 %v731
    %1486 = vmatprep.subr.mxu0 %v738
    %1487 = vmatpush1.msra.mxu0 %v737
    %1488 = vmatprep.subr.mxu0 %v744
    %1489 = vmatpush1.msra.mxu0 %v743
    %1490 = vmatprep.subr.mxu0 %v750
    %1491 = vmatpush1.msra.mxu0 %v749
    %1492 = vmatprep.subr.mxu0 %v756
    %1493 = vmatpush1.msra.mxu0 %v755
    %1494 = vmatprep.subr.mxu0 %v762
    %1495 = vmatpush1.msra.mxu0 %v761
    %1496 = vmatprep.subr.mxu0 %v768
    %1497 = vmatpush1.msra.mxu0 %v767
    %1498 = vmatprep.subr.mxu0 %v774
    %1499 = vmatpush1.msra.mxu0 %v773
    %1500 = vmatprep.subr.mxu0 %v780
    %1501 = vmatpush1.msra.mxu0 %v779
    %1502 = vmatprep.subr.mxu0 %v786
    %1503 = vmatpush1.msra.mxu0 %v785
    %1504 = vmatprep.subr.mxu0 %v792
    %1505 = vmatpush1.msra.mxu0 %v791
    %1506 = vmatprep.subr.mxu0 %v798
    %1507 = vmatpush1.msra.mxu0 %v797
    %1508 = vmatprep.subr.mxu0 %v804
    %1509 = vmatpush1.msra.mxu0 %v803
    %1510 = vmatprep.subr.mxu0 %v810
    %1511 = vmatpush1.msra.mxu0 %v809
    %1512 = vmatprep.subr.mxu0 %v816
    %1513 = vmatpush1.msra.mxu0 %v815
    %1514 = vmatprep.subr.mxu0 %v822
    %1515 = vmatpush1.msra.mxu0 %v821
    %1516 = vmatprep.mubr.f32.mxu0 %v1090
    %1517 = vmatmul.mubr.f32.gmra.mrb[0].mxu0 %v1089
    %v1518 = vpop.f32.mrb[0].mxu0
    %v1519 = vadd.f32 %v1448, %v1518
    %v1520 = vpop.f32.mrb[0].mxu0
    %v1521 = vadd.f32 %v1450, %v1520
    %1522 = vdwg.mxu0
    %1523 = vmatprep.subr.mxu0 %v254
    %1524 = vmatpush1.msra.mxu0 %v253
    %1525 = vmatprep.subr.mxu0 %v260
    %1526 = vmatpush1.msra.mxu0 %v259
    %1527 = vmatprep.subr.mxu0 %v266
    %1528 = vmatpush1.msra.mxu0 %v265
    %1529 = vmatprep.subr.mxu0 %v272
    %1530 = vmatpush1.msra.mxu0 %v271
    %1531 = vmatprep.subr.mxu0 %v278
    %1532 = vmatpush1.msra.mxu0 %v277
    %1533 = vmatprep.subr.mxu0 %v284
    %1534 = vmatpush1.msra.mxu0 %v283
    %1535 = vmatprep.subr.mxu0 %v290
    %1536 = vmatpush1.msra.mxu0 %v289
    %1537 = vmatprep.subr.mxu0 %v296
    %1538 = vmatpush1.msra.mxu0 %v295
    %1539 = vmatprep.subr.mxu0 %v302
    %1540 = vmatpush1.msra.mxu0 %v301
    %1541 = vmatprep.subr.mxu0 %v308
    %1542 = vmatpush1.msra.mxu0 %v307
    %1543 = vmatprep.subr.mxu0 %v314
    %1544 = vmatpush1.msra.mxu0 %v313
    %1545 = vmatprep.subr.mxu0 %v320
    %1546 = vmatpush1.msra.mxu0 %v319
    %1547 = vmatprep.subr.mxu0 %v326
    %1548 = vmatpush1.msra.mxu0 %v325
    %1549 = vmatprep.subr.mxu0 %v332
    %1550 = vmatpush1.msra.mxu0 %v331
    %1551 = vmatprep.subr.mxu0 %v338
    %1552 = vmatpush1.msra.mxu0 %v337
    %1553 = vmatprep.subr.mxu0 %v344
    %1554 = vmatpush1.msra.mxu0 %v343
    %1555 = vmatprep.subr.mxu0 %v350
    %1556 = vmatpush1.msra.mxu0 %v349
    %1557 = vmatprep.subr.mxu0 %v356
    %1558 = vmatpush1.msra.mxu0 %v355
    %1559 = vmatprep.subr.mxu0 %v362
    %1560 = vmatpush1.msra.mxu0 %v361
    %1561 = vmatprep.subr.mxu0 %v368
    %1562 = vmatpush1.msra.mxu0 %v367
    %1563 = vmatprep.subr.mxu0 %v374
    %1564 = vmatpush1.msra.mxu0 %v373
    %1565 = vmatprep.subr.mxu0 %v380
    %1566 = vmatpush1.msra.mxu0 %v379
    %1567 = vmatprep.subr.mxu0 %v386
    %1568 = vmatpush1.msra.mxu0 %v385
    %1569 = vmatprep.subr.mxu0 %v392
    %1570 = vmatpush1.msra.mxu0 %v391
    %1571 = vmatprep.subr.mxu0 %v398
    %1572 = vmatpush1.msra.mxu0 %v397
    %1573 = vmatprep.subr.mxu0 %v404
    %1574 = vmatpush1.msra.mxu0 %v403
    %1575 = vmatprep.subr.mxu0 %v410
    %1576 = vmatpush1.msra.mxu0 %v409
    %1577 = vmatprep.subr.mxu0 %v416
    %1578 = vmatpush1.msra.mxu0 %v415
    %1579 = vmatprep.subr.mxu0 %v422
    %1580 = vmatpush1.msra.mxu0 %v421
    %1581 = vmatprep.subr.mxu0 %v428
    %1582 = vmatpush1.msra.mxu0 %v427
    %1583 = vmatprep.subr.mxu0 %v434
    %1584 = vmatpush1.msra.mxu0 %v433
    %1585 = vmatprep.subr.mxu0 %v440
    %1586 = vmatpush1.msra.mxu0 %v439
    %1587 = vmatprep.mubr.f32.mxu0 %v1081
    %1588 = vmatmul.mubr.f32.gmra.mrb[0].mxu0 %v1073
    %v1589 = vpop.f32.mrb[0].mxu0
    %v1590 = vadd.f32 %v1060, %v1589
    %v1591 = vpop.f32.mrb[0].mxu0
    %v1592 = vadd.f32 %v1062, %v1591
    %1593 = vdwg.mxu0
    %1594 = vmatprep.subr.mxu0 %v446
    %1595 = vmatpush1.msra.mxu0 %v445
    %1596 = vmatprep.subr.mxu0 %v452
    %1597 = vmatpush1.msra.mxu0 %v451
    %1598 = vmatprep.subr.mxu0 %v458
    %1599 = vmatpush1.msra.mxu0 %v457
    %1600 = vmatprep.subr.mxu0 %v464
    %1601 = vmatpush1.msra.mxu0 %v463
    %1602 = vmatprep.subr.mxu0 %v470
    %1603 = vmatpush1.msra.mxu0 %v469
    %1604 = vmatprep.subr.mxu0 %v476
    %1605 = vmatpush1.msra.mxu0 %v475
    %1606 = vmatprep.subr.mxu0 %v482
    %1607 = vmatpush1.msra.mxu0 %v481
    %1608 = vmatprep.subr.mxu0 %v488
    %1609 = vmatpush1.msra.mxu0 %v487
    %1610 = vmatprep.subr.mxu0 %v494
    %1611 = vmatpush1.msra.mxu0 %v493
    %1612 = vmatprep.subr.mxu0 %v500
    %1613 = vmatpush1.msra.mxu0 %v499
    %1614 = vmatprep.subr.mxu0 %v506
    %1615 = vmatpush1.msra.mxu0 %v505
    %1616 = vmatprep.subr.mxu0 %v512
    %1617 = vmatpush1.msra.mxu0 %v511
    %1618 = vmatprep.subr.mxu0 %v518
    %1619 = vmatpush1.msra.mxu0 %v517
    %1620 = vmatprep.subr.mxu0 %v524
    %1621 = vmatpush1.msra.mxu0 %v523
    %1622 = vmatprep.subr.mxu0 %v530
    %1623 = vmatpush1.msra.mxu0 %v529
    %1624 = vmatprep.subr.mxu0 %v536
    %1625 = vmatpush1.msra.mxu0 %v535
    %1626 = vmatprep.subr.mxu0 %v542
    %1627 = vmatpush1.msra.mxu0 %v541
    %1628 = vmatprep.subr.mxu0 %v548
    %1629 = vmatpush1.msra.mxu0 %v547
    %1630 = vmatprep.subr.mxu0 %v554
    %1631 = vmatpush1.msra.mxu0 %v553
    %1632 = vmatprep.subr.mxu0 %v560
    %1633 = vmatpush1.msra.mxu0 %v559
    %1634 = vmatprep.subr.mxu0 %v566
    %1635 = vmatpush1.msra.mxu0 %v565
    %1636 = vmatprep.subr.mxu0 %v572
    %1637 = vmatpush1.msra.mxu0 %v571
    %1638 = vmatprep.subr.mxu0 %v578
    %1639 = vmatpush1.msra.mxu0 %v577
    %1640 = vmatprep.subr.mxu0 %v584
    %1641 = vmatpush1.msra.mxu0 %v583
    %1642 = vmatprep.subr.mxu0 %v590
    %1643 = vmatpush1.msra.mxu0 %v589
    %1644 = vmatprep.subr.mxu0 %v596
    %1645 = vmatpush1.msra.mxu0 %v595
    %1646 = vmatprep.subr.mxu0 %v602
    %1647 = vmatpush1.msra.mxu0 %v601
    %1648 = vmatprep.subr.mxu0 %v608
    %1649 = vmatpush1.msra.mxu0 %v607
    %1650 = vmatprep.subr.mxu0 %v614
    %1651 = vmatpush1.msra.mxu0 %v613
    %1652 = vmatprep.subr.mxu0 %v620
    %1653 = vmatpush1.msra.mxu0 %v619
    %1654 = vmatprep.subr.mxu0 %v626
    %1655 = vmatpush1.msra.mxu0 %v625
    %1656 = vmatprep.subr.mxu0 %v632
    %1657 = vmatpush1.msra.mxu0 %v631
    %1658 = vmatprep.mubr.f32.mxu0 %v1082
    %1659 = vmatmul.mubr.f32.gmra.mrb[0].mxu0 %v1080
    %v1660 = vpop.f32.mrb[0].mxu0
    %v1661 = vadd.f32 %v1590, %v1660
    %v1662 = vpop.f32.mrb[0].mxu0
    %v1663 = vadd.f32 %v1592, %v1662
    %1664 = vdwg.mxu0
    %1665 = vmatprep.subr.mxu0 %v638
    %1666 = vmatpush1.msra.mxu0 %v637
    %1667 = vmatprep.subr.mxu0 %v644
    %1668 = vmatpush1.msra.mxu0 %v643
    %1669 = vmatprep.subr.mxu0 %v650
    %1670 = vmatpush1.msra.mxu0 %v649
    %1671 = vmatprep.subr.mxu0 %v656
    %1672 = vmatpush1.msra.mxu0 %v655
    %1673 = vmatprep.subr.mxu0 %v662
    %1674 = vmatpush1.msra.mxu0 %v661
    %1675 = vmatprep.subr.mxu0 %v668
    %1676 = vmatpush1.msra.mxu0 %v667
    %1677 = vmatprep.subr.mxu0 %v674
    %1678 = vmatpush1.msra.mxu0 %v673
    %1679 = vmatprep.subr.mxu0 %v680
    %1680 = vmatpush1.msra.mxu0 %v679
    %1681 = vmatprep.subr.mxu0 %v686
    %1682 = vmatpush1.msra.mxu0 %v685
    %1683 = vmatprep.subr.mxu0 %v692
    %1684 = vmatpush1.msra.mxu0 %v691
    %1685 = vmatprep.subr.mxu0 %v698
    %1686 = vmatpush1.msra.mxu0 %v697
    %1687 = vmatprep.subr.mxu0 %v704
    %1688 = vmatpush1.msra.mxu0 %v703
    %1689 = vmatprep.subr.mxu0 %v710
    %1690 = vmatpush1.msra.mxu0 %v709
    %1691 = vmatprep.subr.mxu0 %v716
    %1692 = vmatpush1.msra.mxu0 %v715
    %1693 = vmatprep.subr.mxu0 %v722
    %1694 = vmatpush1.msra.mxu0 %v721
    %1695 = vmatprep.subr.mxu0 %v728
    %1696 = vmatpush1.msra.mxu0 %v727
    %1697 = vmatprep.subr.mxu0 %v734
    %1698 = vmatpush1.msra.mxu0 %v733
    %1699 = vmatprep.subr.mxu0 %v740
    %1700 = vmatpush1.msra.mxu0 %v739
    %1701 = vmatprep.subr.mxu0 %v746
    %1702 = vmatpush1.msra.mxu0 %v745
    %1703 = vmatprep.subr.mxu0 %v752
    %1704 = vmatpush1.msra.mxu0 %v751
    %1705 = vmatprep.subr.mxu0 %v758
    %1706 = vmatpush1.msra.mxu0 %v757
    %1707 = vmatprep.subr.mxu0 %v764
    %1708 = vmatpush1.msra.mxu0 %v763
    %1709 = vmatprep.subr.mxu0 %v770
    %1710 = vmatpush1.msra.mxu0 %v769
    %1711 = vmatprep.subr.mxu0 %v776
    %1712 = vmatpush1.msra.mxu0 %v775
    %1713 = vmatprep.subr.mxu0 %v782
    %1714 = vmatpush1.msra.mxu0 %v781
    %1715 = vmatprep.subr.mxu0 %v788
    %1716 = vmatpush1.msra.mxu0 %v787
    %1717 = vmatprep.subr.mxu0 %v794
    %1718 = vmatpush1.msra.mxu0 %v793
    %1719 = vmatprep.subr.mxu0 %v800
    %1720 = vmatpush1.msra.mxu0 %v799
    %1721 = vmatprep.subr.mxu0 %v806
    %1722 = vmatpush1.msra.mxu0 %v805
    %1723 = vmatprep.subr.mxu0 %v812
    %1724 = vmatpush1.msra.mxu0 %v811
    %1725 = vmatprep.subr.mxu0 %v818
    %1726 = vmatpush1.msra.mxu0 %v817
    %1727 = vmatprep.subr.mxu0 %v824
    %1728 = vmatpush1.msra.mxu0 %v823
    %1729 = vmatprep.mubr.f32.mxu0 %v1090
    %1730 = vmatmul.mubr.f32.gmra.mrb[0].mxu0 %v1089
    %v1731 = vpop.f32.mrb[0].mxu0
    %v1732 = vadd.f32 %v1661, %v1731
    %v1733 = vpop.f32.mrb[0].mxu0
    %v1734 = vadd.f32 %v1663, %v1733
    %1735 = vdwg.mxu0
    %v1736 = vld [vmem:[#allocation11] sm:$0x3f]
    %v1738 = vlaneseq
    %v1739 = vshrl.u32 %v1738, 7
    %v1740 = vsub.s32 0, %v1739
    %v1741 = vrot.slane %v1736, %v1740
    %v1742 = vlaneseq
    %v1743 = vshrl.u32 %v1742, 7
    %v1744 = vsub.s32 1, %v1743
    %v1745 = vrot.slane %v1736, %v1744
    %v1746 = vlaneseq
    %v1747 = vshrl.u32 %v1746, 7
    %v1748 = vsub.s32 2, %v1747
    %v1749 = vrot.slane %v1736, %v1748
    %v1750 = vlaneseq
    %v1751 = vshrl.u32 %v1750, 7
    %v1752 = vsub.s32 3, %v1751
    %v1753 = vrot.slane %v1736, %v1752
    %v1754 = vlaneseq
    %v1755 = vshrl.u32 %v1754, 7
    %v1756 = vsub.s32 4, %v1755
    %v1757 = vrot.slane %v1736, %v1756
    %v1758 = vlaneseq
    %v1759 = vshrl.u32 %v1758, 7
    %v1760 = vsub.s32 5, %v1759
    %v1761 = vrot.slane %v1736, %v1760
    %v1768 = vadd.f32 %v1306, %v1741
    %v1769 = vadd.f32 %v1308, %v1745
    %v1770 = vadd.f32 %v1519, %v1749
    %v1771 = vadd.f32 %v1521, %v1753
    %v1772 = vadd.f32 %v1732, %v1757
    %v1773 = vadd.f32 %v1734, %v1761
    %v1774 = vmax.f32 %v1768, 0.0
    %v1775 = vmax.f32 %v1769, 0.0
    %v1776 = vmax.f32 %v1770, 0.0
    %v1777 = vmax.f32 %v1771, 0.0
    %v1778 = vmax.f32 %v1772, 0.0
    %v1779 = vmax.f32 %v1773, 0.0
    %v1780 = vld [vmem:[%s7] sm:$0xff]
    %v1781 = vld [vmem:[%s7 + $0x8] sm:$0xff]
    %v1782 = vld [vmem:[%s7 + $0x10] sm:$0xff]
    %v1783 = vld [vmem:[%s7 + $0x18] sm:$0xff]
    %v1784 = vld [vmem:[%s7 + $0x20] sm:$0xff]
    %v1785 = vld [vmem:[%s7 + $0x28] sm:$0xff]
    %v1786 = vld [vmem:[%s7 + $0x30] sm:$0xff]
    %v1787 = vld [vmem:[%s7 + $0x38] sm:$0xff]
    %v1788 = vld [vmem:[%s7 + $0x40] sm:$0xff]
    %v1789 = vld [vmem:[%s7 + $0x48] sm:$0xff]
    %v1790 = vld [vmem:[%s7 + $0x50] sm:$0xff]
    %v1791 = vld [vmem:[%s7 + $0x58] sm:$0xff]
    %v1792 = vld [vmem:[%s7 + $0x60] sm:$0xff]
    %v1793 = vld [vmem:[%s7 + $0x68] sm:$0xff]
    %v1794 = vld [vmem:[%s7 + $0x70] sm:$0xff]
    %v1795 = vld [vmem:[%s7 + $0x78] sm:$0xff]
    %v1796 = vld [vmem:[%s7 + $0x80] sm:$0xff]
    %v1797 = vld [vmem:[%s7 + $0x88] sm:$0xff]
    %v1798 = vld [vmem:[%s7 + $0x90] sm:$0xff]
    %v1799 = vld [vmem:[%s7 + $0x98] sm:$0xff]
    %v1800 = vld [vmem:[%s7 + $0xa0] sm:$0xff]
    %v1801 = vld [vmem:[%s7 + $0xa8] sm:$0xff]
    %v1802 = vld [vmem:[%s7 + $0xb0] sm:$0xff]
    %v1803 = vld [vmem:[%s7 + $0xb8] sm:$0xff]
    %v1804 = vld [vmem:[%s7 + $0xc0] sm:$0xff]
    %v1805 = vld [vmem:[%s7 + $0xc8] sm:$0xff]
    %v1806 = vld [vmem:[%s7 + $0xd0] sm:$0xff]
    %v1807 = vld [vmem:[%s7 + $0xd8] sm:$0xff]
    %v1808 = vld [vmem:[%s7 + $0xe0] sm:$0xff]
    %v1809 = vld [vmem:[%s7 + $0xe8] sm:$0xff]
    %v1810 = vld [vmem:[%s7 + $0xf0] sm:$0xff]
    %v1811 = vld [vmem:[%s7 + $0xf8] sm:$0xff]
    %v1812 = vld [vmem:[%s7 + $0x100] sm:$0xff]
    %v1813 = vld [vmem:[%s7 + $0x108] sm:$0xff]
    %v1814 = vld [vmem:[%s7 + $0x110] sm:$0xff]
    %v1815 = vld [vmem:[%s7 + $0x118] sm:$0xff]
    %v1816 = vld [vmem:[%s7 + $0x120] sm:$0xff]
    %v1817 = vld [vmem:[%s7 + $0x128] sm:$0xff]
    %v1818 = vld [vmem:[%s7 + $0x130] sm:$0xff]
    %v1819 = vld [vmem:[%s7 + $0x138] sm:$0xff]
    %v1820 = vld [vmem:[%s7 + $0x140] sm:$0xff]
    %v1821 = vld [vmem:[%s7 + $0x148] sm:$0xff]
    %v1822 = vld [vmem:[%s7 + $0x150] sm:$0xff]
    %v1823 = vld [vmem:[%s7 + $0x158] sm:$0xff]
    %v1824 = vld [vmem:[%s7 + $0x160] sm:$0xff]
    %v1825 = vld [vmem:[%s7 + $0x168] sm:$0xff]
    %v1826 = vld [vmem:[%s7 + $0x170] sm:$0xff]
    %v1827 = vld [vmem:[%s7 + $0x178] sm:$0xff]
    %v1828 = vld [vmem:[%s7 + $0x180] sm:$0xff]
    %v1829 = vld [vmem:[%s7 + $0x188] sm:$0xff]
    %v1830 = vld [vmem:[%s7 + $0x190] sm:$0xff]
    %v1831 = vld [vmem:[%s7 + $0x198] sm:$0xff]
    %v1832 = vld [vmem:[%s7 + $0x1a0] sm:$0xff]
    %v1833 = vld [vmem:[%s7 + $0x1a8] sm:$0xff]
    %v1834 = vld [vmem:[%s7 + $0x1b0] sm:$0xff]
    %v1835 = vld [vmem:[%s7 + $0x1b8] sm:$0xff]
    %v1836 = vld [vmem:[%s7 + $0x1c0] sm:$0xff]
    %v1837 = vld [vmem:[%s7 + $0x1c8] sm:$0xff]
    %v1838 = vld [vmem:[%s7 + $0x1d0] sm:$0xff]
    %v1839 = vld [vmem:[%s7 + $0x1d8] sm:$0xff]
    %v1840 = vld [vmem:[%s7 + $0x1e0] sm:$0xff]
    %v1841 = vld [vmem:[%s7 + $0x1e8] sm:$0xff]
    %v1842 = vld [vmem:[%s7 + $0x1f0] sm:$0xff]
    %v1843 = vld [vmem:[%s7 + $0x1f8] sm:$0xff]
    %v1844 = vld [vmem:[%s7 + $0x200] sm:$0xff]
    %v1845 = vld [vmem:[%s7 + $0x208] sm:$0xff]
    %v1846 = vld [vmem:[%s7 + $0x210] sm:$0xff]
    %v1847 = vld [vmem:[%s7 + $0x218] sm:$0xff]
    %v1848 = vld [vmem:[%s7 + $0x220] sm:$0xff]
    %v1849 = vld [vmem:[%s7 + $0x228] sm:$0xff]
    %v1850 = vld [vmem:[%s7 + $0x230] sm:$0xff]
    %v1851 = vld [vmem:[%s7 + $0x238] sm:$0xff]
    %v1852 = vld [vmem:[%s7 + $0x240] sm:$0xff]
    %v1853 = vld [vmem:[%s7 + $0x248] sm:$0xff]
    %v1854 = vld [vmem:[%s7 + $0x250] sm:$0xff]
    %v1855 = vld [vmem:[%s7 + $0x258] sm:$0xff]
    %v1856 = vld [vmem:[%s7 + $0x260] sm:$0xff]
    %v1857 = vld [vmem:[%s7 + $0x268] sm:$0xff]
    %v1858 = vld [vmem:[%s7 + $0x270] sm:$0xff]
    %v1859 = vld [vmem:[%s7 + $0x278] sm:$0xff]
    %v1860 = vld [vmem:[%s7 + $0x280] sm:$0xff]
    %v1861 = vld [vmem:[%s7 + $0x288] sm:$0xff]
    %v1862 = vld [vmem:[%s7 + $0x290] sm:$0xff]
    %v1863 = vld [vmem:[%s7 + $0x298] sm:$0xff]
    %v1864 = vld [vmem:[%s7 + $0x2a0] sm:$0xff]
    %v1865 = vld [vmem:[%s7 + $0x2a8] sm:$0xff]
    %v1866 = vld [vmem:[%s7 + $0x2b0] sm:$0xff]
    %v1867 = vld [vmem:[%s7 + $0x2b8] sm:$0xff]
    %v1868 = vld [vmem:[%s7 + $0x2c0] sm:$0xff]
    %v1869 = vld [vmem:[%s7 + $0x2c8] sm:$0xff]
    %v1870 = vld [vmem:[%s7 + $0x2d0] sm:$0xff]
    %v1871 = vld [vmem:[%s7 + $0x2d8] sm:$0xff]
    %v1872 = vld [vmem:[%s7 + $0x2e0] sm:$0xff]
    %v1873 = vld [vmem:[%s7 + $0x2e8] sm:$0xff]
    %v1874 = vld [vmem:[%s7 + $0x2f0] sm:$0xff]
    %v1875 = vld [vmem:[%s7 + $0x2f8] sm:$0xff]
    %v1876 = vld [vmem:[%s7 + $0x300] sm:$0xff]
    %v1877 = vld [vmem:[%s7 + $0x308] sm:$0xff]
    %v1878 = vld [vmem:[%s7 + $0x310] sm:$0xff]
    %v1879 = vld [vmem:[%s7 + $0x318] sm:$0xff]
    %v1880 = vld [vmem:[%s7 + $0x320] sm:$0xff]
    %v1881 = vld [vmem:[%s7 + $0x328] sm:$0xff]
    %v1882 = vld [vmem:[%s7 + $0x330] sm:$0xff]
    %v1883 = vld [vmem:[%s7 + $0x338] sm:$0xff]
    %v1884 = vld [vmem:[%s7 + $0x340] sm:$0xff]
    %v1885 = vld [vmem:[%s7 + $0x348] sm:$0xff]
    %v1886 = vld [vmem:[%s7 + $0x350] sm:$0xff]
    %v1887 = vld [vmem:[%s7 + $0x358] sm:$0xff]
    %v1888 = vld [vmem:[%s7 + $0x360] sm:$0xff]
    %v1889 = vld [vmem:[%s7 + $0x368] sm:$0xff]
    %v1890 = vld [vmem:[%s7 + $0x370] sm:$0xff]
    %v1891 = vld [vmem:[%s7 + $0x378] sm:$0xff]
    %v1892 = vld [vmem:[%s7 + $0x380] sm:$0xff]
    %v1893 = vld [vmem:[%s7 + $0x388] sm:$0xff]
    %v1894 = vld [vmem:[%s7 + $0x390] sm:$0xff]
    %v1895 = vld [vmem:[%s7 + $0x398] sm:$0xff]
    %v1896 = vld [vmem:[%s7 + $0x3a0] sm:$0xff]
    %v1897 = vld [vmem:[%s7 + $0x3a8] sm:$0xff]
    %v1898 = vld [vmem:[%s7 + $0x3b0] sm:$0xff]
    %v1899 = vld [vmem:[%s7 + $0x3b8] sm:$0xff]
    %v1900 = vld [vmem:[%s7 + $0x3c0] sm:$0xff]
    %v1901 = vld [vmem:[%s7 + $0x3c8] sm:$0xff]
    %v1902 = vld [vmem:[%s7 + $0x3d0] sm:$0xff]
    %v1903 = vld [vmem:[%s7 + $0x3d8] sm:$0xff]
    %v1904 = vld [vmem:[%s7 + $0x3e0] sm:$0xff]
    %v1905 = vld [vmem:[%s7 + $0x3e8] sm:$0xff]
    %v1906 = vld [vmem:[%s7 + $0x3f0] sm:$0xff]
    %v1907 = vld [vmem:[%s7 + $0x3f8] sm:$0xff]
    %v1908 = vld [vmem:[%s7 + $0x400] sm:$0xff]
    %v1909 = vld [vmem:[%s7 + $0x408] sm:$0xff]
    %v1910 = vld [vmem:[%s7 + $0x410] sm:$0xff]
    %v1911 = vld [vmem:[%s7 + $0x418] sm:$0xff]
    %v1912 = vld [vmem:[%s7 + $0x420] sm:$0xff]
    %v1913 = vld [vmem:[%s7 + $0x428] sm:$0xff]
    %v1914 = vld [vmem:[%s7 + $0x430] sm:$0xff]
    %v1915 = vld [vmem:[%s7 + $0x438] sm:$0xff]
    %v1916 = vld [vmem:[%s7 + $0x440] sm:$0xff]
    %v1917 = vld [vmem:[%s7 + $0x448] sm:$0xff]
    %v1918 = vld [vmem:[%s7 + $0x450] sm:$0xff]
    %v1919 = vld [vmem:[%s7 + $0x458] sm:$0xff]
    %v1920 = vld [vmem:[%s7 + $0x460] sm:$0xff]
    %v1921 = vld [vmem:[%s7 + $0x468] sm:$0xff]
    %v1922 = vld [vmem:[%s7 + $0x470] sm:$0xff]
    %v1923 = vld [vmem:[%s7 + $0x478] sm:$0xff]
    %v1924 = vld [vmem:[%s7 + $0x480] sm:$0xff]
    %v1925 = vld [vmem:[%s7 + $0x488] sm:$0xff]
    %v1926 = vld [vmem:[%s7 + $0x490] sm:$0xff]
    %v1927 = vld [vmem:[%s7 + $0x498] sm:$0xff]
    %v1928 = vld [vmem:[%s7 + $0x4a0] sm:$0xff]
    %v1929 = vld [vmem:[%s7 + $0x4a8] sm:$0xff]
    %v1930 = vld [vmem:[%s7 + $0x4b0] sm:$0xff]
    %v1931 = vld [vmem:[%s7 + $0x4b8] sm:$0xff]
    %v1932 = vld [vmem:[%s7 + $0x4c0] sm:$0xff]
    %v1933 = vld [vmem:[%s7 + $0x4c8] sm:$0xff]
    %v1934 = vld [vmem:[%s7 + $0x4d0] sm:$0xff]
    %v1935 = vld [vmem:[%s7 + $0x4d8] sm:$0xff]
    %v1936 = vld [vmem:[%s7 + $0x4e0] sm:$0xff]
    %v1937 = vld [vmem:[%s7 + $0x4e8] sm:$0xff]
    %v1938 = vld [vmem:[%s7 + $0x4f0] sm:$0xff]
    %v1939 = vld [vmem:[%s7 + $0x4f8] sm:$0xff]
    %v1940 = vld [vmem:[%s7 + $0x500] sm:$0xff]
    %v1941 = vld [vmem:[%s7 + $0x508] sm:$0xff]
    %v1942 = vld [vmem:[%s7 + $0x510] sm:$0xff]
    %v1943 = vld [vmem:[%s7 + $0x518] sm:$0xff]
    %v1944 = vld [vmem:[%s7 + $0x520] sm:$0xff]
    %v1945 = vld [vmem:[%s7 + $0x528] sm:$0xff]
    %v1946 = vld [vmem:[%s7 + $0x530] sm:$0xff]
    %v1947 = vld [vmem:[%s7 + $0x538] sm:$0xff]
    %v1948 = vld [vmem:[%s7 + $0x540] sm:$0xff]
    %v1949 = vld [vmem:[%s7 + $0x548] sm:$0xff]
    %v1950 = vld [vmem:[%s7 + $0x550] sm:$0xff]
    %v1951 = vld [vmem:[%s7 + $0x558] sm:$0xff]
    %v1952 = vld [vmem:[%s7 + $0x560] sm:$0xff]
    %v1953 = vld [vmem:[%s7 + $0x568] sm:$0xff]
    %v1954 = vld [vmem:[%s7 + $0x570] sm:$0xff]
    %v1955 = vld [vmem:[%s7 + $0x578] sm:$0xff]
    %v1956 = vld [vmem:[%s7 + $0x580] sm:$0xff]
    %v1957 = vld [vmem:[%s7 + $0x588] sm:$0xff]
    %v1958 = vld [vmem:[%s7 + $0x590] sm:$0xff]
    %v1959 = vld [vmem:[%s7 + $0x598] sm:$0xff]
    %v1960 = vld [vmem:[%s7 + $0x5a0] sm:$0xff]
    %v1961 = vld [vmem:[%s7 + $0x5a8] sm:$0xff]
    %v1962 = vld [vmem:[%s7 + $0x5b0] sm:$0xff]
    %v1963 = vld [vmem:[%s7 + $0x5b8] sm:$0xff]
    %v1964 = vld [vmem:[%s7 + $0x5c0] sm:$0xff]
    %v1965 = vld [vmem:[%s7 + $0x5c8] sm:$0xff]
    %v1966 = vld [vmem:[%s7 + $0x5d0] sm:$0xff]
    %v1967 = vld [vmem:[%s7 + $0x5d8] sm:$0xff]
    %v1968 = vld [vmem:[%s7 + $0x5e0] sm:$0xff]
    %v1969 = vld [vmem:[%s7 + $0x5e8] sm:$0xff]
    %v1970 = vld [vmem:[%s7 + $0x5f0] sm:$0xff]
    %v1971 = vld [vmem:[%s7 + $0x5f8] sm:$0xff]
    %v1972 = vld [vmem:[#allocation13] sm:$0x3]
    %v1974 = vlaneseq
    %v1975 = vshrl.u32 %v1974, 7
    %v1976 = vsub.s32 0, %v1975
    %v1977 = vrot.slane %v1972, %v1976
    %v1978 = vlaneseq
    %v1979 = vshrl.u32 %v1978, 7
    %v1980 = vsub.s32 1, %v1979
    %v1981 = vrot.slane %v1972, %v1980
    %1984 = vmatprep.subr.mxu0 %v1781
    %1985 = vmatpush1.msra.mxu0 %v1780
    %1986 = vmatprep.subr.mxu0 %v1783
    %1987 = vmatpush1.msra.mxu0 %v1782
    %1988 = vmatprep.subr.mxu0 %v1785
    %1989 = vmatpush1.msra.mxu0 %v1784
    %1990 = vmatprep.subr.mxu0 %v1787
    %1991 = vmatpush1.msra.mxu0 %v1786
    %1992 = vmatprep.subr.mxu0 %v1789
    %1993 = vmatpush1.msra.mxu0 %v1788
    %1994 = vmatprep.subr.mxu0 %v1791
    %1995 = vmatpush1.msra.mxu0 %v1790
    %1996 = vmatprep.subr.mxu0 %v1793
    %1997 = vmatpush1.msra.mxu0 %v1792
    %1998 = vmatprep.subr.mxu0 %v1795
    %1999 = vmatpush1.msra.mxu0 %v1794
    %2000 = vmatprep.subr.mxu0 %v1797
    %2001 = vmatpush1.msra.mxu0 %v1796
    %2002 = vmatprep.subr.mxu0 %v1799
    %2003 = vmatpush1.msra.mxu0 %v1798
    %2004 = vmatprep.subr.mxu0 %v1801
    %2005 = vmatpush1.msra.mxu0 %v1800
    %2006 = vmatprep.subr.mxu0 %v1803
    %2007 = vmatpush1.msra.mxu0 %v1802
    %2008 = vmatprep.subr.mxu0 %v1805
    %2009 = vmatpush1.msra.mxu0 %v1804
    %2010 = vmatprep.subr.mxu0 %v1807
    %2011 = vmatpush1.msra.mxu0 %v1806
    %2012 = vmatprep.subr.mxu0 %v1809
    %2013 = vmatpush1.msra.mxu0 %v1808
    %2014 = vmatprep.subr.mxu0 %v1811
    %2015 = vmatpush1.msra.mxu0 %v1810
    %2016 = vmatprep.subr.mxu0 %v1813
    %2017 = vmatpush1.msra.mxu0 %v1812
    %2018 = vmatprep.subr.mxu0 %v1815
    %2019 = vmatpush1.msra.mxu0 %v1814
    %2020 = vmatprep.subr.mxu0 %v1817
    %2021 = vmatpush1.msra.mxu0 %v1816
    %2022 = vmatprep.subr.mxu0 %v1819
    %2023 = vmatpush1.msra.mxu0 %v1818
    %2024 = vmatprep.subr.mxu0 %v1821
    %2025 = vmatpush1.msra.mxu0 %v1820
    %2026 = vmatprep.subr.mxu0 %v1823
    %2027 = vmatpush1.msra.mxu0 %v1822
    %2028 = vmatprep.subr.mxu0 %v1825
    %2029 = vmatpush1.msra.mxu0 %v1824
    %2030 = vmatprep.subr.mxu0 %v1827
    %2031 = vmatpush1.msra.mxu0 %v1826
    %2032 = vmatprep.subr.mxu0 %v1829
    %2033 = vmatpush1.msra.mxu0 %v1828
    %2034 = vmatprep.subr.mxu0 %v1831
    %2035 = vmatpush1.msra.mxu0 %v1830
    %2036 = vmatprep.subr.mxu0 %v1833
    %2037 = vmatpush1.msra.mxu0 %v1832
    %2038 = vmatprep.subr.mxu0 %v1835
    %2039 = vmatpush1.msra.mxu0 %v1834
    %2040 = vmatprep.subr.mxu0 %v1837
    %2041 = vmatpush1.msra.mxu0 %v1836
    %2042 = vmatprep.subr.mxu0 %v1839
    %2043 = vmatpush1.msra.mxu0 %v1838
    %2044 = vmatprep.subr.mxu0 %v1841
    %2045 = vmatpush1.msra.mxu0 %v1840
    %2046 = vmatprep.subr.mxu0 %v1843
    %2047 = vmatpush1.msra.mxu0 %v1842
    %2048 = vmatprep.mubr.f32.mxu0 %v1775
    %2049 = vmatmul.mubr.f32.gmra.mrb[0].mxu0 %v1774
    %v2050 = vpop.f32.mrb[0].mxu0
    %v2051 = vadd.f32 %v1977, %v2050
    %v2052 = vpop.f32.mrb[0].mxu0
    %v2053 = vadd.f32 %v1981, %v2052
    %2054 = vdwg.mxu0
    %2055 = vmatprep.subr.mxu0 %v1845
    %2056 = vmatpush1.msra.mxu0 %v1844
    %2057 = vmatprep.subr.mxu0 %v1847
    %2058 = vmatpush1.msra.mxu0 %v1846
    %2059 = vmatprep.subr.mxu0 %v1849
    %2060 = vmatpush1.msra.mxu0 %v1848
    %2061 = vmatprep.subr.mxu0 %v1851
    %2062 = vmatpush1.msra.mxu0 %v1850
    %2063 = vmatprep.subr.mxu0 %v1853
    %2064 = vmatpush1.msra.mxu0 %v1852
    %2065 = vmatprep.subr.mxu0 %v1855
    %2066 = vmatpush1.msra.mxu0 %v1854
    %2067 = vmatprep.subr.mxu0 %v1857
    %2068 = vmatpush1.msra.mxu0 %v1856
    %2069 = vmatprep.subr.mxu0 %v1859
    %2070 = vmatpush1.msra.mxu0 %v1858
    %2071 = vmatprep.subr.mxu0 %v1861
    %2072 = vmatpush1.msra.mxu0 %v1860
    %2073 = vmatprep.subr.mxu0 %v1863
    %2074 = vmatpush1.msra.mxu0 %v1862
    %2075 = vmatprep.subr.mxu0 %v1865
    %2076 = vmatpush1.msra.mxu0 %v1864
    %2077 = vmatprep.subr.mxu0 %v1867
    %2078 = vmatpush1.msra.mxu0 %v1866
    %2079 = vmatprep.subr.mxu0 %v1869
    %2080 = vmatpush1.msra.mxu0 %v1868
    %2081 = vmatprep.subr.mxu0 %v1871
    %2082 = vmatpush1.msra.mxu0 %v1870
    %2083 = vmatprep.subr.mxu0 %v1873
    %2084 = vmatpush1.msra.mxu0 %v1872
    %2085 = vmatprep.subr.mxu0 %v1875
    %2086 = vmatpush1.msra.mxu0 %v1874
    %2087 = vmatprep.subr.mxu0 %v1877
    %2088 = vmatpush1.msra.mxu0 %v1876
    %2089 = vmatprep.subr.mxu0 %v1879
    %2090 = vmatpush1.msra.mxu0 %v1878
    %2091 = vmatprep.subr.mxu0 %v1881
    %2092 = vmatpush1.msra.mxu0 %v1880
    %2093 = vmatprep.subr.mxu0 %v1883
    %2094 = vmatpush1.msra.mxu0 %v1882
    %2095 = vmatprep.subr.mxu0 %v1885
    %2096 = vmatpush1.msra.mxu0 %v1884
    %2097 = vmatprep.subr.mxu0 %v1887
    %2098 = vmatpush1.msra.mxu0 %v1886
    %2099 = vmatprep.subr.mxu0 %v1889
    %2100 = vmatpush1.msra.mxu0 %v1888
    %2101 = vmatprep.subr.mxu0 %v1891
    %2102 = vmatpush1.msra.mxu0 %v1890
    %2103 = vmatprep.subr.mxu0 %v1893
    %2104 = vmatpush1.msra.mxu0 %v1892
    %2105 = vmatprep.subr.mxu0 %v1895
    %2106 = vmatpush1.msra.mxu0 %v1894
    %2107 = vmatprep.subr.mxu0 %v1897
    %2108 = vmatpush1.msra.mxu0 %v1896
    %2109 = vmatprep.subr.mxu0 %v1899
    %2110 = vmatpush1.msra.mxu0 %v1898
    %2111 = vmatprep.subr.mxu0 %v1901
    %2112 = vmatpush1.msra.mxu0 %v1900
    %2113 = vmatprep.subr.mxu0 %v1903
    %2114 = vmatpush1.msra.mxu0 %v1902
    %2115 = vmatprep.subr.mxu0 %v1905
    %2116 = vmatpush1.msra.mxu0 %v1904
    %2117 = vmatprep.subr.mxu0 %v1907
    %2118 = vmatpush1.msra.mxu0 %v1906
    %2119 = vmatprep.mubr.f32.mxu0 %v1777
    %2120 = vmatmul.mubr.f32.gmra.mrb[0].mxu0 %v1776
    %v2121 = vpop.f32.mrb[0].mxu0
    %v2122 = vadd.f32 %v2051, %v2121
    %v2123 = vpop.f32.mrb[0].mxu0
    %v2124 = vadd.f32 %v2053, %v2123
    %2125 = vdwg.mxu0
    %2126 = vmatprep.subr.mxu0 %v1909
    %2127 = vmatpush1.msra.mxu0 %v1908
    %2128 = vmatprep.subr.mxu0 %v1911
    %2129 = vmatpush1.msra.mxu0 %v1910
    %2130 = vmatprep.subr.mxu0 %v1913
    %2131 = vmatpush1.msra.mxu0 %v1912
    %2132 = vmatprep.subr.mxu0 %v1915
    %2133 = vmatpush1.msra.mxu0 %v1914
    %2134 = vmatprep.subr.mxu0 %v1917
    %2135 = vmatpush1.msra.mxu0 %v1916
    %2136 = vmatprep.subr.mxu0 %v1919
    %2137 = vmatpush1.msra.mxu0 %v1918
    %2138 = vmatprep.subr.mxu0 %v1921
    %2139 = vmatpush1.msra.mxu0 %v1920
    %2140 = vmatprep.subr.mxu0 %v1923
    %2141 = vmatpush1.msra.mxu0 %v1922
    %2142 = vmatprep.subr.mxu0 %v1925
    %2143 = vmatpush1.msra.mxu0 %v1924
    %2144 = vmatprep.subr.mxu0 %v1927
    %2145 = vmatpush1.msra.mxu0 %v1926
    %2146 = vmatprep.subr.mxu0 %v1929
    %2147 = vmatpush1.msra.mxu0 %v1928
    %2148 = vmatprep.subr.mxu0 %v1931
    %2149 = vmatpush1.msra.mxu0 %v1930
    %2150 = vmatprep.subr.mxu0 %v1933
    %2151 = vmatpush1.msra.mxu0 %v1932
    %2152 = vmatprep.subr.mxu0 %v1935
    %2153 = vmatpush1.msra.mxu0 %v1934
    %2154 = vmatprep.subr.mxu0 %v1937
    %2155 = vmatpush1.msra.mxu0 %v1936
    %2156 = vmatprep.subr.mxu0 %v1939
    %2157 = vmatpush1.msra.mxu0 %v1938
    %2158 = vmatprep.subr.mxu0 %v1941
    %2159 = vmatpush1.msra.mxu0 %v1940
    %2160 = vmatprep.subr.mxu0 %v1943
    %2161 = vmatpush1.msra.mxu0 %v1942
    %2162 = vmatprep.subr.mxu0 %v1945
    %2163 = vmatpush1.msra.mxu0 %v1944
    %2164 = vmatprep.subr.mxu0 %v1947
    %2165 = vmatpush1.msra.mxu0 %v1946
    %2166 = vmatprep.subr.mxu0 %v1949
    %2167 = vmatpush1.msra.mxu0 %v1948
    %2168 = vmatprep.subr.mxu0 %v1951
    %2169 = vmatpush1.msra.mxu0 %v1950
    %2170 = vmatprep.subr.mxu0 %v1953
    %2171 = vmatpush1.msra.mxu0 %v1952
    %2172 = vmatprep.subr.mxu0 %v1955
    %2173 = vmatpush1.msra.mxu0 %v1954
    %2174 = vmatprep.subr.mxu0 %v1957
    %2175 = vmatpush1.msra.mxu0 %v1956
    %2176 = vmatprep.subr.mxu0 %v1959
    %2177 = vmatpush1.msra.mxu0 %v1958
    %2178 = vmatprep.subr.mxu0 %v1961
    %2179 = vmatpush1.msra.mxu0 %v1960
    %2180 = vmatprep.subr.mxu0 %v1963
    %2181 = vmatpush1.msra.mxu0 %v1962
    %2182 = vmatprep.subr.mxu0 %v1965
    %2183 = vmatpush1.msra.mxu0 %v1964
    %2184 = vmatprep.subr.mxu0 %v1967
    %2185 = vmatpush1.msra.mxu0 %v1966
    %2186 = vmatprep.subr.mxu0 %v1969
    %2187 = vmatpush1.msra.mxu0 %v1968
    %2188 = vmatprep.subr.mxu0 %v1971
    %2189 = vmatpush1.msra.mxu0 %v1970
    %2190 = vmatprep.mubr.f32.mxu0 %v1779
    %2191 = vmatmul.mubr.f32.gmra.mrb[0].mxu0 %v1778
    %v2192 = vpop.f32.mrb[0].mxu0
    %v2193 = vadd.f32 %v2122, %v2192
    %v2194 = vpop.f32.mrb[0].mxu0
    %v2195 = vadd.f32 %v2124, %v2194
    %2196 = vdwg.mxu0
    %v2199 = vcombine.low %v2193, %v2195
    %v2201 = vunpack.c.l.s4 1983009808
    %v2202 = vunpack.c.0.s8 %v2201
    %v2203 = vlaneseq
    %v2204 = vshrl.u32 %v2203, 7
    %v2205 = vsub.s32 %v2202, %v2204
    %v2206 = vrot.slane %v2199, %v2205
    %vm2208 = vcmask 1041408
    %vm2209 = vcmask 125954
    %vm2210 = vmor %vm2209, %vm2208
    %2211 = vst.msk [vmem:[#allocation26] sm:$0xf] %vm2210, %v2206
    %v2212 = vld [vmem:[#allocation2] sm:$0x3]
    %v2213 = vld [vmem:[#allocation14] sm:$0xff]
    %v2214 = vld [vmem:[#allocation14 + $0x8] sm:$0xff]
    %v2215 = vld [vmem:[#allocation14 + $0x10] sm:$0xff]
    %v2216 = vld [vmem:[#allocation14 + $0x18] sm:$0xff]
    %v2217 = vld [vmem:[#allocation16] sm:$0x7]
    %v2219 = vsel %vm838, %v2217, 0
    %2221 = vmatprep.subr.mxu0 0.0
    %2222 = vmatpush1.msra.mxu0 %v2219
    %2223 = vmatprep.subr.mxu0 0.0
    %2224 = vmatpush1.msra.mxu0 0.0
    %2225 = vmatprep.subr.mxu0 0.0
    %2226 = vmatpush1.msra.mxu0 0.0
    %2227 = vmatprep.subr.mxu0 0.0
    %2228 = vmatpush1.msra.mxu0 0.0
    %2229 = vmatprep.subr.mxu0 0.0
    %2230 = vmatpush1.msra.mxu0 0.0
    %2231 = vmatprep.subr.mxu0 0.0
    %2232 = vmatpush1.msra.mxu0 0.0
    %2233 = vmatprep.subr.mxu0 0.0
    %2234 = vmatpush1.msra.mxu0 0.0
    %2235 = vmatprep.subr.mxu0 0.0
    %2236 = vmatpush1.msra.mxu0 0.0
    %2237 = vmatprep.subr.mxu0 0.0
    %2238 = vmatpush1.msra.mxu0 0.0
    %2239 = vmatprep.subr.mxu0 0.0
    %2240 = vmatpush1.msra.mxu0 0.0
    %2241 = vmatprep.subr.mxu0 0.0
    %2242 = vmatpush1.msra.mxu0 0.0
    %2243 = vmatprep.subr.mxu0 0.0
    %2244 = vmatpush1.msra.mxu0 0.0
    %2245 = vmatprep.subr.mxu0 0.0
    %2246 = vmatpush1.msra.mxu0 0.0
    %2247 = vmatprep.subr.mxu0 0.0
    %2248 = vmatpush1.msra.mxu0 0.0
    %2249 = vmatprep.subr.mxu0 0.0
    %2250 = vmatpush1.msra.mxu0 0.0
    %2251 = vmatprep.subr.mxu0 0.0
    %2252 = vmatpush1.msra.mxu0 0.0
    %2253 = vmatprep.subr.mxu0 0.0
    %2254 = vmatpush1.msra.mxu0 0.0
    %2255 = vmatprep.subr.mxu0 0.0
    %2256 = vmatpush1.msra.mxu0 0.0
    %2257 = vmatprep.subr.mxu0 0.0
    %2258 = vmatpush1.msra.mxu0 0.0
    %2259 = vmatprep.subr.mxu0 0.0
    %2260 = vmatpush1.msra.mxu0 0.0
    %2261 = vmatprep.subr.mxu0 0.0
    %2262 = vmatpush1.msra.mxu0 0.0
    %2263 = vmatprep.subr.mxu0 0.0
    %2264 = vmatpush1.msra.mxu0 0.0
    %2265 = vmatprep.subr.mxu0 0.0
    %2266 = vmatpush1.msra.mxu0 0.0
    %2267 = vmatprep.subr.mxu0 0.0
    %2268 = vmatpush1.msra.mxu0 0.0
    %2269 = vmatprep.subr.mxu0 0.0
    %2270 = vmatpush1.msra.mxu0 0.0
    %2271 = vmatprep.subr.mxu0 0.0
    %2272 = vmatpush1.msra.mxu0 0.0
    %2273 = vmatprep.subr.mxu0 0.0
    %2274 = vmatpush1.msra.mxu0 0.0
    %2275 = vmatprep.subr.mxu0 0.0
    %2276 = vmatpush1.msra.mxu0 0.0
    %2277 = vmatprep.subr.mxu0 0.0
    %2278 = vmatpush1.msra.mxu0 0.0
    %2279 = vmatprep.subr.mxu0 0.0
    %2280 = vmatpush1.msra.mxu0 0.0
    %2281 = vmatprep.subr.mxu0 0.0
    %2282 = vmatpush1.msra.mxu0 0.0
    %2283 = vmatprep.subr.mxu0 0.0
    %2284 = vmatpush1.msra.mxu0 0.0
    %2285 = vmatprep.mubr.f32.mxu0 0.0
    %2286 = vmatmul.mubr.f32.gmra.mrb[0].mxu0 %v836
    %v2287 = vpop.f32.mrb[0].mxu0
    %v2288 = vadd.f32 0.0, %v2287
    %v2289 = vpop.f32.mrb[0].mxu0
    %2290 = vdwg.mxu0
    %vm2291 = vcmask 261120
    %v2293 = vsel %vm2291, %v2212, 0
    %2295 = vmatprep.subr.mxu0 0.0
    %2296 = vmatpush1.msra.mxu0 %v2213
    %2297 = vmatprep.subr.mxu0 0.0
    %2298 = vmatpush1.msra.mxu0 %v2214
    %2299 = vmatprep.subr.mxu0 0.0
    %2300 = vmatpush1.msra.mxu0 %v2215
    %2301 = vmatprep.subr.mxu0 0.0
    %2302 = vmatpush1.msra.mxu0 %v2216
    %2303 = vmatprep.subr.mxu0 0.0
    %2304 = vmatpush1.msra.mxu0 0.0
    %2305 = vmatprep.subr.mxu0 0.0
    %2306 = vmatpush1.msra.mxu0 0.0
    %2307 = vmatprep.subr.mxu0 0.0
    %2308 = vmatpush1.msra.mxu0 0.0
    %2309 = vmatprep.subr.mxu0 0.0
    %2310 = vmatpush1.msra.mxu0 0.0
    %2311 = vmatprep.subr.mxu0 0.0
    %2312 = vmatpush1.msra.mxu0 0.0
    %2313 = vmatprep.subr.mxu0 0.0
    %2314 = vmatpush1.msra.mxu0 0.0
    %2315 = vmatprep.subr.mxu0 0.0
    %2316 = vmatpush1.msra.mxu0 0.0
    %2317 = vmatprep.subr.mxu0 0.0
    %2318 = vmatpush1.msra.mxu0 0.0
    %2319 = vmatprep.subr.mxu0 0.0
    %2320 = vmatpush1.msra.mxu0 0.0
    %2321 = vmatprep.subr.mxu0 0.0
    %2322 = vmatpush1.msra.mxu0 0.0
    %2323 = vmatprep.subr.mxu0 0.0
    %2324 = vmatpush1.msra.mxu0 0.0
    %2325 = vmatprep.subr.mxu0 0.0
    %2326 = vmatpush1.msra.mxu0 0.0
    %2327 = vmatprep.subr.mxu0 0.0
    %2328 = vmatpush1.msra.mxu0 0.0
    %2329 = vmatprep.subr.mxu0 0.0
    %2330 = vmatpush1.msra.mxu0 0.0
    %2331 = vmatprep.subr.mxu0 0.0
    %2332 = vmatpush1.msra.mxu0 0.0
    %2333 = vmatprep.subr.mxu0 0.0
    %2334 = vmatpush1.msra.mxu0 0.0
    %2335 = vmatprep.subr.mxu0 0.0
    %2336 = vmatpush1.msra.mxu0 0.0
    %2337 = vmatprep.subr.mxu0 0.0
    %2338 = vmatpush1.msra.mxu0 0.0
    %2339 = vmatprep.subr.mxu0 0.0
    %2340 = vmatpush1.msra.mxu0 0.0
    %2341 = vmatprep.subr.mxu0 0.0
    %2342 = vmatpush1.msra.mxu0 0.0
    %2343 = vmatprep.subr.mxu0 0.0
    %2344 = vmatpush1.msra.mxu0 0.0
    %2345 = vmatprep.subr.mxu0 0.0
    %2346 = vmatpush1.msra.mxu0 0.0
    %2347 = vmatprep.subr.mxu0 0.0
    %2348 = vmatpush1.msra.mxu0 0.0
    %2349 = vmatprep.subr.mxu0 0.0
    %2350 = vmatpush1.msra.mxu0 0.0
    %2351 = vmatprep.subr.mxu0 0.0
    %2352 = vmatpush1.msra.mxu0 0.0
    %2353 = vmatprep.subr.mxu0 0.0
    %2354 = vmatpush1.msra.mxu0 0.0
    %2355 = vmatprep.subr.mxu0 0.0
    %2356 = vmatpush1.msra.mxu0 0.0
    %2357 = vmatprep.subr.mxu0 0.0
    %2358 = vmatpush1.msra.mxu0 0.0
    %2359 = vmatprep.mubr.f32.mxu0 0.0
    %2360 = vmatmul.mubr.f32.gmra.mrb[0].mxu0 %v2293
    %v2361 = vpop.f32.mrb[0].mxu0
    %v2362 = vadd.f32 %v2288, %v2361
    %v2363 = vpop.f32.mrb[0].mxu0
    %2364 = vdwg.mxu0
    %v2365 = vld [vmem:[#allocation17] sm:$0x1]
    %v2367 = vlaneseq
    %v2368 = vshrl.u32 %v2367, 7
    %v2369 = vsub.s32 0, %v2368
    %v2370 = vrot.slane %v2365, %v2369
    %v2372 = vadd.f32 %v2362, %v2370
    %v2373 = vmax.f32 %v2372, 0.0
    %v2374 = vld [vmem:[%s12] sm:$0xff]
    %v2375 = vld [vmem:[%s12 + $0x8] sm:$0xff]
    %v2376 = vld [vmem:[%s12 + $0x10] sm:$0xff]
    %v2377 = vld [vmem:[%s12 + $0x18] sm:$0xff]
    %v2378 = vld [vmem:[#allocation19] sm:$0x1]
    %v2380 = vlaneseq
    %v2381 = vshrl.u32 %v2380, 7
    %v2382 = vsub.s32 0, %v2381
    %v2383 = vrot.slane %v2378, %v2382
    %v2386 = vsel %vm2291, %v2373, 0
    %2388 = vmatprep.subr.mxu0 0.0
    %2389 = vmatpush1.msra.mxu0 %v2374
    %2390 = vmatprep.subr.mxu0 0.0
    %2391 = vmatpush1.msra.mxu0 %v2375
    %2392 = vmatprep.subr.mxu0 0.0
    %2393 = vmatpush1.msra.mxu0 %v2376
    %2394 = vmatprep.subr.mxu0 0.0
    %2395 = vmatpush1.msra.mxu0 %v2377
    %2396 = vmatprep.subr.mxu0 0.0
    %2397 = vmatpush1.msra.mxu0 0.0
    %2398 = vmatprep.subr.mxu0 0.0
    %2399 = vmatpush1.msra.mxu0 0.0
    %2400 = vmatprep.subr.mxu0 0.0
    %2401 = vmatpush1.msra.mxu0 0.0
    %2402 = vmatprep.subr.mxu0 0.0
    %2403 = vmatpush1.msra.mxu0 0.0
    %2404 = vmatprep.subr.mxu0 0.0
    %2405 = vmatpush1.msra.mxu0 0.0
    %2406 = vmatprep.subr.mxu0 0.0
    %2407 = vmatpush1.msra.mxu0 0.0
    %2408 = vmatprep.subr.mxu0 0.0
    %2409 = vmatpush1.msra.mxu0 0.0
    %2410 = vmatprep.subr.mxu0 0.0
    %2411 = vmatpush1.msra.mxu0 0.0
    %2412 = vmatprep.subr.mxu0 0.0
    %2413 = vmatpush1.msra.mxu0 0.0
    %2414 = vmatprep.subr.mxu0 0.0
    %2415 = vmatpush1.msra.mxu0 0.0
    %2416 = vmatprep.subr.mxu0 0.0
    %2417 = vmatpush1.msra.mxu0 0.0
    %2418 = vmatprep.subr.mxu0 0.0
    %2419 = vmatpush1.msra.mxu0 0.0
    %2420 = vmatprep.subr.mxu0 0.0
    %2421 = vmatpush1.msra.mxu0 0.0
    %2422 = vmatprep.subr.mxu0 0.0
    %2423 = vmatpush1.msra.mxu0 0.0
    %2424 = vmatprep.subr.mxu0 0.0
    %2425 = vmatpush1.msra.mxu0 0.0
    %2426 = vmatprep.subr.mxu0 0.0
    %2427 = vmatpush1.msra.mxu0 0.0
    %2428 = vmatprep.subr.mxu0 0.0
    %2429 = vmatpush1.msra.mxu0 0.0
    %2430 = vmatprep.subr.mxu0 0.0
    %2431 = vmatpush1.msra.mxu0 0.0
    %2432 = vmatprep.subr.mxu0 0.0
    %2433 = vmatpush1.msra.mxu0 0.0
    %2434 = vmatprep.subr.mxu0 0.0
    %2435 = vmatpush1.msra.mxu0 0.0
    %2436 = vmatprep.subr.mxu0 0.0
    %2437 = vmatpush1.msra.mxu0 0.0
    %2438 = vmatprep.subr.mxu0 0.0
    %2439 = vmatpush1.msra.mxu0 0.0
    %2440 = vmatprep.subr.mxu0 0.0
    %2441 = vmatpush1.msra.mxu0 0.0
    %2442 = vmatprep.subr.mxu0 0.0
    %2443 = vmatpush1.msra.mxu0 0.0
    %2444 = vmatprep.subr.mxu0 0.0
    %2445 = vmatpush1.msra.mxu0 0.0
    %2446 = vmatprep.subr.mxu0 0.0
    %2447 = vmatpush1.msra.mxu0 0.0
    %2448 = vmatprep.subr.mxu0 0.0
    %2449 = vmatpush1.msra.mxu0 0.0
    %2450 = vmatprep.subr.mxu0 0.0
    %2451 = vmatpush1.msra.mxu0 0.0
    %2452 = vmatprep.mubr.f32.mxu0 0.0
    %2453 = vmatmul.mubr.f32.gmra.mrb[0].mxu0 %v2386
    %v2454 = vpop.f32.mrb[0].mxu0
    %v2455 = vadd.f32 %v2383, %v2454
    %v2456 = vpop.f32.mrb[0].mxu0
    %2457 = vdwg.mxu0
    %vm2458 = vcmask 74752
    %2459 = vst.msk [vmem:[#allocation27] sm:$0x3] %vm2458, %v2455
    %v2460 = vld [vmem:[#allocation5] sm:$0x3]
    %v2461 = vld [vmem:[#allocation20] sm:$0xff]
    %v2462 = vld [vmem:[#allocation20 + $0x8] sm:$0xff]
    %v2463 = vld [vmem:[#allocation20 + $0x10] sm:$0xff]
    %v2464 = vld [vmem:[#allocation20 + $0x18] sm:$0xff]
    %v2465 = vld [vmem:[#allocation22] sm:$0x7]
    %v2467 = vsel %vm838, %v2465, 0
    %2469 = vmatprep.subr.mxu0 0.0
    %2470 = vmatpush1.msra.mxu0 %v2467
    %2471 = vmatprep.subr.mxu0 0.0
    %2472 = vmatpush1.msra.mxu0 0.0
    %2473 = vmatprep.subr.mxu0 0.0
    %2474 = vmatpush1.msra.mxu0 0.0
    %2475 = vmatprep.subr.mxu0 0.0
    %2476 = vmatpush1.msra.mxu0 0.0
    %2477 = vmatprep.subr.mxu0 0.0
    %2478 = vmatpush1.msra.mxu0 0.0
    %2479 = vmatprep.subr.mxu0 0.0
    %2480 = vmatpush1.msra.mxu0 0.0
    %2481 = vmatprep.subr.mxu0 0.0
    %2482 = vmatpush1.msra.mxu0 0.0
    %2483 = vmatprep.subr.mxu0 0.0
    %2484 = vmatpush1.msra.mxu0 0.0
    %2485 = vmatprep.subr.mxu0 0.0
    %2486 = vmatpush1.msra.mxu0 0.0
    %2487 = vmatprep.subr.mxu0 0.0
    %2488 = vmatpush1.msra.mxu0 0.0
    %2489 = vmatprep.subr.mxu0 0.0
    %2490 = vmatpush1.msra.mxu0 0.0
    %2491 = vmatprep.subr.mxu0 0.0
    %2492 = vmatpush1.msra.mxu0 0.0
    %2493 = vmatprep.subr.mxu0 0.0
    %2494 = vmatpush1.msra.mxu0 0.0
    %2495 = vmatprep.subr.mxu0 0.0
    %2496 = vmatpush1.msra.mxu0 0.0
    %2497 = vmatprep.subr.mxu0 0.0
    %2498 = vmatpush1.msra.mxu0 0.0
    %2499 = vmatprep.subr.mxu0 0.0
    %2500 = vmatpush1.msra.mxu0 0.0
    %2501 = vmatprep.subr.mxu0 0.0
    %2502 = vmatpush1.msra.mxu0 0.0
    %2503 = vmatprep.subr.mxu0 0.0
    %2504 = vmatpush1.msra.mxu0 0.0
    %2505 = vmatprep.subr.mxu0 0.0
    %2506 = vmatpush1.msra.mxu0 0.0
    %2507 = vmatprep.subr.mxu0 0.0
    %2508 = vmatpush1.msra.mxu0 0.0
    %2509 = vmatprep.subr.mxu0 0.0
    %2510 = vmatpush1.msra.mxu0 0.0
    %2511 = vmatprep.subr.mxu0 0.0
    %2512 = vmatpush1.msra.mxu0 0.0
    %2513 = vmatprep.subr.mxu0 0.0
    %2514 = vmatpush1.msra.mxu0 0.0
    %2515 = vmatprep.subr.mxu0 0.0
    %2516 = vmatpush1.msra.mxu0 0.0
    %2517 = vmatprep.subr.mxu0 0.0
    %2518 = vmatpush1.msra.mxu0 0.0
    %2519 = vmatprep.subr.mxu0 0.0
    %2520 = vmatpush1.msra.mxu0 0.0
    %2521 = vmatprep.subr.mxu0 0.0
    %2522 = vmatpush1.msra.mxu0 0.0
    %2523 = vmatprep.subr.mxu0 0.0
    %2524 = vmatpush1.msra.mxu0 0.0
    %2525 = vmatprep.subr.mxu0 0.0
    %2526 = vmatpush1.msra.mxu0 0.0
    %2527 = vmatprep.subr.mxu0 0.0
    %2528 = vmatpush1.msra.mxu0 0.0
    %2529 = vmatprep.subr.mxu0 0.0
    %2530 = vmatpush1.msra.mxu0 0.0
    %2531 = vmatprep.subr.mxu0 0.0
    %2532 = vmatpush1.msra.mxu0 0.0
    %2533 = vmatprep.mubr.f32.mxu0 0.0
    %2534 = vmatmul.mubr.f32.gmra.mrb[0].mxu0 %v836
    %v2535 = vpop.f32.mrb[0].mxu0
    %v2536 = vadd.f32 0.0, %v2535
    %v2537 = vpop.f32.mrb[0].mxu0
    %2538 = vdwg.mxu0
    %v2540 = vsel %vm2291, %v2460, 0
    %2542 = vmatprep.subr.mxu0 0.0
    %2543 = vmatpush1.msra.mxu0 %v2461
    %2544 = vmatprep.subr.mxu0 0.0
    %2545 = vmatpush1.msra.mxu0 %v2462
    %2546 = vmatprep.subr.mxu0 0.0
    %2547 = vmatpush1.msra.mxu0 %v2463
    %2548 = vmatprep.subr.mxu0 0.0
    %2549 = vmatpush1.msra.mxu0 %v2464
    %2550 = vmatprep.subr.mxu0 0.0
    %2551 = vmatpush1.msra.mxu0 0.0
    %2552 = vmatprep.subr.mxu0 0.0
    %2553 = vmatpush1.msra.mxu0 0.0
    %2554 = vmatprep.subr.mxu0 0.0
    %2555 = vmatpush1.msra.mxu0 0.0
    %2556 = vmatprep.subr.mxu0 0.0
    %2557 = vmatpush1.msra.mxu0 0.0
    %2558 = vmatprep.subr.mxu0 0.0
    %2559 = vmatpush1.msra.mxu0 0.0
    %2560 = vmatprep.subr.mxu0 0.0
    %2561 = vmatpush1.msra.mxu0 0.0
    %2562 = vmatprep.subr.mxu0 0.0
    %2563 = vmatpush1.msra.mxu0 0.0
    %2564 = vmatprep.subr.mxu0 0.0
    %2565 = vmatpush1.msra.mxu0 0.0
    %2566 = vmatprep.subr.mxu0 0.0
    %2567 = vmatpush1.msra.mxu0 0.0
    %2568 = vmatprep.subr.mxu0 0.0
    %2569 = vmatpush1.msra.mxu0 0.0
    %2570 = vmatprep.subr.mxu0 0.0
    %2571 = vmatpush1.msra.mxu0 0.0
    %2572 = vmatprep.subr.mxu0 0.0
    %2573 = vmatpush1.msra.mxu0 0.0
    %2574 = vmatprep.subr.mxu0 0.0
    %2575 = vmatpush1.msra.mxu0 0.0
    %2576 = vmatprep.subr.mxu0 0.0
    %2577 = vmatpush1.msra.mxu0 0.0
    %2578 = vmatprep.subr.mxu0 0.0
    %2579 = vmatpush1.msra.mxu0 0.0
    %2580 = vmatprep.subr.mxu0 0.0
    %2581 = vmatpush1.msra.mxu0 0.0
    %2582 = vmatprep.subr.mxu0 0.0
    %2583 = vmatpush1.msra.mxu0 0.0
    %2584 = vmatprep.subr.mxu0 0.0
    %2585 = vmatpush1.msra.mxu0 0.0
    %2586 = vmatprep.subr.mxu0 0.0
    %2587 = vmatpush1.msra.mxu0 0.0
    %2588 = vmatprep.subr.mxu0 0.0
    %2589 = vmatpush1.msra.mxu0 0.0
    %2590 = vmatprep.subr.mxu0 0.0
    %2591 = vmatpush1.msra.mxu0 0.0
    %2592 = vmatprep.subr.mxu0 0.0
    %2593 = vmatpush1.msra.mxu0 0.0
    %2594 = vmatprep.subr.mxu0 0.0
    %2595 = vmatpush1.msra.mxu0 0.0
    %2596 = vmatprep.subr.mxu0 0.0
    %2597 = vmatpush1.msra.mxu0 0.0
    %2598 = vmatprep.subr.mxu0 0.0
    %2599 = vmatpush1.msra.mxu0 0.0
    %2600 = vmatprep.subr.mxu0 0.0
    %2601 = vmatpush1.msra.mxu0 0.0
    %2602 = vmatprep.subr.mxu0 0.0
    %2603 = vmatpush1.msra.mxu0 0.0
    %2604 = vmatprep.subr.mxu0 0.0
    %2605 = vmatpush1.msra.mxu0 0.0
    %2606 = vmatprep.mubr.f32.mxu0 0.0
    %2607 = vmatmul.mubr.f32.gmra.mrb[0].mxu0 %v2540
    %v2608 = vpop.f32.mrb[0].mxu0
    %v2609 = vadd.f32 %v2536, %v2608
    %v2610 = vpop.f32.mrb[0].mxu0
    %2611 = vdwg.mxu0
    %v2612 = vld [vmem:[#allocation23] sm:$0x1]
    %v2614 = vlaneseq
    %v2615 = vshrl.u32 %v2614, 7
    %v2616 = vsub.s32 0, %v2615
    %v2617 = vrot.slane %v2612, %v2616
    %v2619 = vadd.f32 %v2609, %v2617
    %v2620 = vmax.f32 %v2619, 0.0
    %v2621 = vld [vmem:[%s17] sm:$0xff]
    %v2622 = vld [vmem:[%s17 + $0x8] sm:$0xff]
    %v2623 = vld [vmem:[%s17 + $0x10] sm:$0xff]
    %v2624 = vld [vmem:[%s17 + $0x18] sm:$0xff]
    %v2625 = vld [vmem:[#allocation25] sm:$0x1]
    %v2627 = vlaneseq
    %v2628 = vshrl.u32 %v2627, 7
    %v2629 = vsub.s32 0, %v2628
    %v2630 = vrot.slane %v2625, %v2629
    %v2633 = vsel %vm2291, %v2620, 0
    %2635 = vmatprep.subr.mxu0 0.0
    %2636 = vmatpush1.msra.mxu0 %v2621
    %2637 = vmatprep.subr.mxu0 0.0
    %2638 = vmatpush1.msra.mxu0 %v2622
    %2639 = vmatprep.subr.mxu0 0.0
    %2640 = vmatpush1.msra.mxu0 %v2623
    %2641 = vmatprep.subr.mxu0 0.0
    %2642 = vmatpush1.msra.mxu0 %v2624
    %2643 = vmatprep.subr.mxu0 0.0
    %2644 = vmatpush1.msra.mxu0 0.0
    %2645 = vmatprep.subr.mxu0 0.0
    %2646 = vmatpush1.msra.mxu0 0.0
    %2647 = vmatprep.subr.mxu0 0.0
    %2648 = vmatpush1.msra.mxu0 0.0
    %2649 = vmatprep.subr.mxu0 0.0
    %2650 = vmatpush1.msra.mxu0 0.0
    %2651 = vmatprep.subr.mxu0 0.0
    %2652 = vmatpush1.msra.mxu0 0.0
    %2653 = vmatprep.subr.mxu0 0.0
    %2654 = vmatpush1.msra.mxu0 0.0
    %2655 = vmatprep.subr.mxu0 0.0
    %2656 = vmatpush1.msra.mxu0 0.0
    %2657 = vmatprep.subr.mxu0 0.0
    %2658 = vmatpush1.msra.mxu0 0.0
    %2659 = vmatprep.subr.mxu0 0.0
    %2660 = vmatpush1.msra.mxu0 0.0
    %2661 = vmatprep.subr.mxu0 0.0
    %2662 = vmatpush1.msra.mxu0 0.0
    %2663 = vmatprep.subr.mxu0 0.0
    %2664 = vmatpush1.msra.mxu0 0.0
    %2665 = vmatprep.subr.mxu0 0.0
    %2666 = vmatpush1.msra.mxu0 0.0
    %2667 = vmatprep.subr.mxu0 0.0
    %2668 = vmatpush1.msra.mxu0 0.0
    %2669 = vmatprep.subr.mxu0 0.0
    %2670 = vmatpush1.msra.mxu0 0.0
    %2671 = vmatprep.subr.mxu0 0.0
    %2672 = vmatpush1.msra.mxu0 0.0
    %2673 = vmatprep.subr.mxu0 0.0
    %2674 = vmatpush1.msra.mxu0 0.0
    %2675 = vmatprep.subr.mxu0 0.0
    %2676 = vmatpush1.msra.mxu0 0.0
    %2677 = vmatprep.subr.mxu0 0.0
    %2678 = vmatpush1.msra.mxu0 0.0
    %2679 = vmatprep.subr.mxu0 0.0
    %2680 = vmatpush1.msra.mxu0 0.0
    %2681 = vmatprep.subr.mxu0 0.0
    %2682 = vmatpush1.msra.mxu0 0.0
    %2683 = vmatprep.subr.mxu0 0.0
    %2684 = vmatpush1.msra.mxu0 0.0
    %2685 = vmatprep.subr.mxu0 0.0
    %2686 = vmatpush1.msra.mxu0 0.0
    %2687 = vmatprep.subr.mxu0 0.0
    %2688 = vmatpush1.msra.mxu0 0.0
    %2689 = vmatprep.subr.mxu0 0.0
    %2690 = vmatpush1.msra.mxu0 0.0
    %2691 = vmatprep.subr.mxu0 0.0
    %2692 = vmatpush1.msra.mxu0 0.0
    %2693 = vmatprep.subr.mxu0 0.0
    %2694 = vmatpush1.msra.mxu0 0.0
    %2695 = vmatprep.subr.mxu0 0.0
    %2696 = vmatpush1.msra.mxu0 0.0
    %2697 = vmatprep.subr.mxu0 0.0
    %2698 = vmatpush1.msra.mxu0 0.0
    %2699 = vmatprep.mubr.f32.mxu0 0.0
    %2700 = vmatmul.mubr.f32.gmra.mrb[0].mxu0 %v2633
    %v2701 = vpop.f32.mrb[0].mxu0
    %v2702 = vadd.f32 %v2630, %v2701
    %v2703 = vpop.f32.mrb[0].mxu0
    %2704 = vdwg.mxu0
    %vm2705 = vcmask 17408
    %2706 = vst.msk [vmem:[#allocation29] sm:$0x3] %vm2705, %v2702
    // Predicated region
    $region138: #{regressor_forward.1} parent=1 // pred_check
      _
    $region139: #{regressor_forward.1} parent=1 // pred_check_branch
      %2708 = sbr.rel (0) target = $region141
    $region140: #{regressor_forward.1} parent=1 // pred_region
      %s2710 = ssub.s32 64, 64
      %2711 = vsyncadd [#allocation4], %s2710
      %s2713 = sshll.u32 [#allocation26], 4
      %s2714 = int_to_ptr.vmem [resolvable:$true] %s2713
      %2716 = dma.vmem_to_hbm [thread:$0]  %s2714, 64, %s19, [#allocation4]
    $region141: #{regressor_forward.1} parent=1 // pred_fallthru
      _
    // Predicated region
    $region142: #{regressor_forward.1} parent=1 // pred_check
      _
    $region143: #{regressor_forward.1} parent=1 // pred_check_branch
      %2718 = sbr.rel (0) target = $region145
    $region144: #{regressor_forward.1} parent=1 // pred_region
      %s2720 = ssub.s32 32, 32
      %2721 = vsyncadd [#allocation28], %s2720
      %s2723 = sshll.u32 [#allocation27], 4
      %s2724 = int_to_ptr.vmem [resolvable:$true] %s2723
      %2726 = dma.vmem_to_hbm [thread:$0]  %s2724, 32, %s20, [#allocation28]
    $region145: #{regressor_forward.1} parent=1 // pred_fallthru
      _
    // Predicated region
    $region146: #{regressor_forward.1} parent=1 // pred_check
      _
    $region147: #{regressor_forward.1} parent=1 // pred_check_branch
      %2728 = sbr.rel (0) target = $region149
    $region148: #{regressor_forward.1} parent=1 // pred_region
      %s2730 = ssub.s32 32, 32
      %2731 = vsyncadd [#allocation28], %s2730
      %s2733 = sshll.u32 [#allocation29], 4
      %s2734 = int_to_ptr.vmem [resolvable:$true] %s2733
      %2736 = dma.vmem_to_hbm [thread:$0]  %s2734, 32, %s21, [#allocation28]
    $region149: #{regressor_forward.1} parent=1 // pred_fallthru
      _
    // Predicated region
    $region150: #{regressor_forward.1} parent=1 // pred_check
      _
    $region151: #{regressor_forward.1} parent=1 // pred_check_branch
      %2738 = sbr.rel (0) target = $region153
    $region152: #{regressor_forward.1} parent=1 // pred_region
      %2739 = dma.done [#allocation4], 64
    $region153: #{regressor_forward.1} parent=1 // pred_fallthru
      _
    // Predicated region
    $region154: #{regressor_forward.1} parent=1 // pred_check
      _
    $region155: #{regressor_forward.1} parent=1 // pred_check_branch
      %2741 = sbr.rel (0) target = $region157
    $region156: #{regressor_forward.1} parent=1 // pred_region
      %2742 = dma.done [#allocation28], 32
    $region157: #{regressor_forward.1} parent=1 // pred_fallthru
      _
    // Predicated region
    $region158: #{regressor_forward.1} parent=1 // pred_check
      _
    $region159: #{regressor_forward.1} parent=1 // pred_check_branch
      %2744 = sbr.rel (0) target = $region161
    $region160: #{regressor_forward.1} parent=1 // pred_region
      %2745 = dma.done [#allocation28], 32
    $region161: #{regressor_forward.1} parent=1 // pred_fallthru
      _
    %2746 = vsyncpa [#allocation3], 1
    %2747 = vsyncpa [#allocation6], 1
    %2748 = vsyncpa [#allocation9], 1
    %2749 = vsyncpa [#allocation12], 1
    %2750 = vsyncpa [#allocation15], 1
    %2751 = vsyncpa [#allocation18], 1
    %2752 = vsyncpa [#allocation21], 1
    %2753 = vsyncpa [#allocation24], 1
    %2754 = vsyncpa [#allocation4], 1
    %2755 = vsyncpa [#allocation28], 1

</llo_original>
